<compile_context>
chip_gen: v7x
topology: tpu7x:2x2x1
jax: 0.10.0
libtpu: 0.0.40
codegen_flags: <defaults>
</compile_context>

<pallas_src>
import math

import jax
import jax.numpy as jnp
from jax import lax
from jax.experimental import pallas as pl
from jax.experimental.pallas import tpu as pltpu


# -----------------------------------------------------------------------------
# Fused kernel: GRU patient encoder (per feature key) + GCN + classifier + loss
# -----------------------------------------------------------------------------
def dearllm_kernel(codes_ref, emb_ref, wih_ref, whh_ref, bih_ref, bhh_ref,
                   adj_ref, nodex_ref, w1_ref, w2_ref, wp_ref, wg_ref,
                   bcls_ref, y_ref,
                   loss_ref, logits_ref, prob_ref, hout_ref,
                   xw_sc, logit_acc):
    f = pl.program_id(0)
    n_feat = pl.num_programs(0)
    T, B, C = codes_ref.shape          # visits, batch, codes/visit
    V = emb_ref.shape[0]               # vocab
    H = whh_ref.shape[0]               # hidden dim
    H3 = 3 * H

    @pl.when(f == 0)
    def _():
        logit_acc[...] = jnp.zeros_like(logit_acc)

    # ---- per-visit code embedding mean as a multi-hot matmul (no HBM gather) ----
    codes = codes_ref[...]                                        # (T,B,C) int32
    iota_v = lax.broadcasted_iota(jnp.int32, (T, B, V), 2)
    multihot = jnp.zeros((T, B, V), jnp.float32)
    for c in range(C):                                            # static, tiny
        multihot = multihot + (iota_v == codes[:, :, c:c + 1]).astype(jnp.float32)
    multihot = multihot * (1.0 / C)                               # mean over codes

    x = jnp.einsum('tbv,ve->tbe', multihot.astype(jnp.bfloat16), emb_ref[...],
                   preferred_element_type=jnp.float32)            # (T,B,E)

    # ---- hoisted input projection for all timesteps: one fused-gate matmul ----
    xw_sc[...] = jnp.einsum('tbe,eg->tbg', x.astype(jnp.bfloat16), wih_ref[...],
                            preferred_element_type=jnp.float32)   # (T,B,3H)

    whh = whh_ref[...]                                            # (H,3H) bf16
    b_i = bih_ref[...]                                            # (1,3H) f32
    b_h = bhh_ref[...]                                            # (1,3H) f32

    def step(t, h):
        xg = xw_sc[t] + b_i                                       # (B,3H)
        hg = jnp.dot(h.astype(jnp.bfloat16), whh,
                     preferred_element_type=jnp.float32) + b_h    # (B,3H)
        r = jax.nn.sigmoid(xg[:, 0:H] + hg[:, 0:H])
        z = jax.nn.sigmoid(xg[:, H:2 * H] + hg[:, H:2 * H])
        n = jnp.tanh(xg[:, 2 * H:3 * H] + r * hg[:, 2 * H:3 * H])
        return (1.0 - z) * n + z * h

    h_last = lax.fori_loop(0, T, step, jnp.zeros((B, H), jnp.float32),
                           unroll=True)

    hout_ref[...] = h_last                                        # (B,H) per key
    # classifier: accumulate this feature key's contribution (replaces concat)
    logit_acc[...] += jnp.dot(h_last.astype(jnp.bfloat16), wp_ref[...],
                              preferred_element_type=jnp.float32)

    # ---- GraphEncoder + classifier head + BCE loss, last grid step only ----
    @pl.when(f == n_feat - 1)
    def _():
        a = adj_ref[...]                                          # (B,N,N) bf16
        hx = jnp.einsum('bnd,de->bne', nodex_ref[...], w1_ref[...],
                        preferred_element_type=jnp.float32)
        hx = jnp.maximum(jnp.einsum('bmn,bne->bme', a, hx.astype(jnp.bfloat16),
                                    preferred_element_type=jnp.float32), 0.0)
        hx = jnp.einsum('bnd,de->bne', hx.astype(jnp.bfloat16), w2_ref[...],
                        preferred_element_type=jnp.float32)
        hx = jnp.maximum(jnp.einsum('bmn,bne->bme', a, hx.astype(jnp.bfloat16),
                                    preferred_element_type=jnp.float32), 0.0)
        # TODO(synk): ReLU after the final GCN layer before mean-pool follows the
        # original kernel; verify against the reference GraphEncoder.
        graph_embed = jnp.mean(hx, axis=1)                        # (B,D2)

        # TODO(synk): nn.Dropout(train_dropout_rate) is train-only; identity here.
        logits = (logit_acc[...]
                  + jnp.dot(graph_embed.astype(jnp.bfloat16), wg_ref[...],
                            preferred_element_type=jnp.float32)
                  + bcls_ref[...])                                # (B,out)
        logits_ref[...] = logits
        prob_ref[...] = jax.nn.sigmoid(logits)                    # prepare_y_prob

        y = y_ref[...]
        # numerically stable binary_cross_entropy_with_logits, mean reduction
        elt = (jnp.maximum(logits, 0.0) - logits * y
               + jnp.log1p(jnp.exp(-jnp.abs(logits))))
        loss_ref[...] = jnp.mean(elt).reshape(1, 1)


def dearllm_fused(codes_tm, feat_emb, w_ih_f, w_hh_f, b_ih_f, b_hh_f,
                  adj, node_x, w1, w2, w_p, w_g, b_cls, y_true):
    F_, T, B, C = codes_tm.shape
    V, E = feat_emb.shape[1], feat_emb.shape[2]
    H = w_hh_f.shape[1]
    H3 = 3 * H
    N = adj.shape[1]
    D0, D1, D2 = w1.shape[0], w1.shape[1], w2.shape[1]
    out = w_g.shape[1]

    in_specs = [
        pl.BlockSpec((None, T, B, C), lambda f: (f, 0, 0, 0)),   # codes (time-major)
        pl.BlockSpec((None, V, E),    lambda f: (f, 0, 0)),      # feat embedding
        pl.BlockSpec((None, E, H3),   lambda f: (f, 0, 0)),      # fused W_ih
        pl.BlockSpec((None, H, H3),   lambda f: (f, 0, 0)),      # fused W_hh
        pl.BlockSpec((None, 1, H3),   lambda f: (f, 0, 0)),      # b_ih
        pl.BlockSpec((None, 1, H3),   lambda f: (f, 0, 0)),      # b_hh
        pl.BlockSpec((B, N, N),       lambda f: (0, 0, 0)),      # adj (resident)
        pl.BlockSpec((B, N, D0),      lambda f: (0, 0, 0)),      # node features
        pl.BlockSpec((D0, D1),        lambda f: (0, 0)),         # GCN W1
        pl.BlockSpec((D1, D2),        lambda f: (0, 0)),         # GCN W2
        pl.BlockSpec((None, H, out),  lambda f: (f, 0, 0)),      # W_cls patient slice
        pl.BlockSpec((D2, out),       lambda f: (0, 0)),         # W_cls graph part
        pl.BlockSpec((1, out),        lambda f: (0, 0)),         # classifier bias
        pl.BlockSpec((B, out),        lambda f: (0, 0)),         # labels
    ]
    out_shapes = (
        jax.ShapeDtypeStruct((1, 1), jnp.float32),               # loss
        jax.ShapeDtypeStruct((B, out), jnp.float32),             # logits
        jax.ShapeDtypeStruct((B, out), jnp.float32),             # probs
        jax.ShapeDtypeStruct((F_, B, H), jnp.float32),           # per-key h_last
    )
    out_specs = (
        pl.BlockSpec((1, 1), lambda f: (0, 0)),
        pl.BlockSpec((B, out), lambda f: (0, 0)),
        pl.BlockSpec((B, out), lambda f: (0, 0)),
        pl.BlockSpec((None, B, H), lambda f: (f, 0, 0)),
    )
    return pl.pallas_call(
        dearllm_kernel,
        out_shape=out_shapes,
        grid_spec=pltpu.PrefetchScalarGridSpec(
            num_scalar_prefetch=0,
            grid=(F_,),
            in_specs=in_specs,
            out_specs=out_specs,
            scratch_shapes=[pltpu.VMEM((T, B, H3), jnp.float32),   # hoisted x@W_ih
                            pltpu.VMEM((B, out), jnp.float32)]),   # logits accumulator
        compiler_params=pltpu.CompilerParams(
            # classifier logits are accumulated across feature keys -> must be serial
            dimension_semantics=("arbitrary",)),
    )(codes_tm, feat_emb, w_ih_f, w_hh_f, b_ih_f, b_hh_f,
      adj, node_x, w1, w2, w_p, w_g, b_cls, y_true)


# -----------------------------------------------------------------------------
# Parameter preparation: fuse GRU gates lane-dense, split classifier, bf16 cast
# -----------------------------------------------------------------------------
def prepare_params(params):
    (feat_emb, w_ih, w_hh, b_ih, b_hh, node_emb, w1, w2, w_cls, b_cls) = params
    F_, _, H, E = w_ih.shape
    # (F,3,H,E)/(F,3,H,H) -> lane-dense (F,E,3H)/(F,H,3H), gate columns [r|z|n]
    w_ih_f = jnp.transpose(w_ih.reshape(F_, 3 * H, E), (0, 2, 1)).astype(jnp.bfloat16)
    w_hh_f = jnp.transpose(w_hh.reshape(F_, 3 * H, H), (0, 2, 1)).astype(jnp.bfloat16)
    b_ih_f = b_ih.reshape(F_, 1, 3 * H).astype(jnp.float32)
    b_hh_f = b_hh.reshape(F_, 1, 3 * H).astype(jnp.float32)
    # split classifier: logits = sum_f h_f @ W_p[f] + graph @ W_g + b
    out_size, in_dim = w_cls.shape
    D2 = w2.shape[1]
    P = in_dim - D2
    w_p = jnp.transpose(w_cls[:, :P]).reshape(F_, H, out_size).astype(jnp.bfloat16)
    w_g = jnp.transpose(w_cls[:, P:]).astype(jnp.bfloat16)        # (D2, out)
    return (feat_emb.astype(jnp.bfloat16), w_ih_f, w_hh_f, b_ih_f, b_hh_f,
            node_emb.astype(jnp.bfloat16), w1.astype(jnp.bfloat16),
            w2.astype(jnp.bfloat16), w_p, w_g, b_cls.astype(jnp.float32))


# -----------------------------------------------------------------------------
# DearLLM forward (only tiny glue left in XLA: node gather, layout of outputs)
# -----------------------------------------------------------------------------
def dearllm_forward(prepped, codes, node_ids, adj_norm, y_true):
    (feat_emb, w_ih_f, w_hh_f, b_ih_f, b_hh_f,
     node_emb, w1, w2, w_p, w_g, b_cls) = prepped
    F_, B, T, C = codes.shape
    H = w_hh_f.shape[1]

    codes_tm = jnp.transpose(codes, (0, 2, 1, 3)).astype(jnp.int32)   # (F,T,B,C)
    node_x = node_emb[node_ids]                                       # (B,N,D0) bf16

    loss, logits, probs, h_fbh = dearllm_fused(
        codes_tm, feat_emb, w_ih_f, w_hh_f, b_ih_f, b_hh_f,
        adj_norm.astype(jnp.bfloat16), node_x, w1, w2, w_p, w_g, b_cls,
        y_true.astype(jnp.float32))

    patient_embed = jnp.transpose(h_fbh, (1, 0, 2)).reshape(B, F_ * H)
    return loss[0, 0], logits, y_true, probs, patient_embed


# -----------------------------------------------------------------------------
if __name__ == "__main__":
    key = jax.random.PRNGKey(0)
    B, n_feat, T, C = 2, 2, 8, 4           # batch, feature keys, visits, codes/visit
    E, H = 16, 32                          # embed_dim, hidden_dim
    vocab = 50
    node_num, node_dim, N = 32, 16, 16     # embedding table size, node_dim, nodes/graph
    g_dims = [node_dim, 32, 32]            # [node_dim] + gencoder_dim_list
    out_size = 8                           # classifier output size (multilabel)

    ks = jax.random.split(key, 16)

    def xavier(k, shape, fan_in, fan_out):
        a = math.sqrt(6.0 / (fan_in + fan_out))
        return jax.random.uniform(k, shape, jnp.float32, -a, a)

    # parameters (deterministic synthetic init)
    feat_emb = xavier(ks[0], (n_feat, vocab, E), vocab, E)                 # Embedding
    s = 1.0 / math.sqrt(H)                                                 # GRU default init
    w_ih = jax.random.uniform(ks[1], (n_feat, 3, H, E), jnp.float32, -s, s)
    w_hh = jax.random.uniform(ks[2], (n_feat, 3, H, H), jnp.float32, -s, s)
    b_ih = jax.random.uniform(ks[3], (n_feat, 3, H), jnp.float32, -s, s)
    b_hh = jax.random.uniform(ks[4], (n_feat, 3, H), jnp.float32, -s, s)
    node_emb = xavier(ks[5], (node_num, node_dim), node_num, node_dim)     # node_embedding
    w1 = xavier(ks[6], (g_dims[0], g_dims[1]), g_dims[0], g_dims[1])       # GraphEncoder
    w2 = xavier(ks[7], (g_dims[1], g_dims[2]), g_dims[1], g_dims[2])
    patient_dim = n_feat * H
    in_dim = patient_dim + g_dims[-1]
    w_cls = xavier(ks[8], (out_size, in_dim), in_dim, out_size)            # classfier_fc
    b_cls = jnp.zeros((1, out_size), jnp.float32)
    params = (feat_emb, w_ih, w_hh, b_ih, b_hh, node_emb, w1, w2, w_cls, b_cls)
    prepped = prepare_params(params)

    # synthetic inputs
    codes = jax.random.randint(ks[9], (n_feat, B, T, C), 0, vocab)
    node_ids = jax.random.randint(ks[10], (B, N), 0, node_num)
    adj_r = (jax.random.uniform(ks[11], (B, N, N)) > 0.7).astype(jnp.float32)
    adj = jnp.clip(adj_r + jnp.transpose(adj_r, (0, 2, 1)), 0.0, 1.0) + jnp.eye(N)[None]
    dinv = 1.0 / jnp.sqrt(jnp.sum(adj, axis=-1))
    adj_norm = adj * dinv[:, :, None] * dinv[:, None, :]                   # D^-1/2 (A+I) D^-1/2
    y_true = (jax.random.uniform(ks[12], (B, out_size)) > 0.5).astype(jnp.float32)

    fwd = jax.jit(dearllm_forward)
    outs = fwd(prepped, codes, node_ids, adj_norm, y_true)
    jax.block_until_ready(outs)
    print("KERNEL_OK")
</pallas_src>

<mosaic_0001>
module attributes {stable_mosaic.version = 11 : i64} {
  func.func @dearllm_kernel(%arg0: i32, %arg1: memref<1x8x2x4xi32, #tpu.memory_space<vmem>>, %arg2: memref<1x50x16xbf16, #tpu.memory_space<vmem>>, %arg3: memref<1x16x96xbf16, #tpu.memory_space<vmem>>, %arg4: memref<1x32x96xbf16, #tpu.memory_space<vmem>>, %arg5: memref<1x1x96xf32, #tpu.memory_space<vmem>>, %arg6: memref<1x1x96xf32, #tpu.memory_space<vmem>>, %arg7: memref<2x16x16xbf16, #tpu.memory_space<vmem>>, %arg8: memref<2x16x16xbf16, #tpu.memory_space<vmem>>, %arg9: memref<16x32xbf16, #tpu.memory_space<vmem>>, %arg10: memref<32x32xbf16, #tpu.memory_space<vmem>>, %arg11: memref<1x32x8xbf16, #tpu.memory_space<vmem>>, %arg12: memref<32x8xbf16, #tpu.memory_space<vmem>>, %arg13: memref<1x8xf32, #tpu.memory_space<vmem>>, %arg14: memref<2x8xf32, #tpu.memory_space<vmem>>, %arg15: memref<1x1xf32, #tpu.memory_space<vmem>>, %arg16: memref<2x8xf32, #tpu.memory_space<vmem>>, %arg17: memref<2x8xf32, #tpu.memory_space<vmem>>, %arg18: memref<1x2x32xf32, #tpu.memory_space<vmem>>, %arg19: memref<8x2x96xf32, #tpu.memory_space<vmem>>, %arg20: memref<2x8xf32, #tpu.memory_space<vmem>>) attributes {dimension_semantics = [#tpu.dimension_semantics<arbitrary>], iteration_bounds = array<i64: 2>, scalar_prefetch = 0 : i64, scratch_operands = 2 : i64, tpu.core_type = #tpu.core_type<tc>, window_params = [{transform_indices = @transform_0, window_bounds = array<i64: 1, 8, 2, 4>}, {transform_indices = @transform_1, window_bounds = array<i64: 1, 50, 16>}, {transform_indices = @transform_2, window_bounds = array<i64: 1, 16, 96>}, {transform_indices = @transform_3, window_bounds = array<i64: 1, 32, 96>}, {transform_indices = @transform_4, window_bounds = array<i64: 1, 1, 96>}, {transform_indices = @transform_5, window_bounds = array<i64: 1, 1, 96>}, {pipeline_mode = #tpu.pipeline_mode<synchronous>, transform_indices = @transform_6, window_bounds = array<i64: 2, 16, 16>}, {pipeline_mode = #tpu.pipeline_mode<synchronous>, transform_indices = @transform_7, window_bounds = array<i64: 2, 16, 16>}, {pipeline_mode = #tpu.pipeline_mode<synchronous>, transform_indices = @transform_8, window_bounds = array<i64: 16, 32>}, {pipeline_mode = #tpu.pipeline_mode<synchronous>, transform_indices = @transform_9, window_bounds = array<i64: 32, 32>}, {transform_indices = @transform_10, window_bounds = array<i64: 1, 32, 8>}, {pipeline_mode = #tpu.pipeline_mode<synchronous>, transform_indices = @transform_11, window_bounds = array<i64: 32, 8>}, {pipeline_mode = #tpu.pipeline_mode<synchronous>, transform_indices = @transform_12, window_bounds = array<i64: 1, 8>}, {pipeline_mode = #tpu.pipeline_mode<synchronous>, transform_indices = @transform_13, window_bounds = array<i64: 2, 8>}, {pipeline_mode = #tpu.pipeline_mode<synchronous>, transform_indices = @transform_14, window_bounds = array<i64: 1, 1>}, {pipeline_mode = #tpu.pipeline_mode<synchronous>, transform_indices = @transform_15, window_bounds = array<i64: 2, 8>}, {pipeline_mode = #tpu.pipeline_mode<synchronous>, transform_indices = @transform_16, window_bounds = array<i64: 2, 8>}, {transform_indices = @transform_17, window_bounds = array<i64: 1, 2, 32>}]} {
    %c0_i32 = arith.constant 0 : i32
    %0 = arith.cmpi eq, %arg0, %c0_i32 : i32
    %1 = arith.extui %0 : i1 to i32
    %c0_i32_0 = arith.constant 0 : i32
    %2 = arith.cmpi ne, %1, %c0_i32_0 : i32
    scf.if %2 {
      %cst_88 = arith.constant 0.000000e+00 : f32
      %342 = vector.broadcast %cst_88 : f32 to vector<2x8xf32>
      %c0_89 = arith.constant 0 : index
      %c0_90 = arith.constant 0 : index
      %343 = vector.load %arg20[%c0_89, %c0_90] : memref<2x8xf32, #tpu.memory_space<vmem>>, vector<2x8xf32>
      tpu.vector_store %arg20[%c0_89, %c0_90], %342 {strides = array<i32>} : memref<2x8xf32, #tpu.memory_space<vmem>>, vector<2x8xf32>,
    } else {
    }
    %c0 = arith.constant 0 : index
    %c0_1 = arith.constant 0 : index
    %c0_2 = arith.constant 0 : index
    %c0_3 = arith.constant 0 : index
    %3 = vector.load %arg1[%c0, %c0_1, %c0_2, %c0_3] : memref<1x8x2x4xi32, #tpu.memory_space<vmem>>, vector<1x8x2x4xi32>
    %4 = vector.shape_cast %3 : vector<1x8x2x4xi32> to vector<8x2x4xi32>
    %5 = tpu.iota {dimensions = array<i32: 2>} : vector<8x2x50xi32>
    %cst = arith.constant 0.000000e+00 : f32
    %6 = vector.broadcast %cst : f32 to vector<8x2x50xf32>
    %7 = vector.extract_strided_slice %4 {offsets = [0, 0, 0], sizes = [8, 2, 1], strides = [1, 1, 1]} : vector<8x2x4xi32> to vector<8x2x1xi32>
    %8 = vector.broadcast %7 : vector<8x2x1xi32> to vector<8x2x50xi32>
    %9 = arith.cmpi eq, %5, %8 : vector<8x2x50xi32>
    %10 = arith.extui %9 : vector<8x2x50xi1> to vector<8x2x50xi32>
    %11 = arith.sitofp %10 : vector<8x2x50xi32> to vector<8x2x50xf32>
    %12 = arith.addf %6, %11 : vector<8x2x50xf32>
    %13 = vector.extract_strided_slice %4 {offsets = [0, 0, 1], sizes = [8, 2, 1], strides = [1, 1, 1]} : vector<8x2x4xi32> to vector<8x2x1xi32>
    %14 = vector.broadcast %13 : vector<8x2x1xi32> to vector<8x2x50xi32>
    %15 = arith.cmpi eq, %5, %14 : vector<8x2x50xi32>
    %16 = arith.extui %15 : vector<8x2x50xi1> to vector<8x2x50xi32>
    %17 = arith.sitofp %16 : vector<8x2x50xi32> to vector<8x2x50xf32>
    %18 = arith.addf %12, %17 : vector<8x2x50xf32>
    %19 = vector.extract_strided_slice %4 {offsets = [0, 0, 2], sizes = [8, 2, 1], strides = [1, 1, 1]} : vector<8x2x4xi32> to vector<8x2x1xi32>
    %20 = vector.broadcast %19 : vector<8x2x1xi32> to vector<8x2x50xi32>
    %21 = arith.cmpi eq, %5, %20 : vector<8x2x50xi32>
    %22 = arith.extui %21 : vector<8x2x50xi1> to vector<8x2x50xi32>
    %23 = arith.sitofp %22 : vector<8x2x50xi32> to vector<8x2x50xf32>
    %24 = arith.addf %18, %23 : vector<8x2x50xf32>
    %25 = vector.extract_strided_slice %4 {offsets = [0, 0, 3], sizes = [8, 2, 1], strides = [1, 1, 1]} : vector<8x2x4xi32> to vector<8x2x1xi32>
    %26 = vector.broadcast %25 : vector<8x2x1xi32> to vector<8x2x50xi32>
    %27 = arith.cmpi eq, %5, %26 : vector<8x2x50xi32>
    %28 = arith.extui %27 : vector<8x2x50xi1> to vector<8x2x50xi32>
    %29 = arith.sitofp %28 : vector<8x2x50xi32> to vector<8x2x50xf32>
    %30 = arith.addf %24, %29 : vector<8x2x50xf32>
    %cst_4 = arith.constant 2.500000e-01 : f32
    %31 = vector.broadcast %cst_4 : f32 to vector<8x2x50xf32>
    %32 = arith.mulf %30, %31 : vector<8x2x50xf32>
    %33 = arith.truncf %32 : vector<8x2x50xf32> to vector<8x2x50xbf16>
    %c0_5 = arith.constant 0 : index
    %c0_6 = arith.constant 0 : index
    %c0_7 = arith.constant 0 : index
    %34 = vector.load %arg2[%c0_5, %c0_6, %c0_7] : memref<1x50x16xbf16, #tpu.memory_space<vmem>>, vector<1x50x16xbf16>
    %35 = vector.shape_cast %34 : vector<1x50x16xbf16> to vector<50x16xbf16>
    "tpu.trace_start"() <{level = 10 : i32, message = "tbv,ve->tbe"}> : () -> ()
    %cst_8 = arith.constant dense<0.000000e+00> : vector<8x2x16xf32>
    %36 = tpu.matmul %33, %35, %cst_8 {dimension_numbers = #tpu.dot_dimension_numbers<[2], [0], [0, 1], [1], [0, 0, 0, 1, 1, 1], [], []>} : vector<8x2x50xbf16>, vector<50x16xbf16>, vector<8x2x16xf32> -> vector<8x2x16xf32>
    "tpu.trace_stop"() : () -> ()
    %37 = arith.truncf %36 : vector<8x2x16xf32> to vector<8x2x16xbf16>
    %c0_9 = arith.constant 0 : index
    %c0_10 = arith.constant 0 : index
    %c0_11 = arith.constant 0 : index
    %38 = vector.load %arg3[%c0_9, %c0_10, %c0_11] : memref<1x16x96xbf16, #tpu.memory_space<vmem>>, vector<1x16x96xbf16>
    %39 = vector.shape_cast %38 : vector<1x16x96xbf16> to vector<16x96xbf16>
    "tpu.trace_start"() <{level = 10 : i32, message = "tbe,eg->tbg"}> : () -> ()
    %cst_12 = arith.constant dense<0.000000e+00> : vector<8x2x96xf32>
    %40 = tpu.matmul %37, %39, %cst_12 {dimension_numbers = #tpu.dot_dimension_numbers<[2], [0], [0, 1], [1], [0, 0, 0, 1, 1, 1], [], []>} : vector<8x2x16xbf16>, vector<16x96xbf16>, vector<8x2x96xf32> -> vector<8x2x96xf32>
    "tpu.trace_stop"() : () -> ()
    %c0_13 = arith.constant 0 : index
    %c0_14 = arith.constant 0 : index
    %c0_15 = arith.constant 0 : index
    %41 = vector.load %arg19[%c0_13, %c0_14, %c0_15] : memref<8x2x96xf32, #tpu.memory_space<vmem>>, vector<8x2x96xf32>
    tpu.vector_store %arg19[%c0_13, %c0_14, %c0_15], %40 {strides = array<i32>} : memref<8x2x96xf32, #tpu.memory_space<vmem>>, vector<8x2x96xf32>,
    %c0_16 = arith.constant 0 : index
    %c0_17 = arith.constant 0 : index
    %c0_18 = arith.constant 0 : index
    %42 = vector.load %arg4[%c0_16, %c0_17, %c0_18] : memref<1x32x96xbf16, #tpu.memory_space<vmem>>, vector<1x32x96xbf16>
    %43 = vector.shape_cast %42 : vector<1x32x96xbf16> to vector<32x96xbf16>
    %c0_19 = arith.constant 0 : index
    %c0_20 = arith.constant 0 : index
    %c0_21 = arith.constant 0 : index
    %44 = vector.load %arg5[%c0_19, %c0_20, %c0_21] : memref<1x1x96xf32, #tpu.memory_space<vmem>>, vector<1x1x96xf32>
    %45 = vector.shape_cast %44 : vector<1x1x96xf32> to vector<1x96xf32>
    %c0_22 = arith.constant 0 : index
    %c0_23 = arith.constant 0 : index
    %c0_24 = arith.constant 0 : index
    %46 = vector.load %arg6[%c0_22, %c0_23, %c0_24] : memref<1x1x96xf32, #tpu.memory_space<vmem>>, vector<1x1x96xf32>
    %47 = vector.shape_cast %46 : vector<1x1x96xf32> to vector<1x96xf32>
    %cst_25 = arith.constant 0.000000e+00 : f32
    %48 = vector.broadcast %cst_25 : f32 to vector<2x32xf32>
    %c0_i32_26 = arith.constant 0 : i32
    %49 = arith.index_cast %c0_i32_26 : i32 to index
    %c0_27 = arith.constant 0 : index
    %c0_28 = arith.constant 0 : index
    %50 = vector.load %arg19[%49, %c0_27, %c0_28] : memref<8x2x96xf32, #tpu.memory_space<vmem>>, vector<1x2x96xf32>
    %51 = vector.shape_cast %50 : vector<1x2x96xf32> to vector<2x96xf32>
    %52 = vector.broadcast %45 : vector<1x96xf32> to vector<2x96xf32>
    %53 = arith.addf %51, %52 : vector<2x96xf32>
    %54 = arith.truncf %48 : vector<2x32xf32> to vector<2x32xbf16>
    %cst_29 = arith.constant dense<0.000000e+00> : vector<2x96xf32>
    %55 = tpu.matmul %54, %43, %cst_29 {dimension_numbers = #tpu.dot_dimension_numbers<[1], [0], [0], [1], [0, 0, 1, 1], [], []>} : vector<2x32xbf16>, vector<32x96xbf16>, vector<2x96xf32> -> vector<2x96xf32>
    %56 = vector.broadcast %47 : vector<1x96xf32> to vector<2x96xf32>
    %57 = arith.addf %55, %56 : vector<2x96xf32>
    %58 = vector.extract_strided_slice %53 {offsets = [0, 0], sizes = [2, 32], strides = [1, 1]} : vector<2x96xf32> to vector<2x32xf32>
    %59 = vector.extract_strided_slice %57 {offsets = [0, 0], sizes = [2, 32], strides = [1, 1]} : vector<2x96xf32> to vector<2x32xf32>
    %60 = arith.addf %58, %59 : vector<2x32xf32>
    %61 = arith.negf %60 : vector<2x32xf32>
    %62 = math.exp %61 : vector<2x32xf32>
    %cst_30 = arith.constant 1.000000e+00 : f32
    %63 = vector.broadcast %cst_30 : f32 to vector<2x32xf32>
    %64 = arith.addf %63, %62 : vector<2x32xf32>
    %65 = arith.divf %63, %64 : vector<2x32xf32>
    %66 = vector.extract_strided_slice %53 {offsets = [0, 32], sizes = [2, 32], strides = [1, 1]} : vector<2x96xf32> to vector<2x32xf32>
    %67 = vector.extract_strided_slice %57 {offsets = [0, 32], sizes = [2, 32], strides = [1, 1]} : vector<2x96xf32> to vector<2x32xf32>
    %68 = arith.addf %66, %67 : vector<2x32xf32>
    %69 = arith.negf %68 : vector<2x32xf32>
    %70 = math.exp %69 : vector<2x32xf32>
    %cst_31 = arith.constant 1.000000e+00 : f32
    %71 = vector.broadcast %cst_31 : f32 to vector<2x32xf32>
    %72 = arith.addf %71, %70 : vector<2x32xf32>
    %73 = arith.divf %71, %72 : vector<2x32xf32>
    %74 = vector.extract_strided_slice %53 {offsets = [0, 64], sizes = [2, 32], strides = [1, 1]} : vector<2x96xf32> to vector<2x32xf32>
    %75 = vector.extract_strided_slice %57 {offsets = [0, 64], sizes = [2, 32], strides = [1, 1]} : vector<2x96xf32> to vector<2x32xf32>
    %76 = arith.mulf %65, %75 : vector<2x32xf32>
    %77 = arith.addf %74, %76 : vector<2x32xf32>
    %78 = math.tanh %77 : vector<2x32xf32>
    %cst_32 = arith.constant 1.000000e+00 : f32
    %79 = vector.broadcast %cst_32 : f32 to vector<2x32xf32>
    %80 = arith.subf %79, %73 : vector<2x32xf32>
    %81 = arith.mulf %80, %78 : vector<2x32xf32>
    %82 = arith.mulf %73, %48 : vector<2x32xf32>
    %83 = arith.addf %81, %82 : vector<2x32xf32>
    %c1_i32 = arith.constant 1 : i32
    %84 = arith.index_cast %c1_i32 : i32 to index
    %c0_33 = arith.constant 0 : index
    %c0_34 = arith.constant 0 : index
    %85 = vector.load %arg19[%84, %c0_33, %c0_34] : memref<8x2x96xf32, #tpu.memory_space<vmem>>, vector<1x2x96xf32>
    %86 = vector.shape_cast %85 : vector<1x2x96xf32> to vector<2x96xf32>
    %87 = vector.broadcast %45 : vector<1x96xf32> to vector<2x96xf32>
    %88 = arith.addf %86, %87 : vector<2x96xf32>
    %89 = arith.truncf %83 : vector<2x32xf32> to vector<2x32xbf16>
    %cst_35 = arith.constant dense<0.000000e+00> : vector<2x96xf32>
    %90 = tpu.matmul %89, %43, %cst_35 {dimension_numbers = #tpu.dot_dimension_numbers<[1], [0], [0], [1], [0, 0, 1, 1], [], []>} : vector<2x32xbf16>, vector<32x96xbf16>, vector<2x96xf32> -> vector<2x96xf32>
    %91 = vector.broadcast %47 : vector<1x96xf32> to vector<2x96xf32>
    %92 = arith.addf %90, %91 : vector<2x96xf32>
    %93 = vector.extract_strided_slice %88 {offsets = [0, 0], sizes = [2, 32], strides = [1, 1]} : vector<2x96xf32> to vector<2x32xf32>
    %94 = vector.extract_strided_slice %92 {offsets = [0, 0], sizes = [2, 32], strides = [1, 1]} : vector<2x96xf32> to vector<2x32xf32>
    %95 = arith.addf %93, %94 : vector<2x32xf32>
    %96 = arith.negf %95 : vector<2x32xf32>
    %97 = math.exp %96 : vector<2x32xf32>
    %cst_36 = arith.constant 1.000000e+00 : f32
    %98 = vector.broadcast %cst_36 : f32 to vector<2x32xf32>
    %99 = arith.addf %98, %97 : vector<2x32xf32>
    %100 = arith.divf %98, %99 : vector<2x32xf32>
    %101 = vector.extract_strided_slice %88 {offsets = [0, 32], sizes = [2, 32], strides = [1, 1]} : vector<2x96xf32> to vector<2x32xf32>
    %102 = vector.extract_strided_slice %92 {offsets = [0, 32], sizes = [2, 32], strides = [1, 1]} : vector<2x96xf32> to vector<2x32xf32>
    %103 = arith.addf %101, %102 : vector<2x32xf32>
    %104 = arith.negf %103 : vector<2x32xf32>
    %105 = math.exp %104 : vector<2x32xf32>
    %cst_37 = arith.constant 1.000000e+00 : f32
    %106 = vector.broadcast %cst_37 : f32 to vector<2x32xf32>
    %107 = arith.addf %106, %105 : vector<2x32xf32>
    %108 = arith.divf %106, %107 : vector<2x32xf32>
    %109 = vector.extract_strided_slice %88 {offsets = [0, 64], sizes = [2, 32], strides = [1, 1]} : vector<2x96xf32> to vector<2x32xf32>
    %110 = vector.extract_strided_slice %92 {offsets = [0, 64], sizes = [2, 32], strides = [1, 1]} : vector<2x96xf32> to vector<2x32xf32>
    %111 = arith.mulf %100, %110 : vector<2x32xf32>
    %112 = arith.addf %109, %111 : vector<2x32xf32>
    %113 = math.tanh %112 : vector<2x32xf32>
    %cst_38 = arith.constant 1.000000e+00 : f32
    %114 = vector.broadcast %cst_38 : f32 to vector<2x32xf32>
    %115 = arith.subf %114, %108 : vector<2x32xf32>
    %116 = arith.mulf %115, %113 : vector<2x32xf32>
    %117 = arith.mulf %108, %83 : vector<2x32xf32>
    %118 = arith.addf %116, %117 : vector<2x32xf32>
    %c2_i32 = arith.constant 2 : i32
    %119 = arith.index_cast %c2_i32 : i32 to index
    %c0_39 = arith.constant 0 : index
    %c0_40 = arith.constant 0 : index
    %120 = vector.load %arg19[%119, %c0_39, %c0_40] : memref<8x2x96xf32, #tpu.memory_space<vmem>>, vector<1x2x96xf32>
    %121 = vector.shape_cast %120 : vector<1x2x96xf32> to vector<2x96xf32>
    %122 = vector.broadcast %45 : vector<1x96xf32> to vector<2x96xf32>
    %123 = arith.addf %121, %122 : vector<2x96xf32>
    %124 = arith.truncf %118 : vector<2x32xf32> to vector<2x32xbf16>
    %cst_41 = arith.constant dense<0.000000e+00> : vector<2x96xf32>
    %125 = tpu.matmul %124, %43, %cst_41 {dimension_numbers = #tpu.dot_dimension_numbers<[1], [0], [0], [1], [0, 0, 1, 1], [], []>} : vector<2x32xbf16>, vector<32x96xbf16>, vector<2x96xf32> -> vector<2x96xf32>
    %126 = vector.broadcast %47 : vector<1x96xf32> to vector<2x96xf32>
    %127 = arith.addf %125, %126 : vector<2x96xf32>
    %128 = vector.extract_strided_slice %123 {offsets = [0, 0], sizes = [2, 32], strides = [1, 1]} : vector<2x96xf32> to vector<2x32xf32>
    %129 = vector.extract_strided_slice %127 {offsets = [0, 0], sizes = [2, 32], strides = [1, 1]} : vector<2x96xf32> to vector<2x32xf32>
    %130 = arith.addf %128, %129 : vector<2x32xf32>
    %131 = arith.negf %130 : vector<2x32xf32>
    %132 = math.exp %131 : vector<2x32xf32>
    %cst_42 = arith.constant 1.000000e+00 : f32
    %133 = vector.broadcast %cst_42 : f32 to vector<2x32xf32>
    %134 = arith.addf %133, %132 : vector<2x32xf32>
    %135 = arith.divf %133, %134 : vector<2x32xf32>
    %136 = vector.extract_strided_slice %123 {offsets = [0, 32], sizes = [2, 32], strides = [1, 1]} : vector<2x96xf32> to vector<2x32xf32>
    %137 = vector.extract_strided_slice %127 {offsets = [0, 32], sizes = [2, 32], strides = [1, 1]} : vector<2x96xf32> to vector<2x32xf32>
    %138 = arith.addf %136, %137 : vector<2x32xf32>
    %139 = arith.negf %138 : vector<2x32xf32>
    %140 = math.exp %139 : vector<2x32xf32>
    %cst_43 = arith.constant 1.000000e+00 : f32
    %141 = vector.broadcast %cst_43 : f32 to vector<2x32xf32>
    %142 = arith.addf %141, %140 : vector<2x32xf32>
    %143 = arith.divf %141, %142 : vector<2x32xf32>
    %144 = vector.extract_strided_slice %123 {offsets = [0, 64], sizes = [2, 32], strides = [1, 1]} : vector<2x96xf32> to vector<2x32xf32>
    %145 = vector.extract_strided_slice %127 {offsets = [0, 64], sizes = [2, 32], strides = [1, 1]} : vector<2x96xf32> to vector<2x32xf32>
    %146 = arith.mulf %135, %145 : vector<2x32xf32>
    %147 = arith.addf %144, %146 : vector<2x32xf32>
    %148 = math.tanh %147 : vector<2x32xf32>
    %cst_44 = arith.constant 1.000000e+00 : f32
    %149 = vector.broadcast %cst_44 : f32 to vector<2x32xf32>
    %150 = arith.subf %149, %143 : vector<2x32xf32>
    %151 = arith.mulf %150, %148 : vector<2x32xf32>
    %152 = arith.mulf %143, %118 : vector<2x32xf32>
    %153 = arith.addf %151, %152 : vector<2x32xf32>
    %c3_i32 = arith.constant 3 : i32
    %154 = arith.index_cast %c3_i32 : i32 to index
    %c0_45 = arith.constant 0 : index
    %c0_46 = arith.constant 0 : index
    %155 = vector.load %arg19[%154, %c0_45, %c0_46] : memref<8x2x96xf32, #tpu.memory_space<vmem>>, vector<1x2x96xf32>
    %156 = vector.shape_cast %155 : vector<1x2x96xf32> to vector<2x96xf32>
    %157 = vector.broadcast %45 : vector<1x96xf32> to vector<2x96xf32>
    %158 = arith.addf %156, %157 : vector<2x96xf32>
    %159 = arith.truncf %153 : vector<2x32xf32> to vector<2x32xbf16>
    %cst_47 = arith.constant dense<0.000000e+00> : vector<2x96xf32>
    %160 = tpu.matmul %159, %43, %cst_47 {dimension_numbers = #tpu.dot_dimension_numbers<[1], [0], [0], [1], [0, 0, 1, 1], [], []>} : vector<2x32xbf16>, vector<32x96xbf16>, vector<2x96xf32> -> vector<2x96xf32>
    %161 = vector.broadcast %47 : vector<1x96xf32> to vector<2x96xf32>
    %162 = arith.addf %160, %161 : vector<2x96xf32>
    %163 = vector.extract_strided_slice %158 {offsets = [0, 0], sizes = [2, 32], strides = [1, 1]} : vector<2x96xf32> to vector<2x32xf32>
    %164 = vector.extract_strided_slice %162 {offsets = [0, 0], sizes = [2, 32], strides = [1, 1]} : vector<2x96xf32> to vector<2x32xf32>
    %165 = arith.addf %163, %164 : vector<2x32xf32>
    %166 = arith.negf %165 : vector<2x32xf32>
    %167 = math.exp %166 : vector<2x32xf32>
    %cst_48 = arith.constant 1.000000e+00 : f32
    %168 = vector.broadcast %cst_48 : f32 to vector<2x32xf32>
    %169 = arith.addf %168, %167 : vector<2x32xf32>
    %170 = arith.divf %168, %169 : vector<2x32xf32>
    %171 = vector.extract_strided_slice %158 {offsets = [0, 32], sizes = [2, 32], strides = [1, 1]} : vector<2x96xf32> to vector<2x32xf32>
    %172 = vector.extract_strided_slice %162 {offsets = [0, 32], sizes = [2, 32], strides = [1, 1]} : vector<2x96xf32> to vector<2x32xf32>
    %173 = arith.addf %171, %172 : vector<2x32xf32>
    %174 = arith.negf %173 : vector<2x32xf32>
    %175 = math.exp %174 : vector<2x32xf32>
    %cst_49 = arith.constant 1.000000e+00 : f32
    %176 = vector.broadcast %cst_49 : f32 to vector<2x32xf32>
    %177 = arith.addf %176, %175 : vector<2x32xf32>
    %178 = arith.divf %176, %177 : vector<2x32xf32>
    %179 = vector.extract_strided_slice %158 {offsets = [0, 64], sizes = [2, 32], strides = [1, 1]} : vector<2x96xf32> to vector<2x32xf32>
    %180 = vector.extract_strided_slice %162 {offsets = [0, 64], sizes = [2, 32], strides = [1, 1]} : vector<2x96xf32> to vector<2x32xf32>
    %181 = arith.mulf %170, %180 : vector<2x32xf32>
    %182 = arith.addf %179, %181 : vector<2x32xf32>
    %183 = math.tanh %182 : vector<2x32xf32>
    %cst_50 = arith.constant 1.000000e+00 : f32
    %184 = vector.broadcast %cst_50 : f32 to vector<2x32xf32>
    %185 = arith.subf %184, %178 : vector<2x32xf32>
    %186 = arith.mulf %185, %183 : vector<2x32xf32>
    %187 = arith.mulf %178, %153 : vector<2x32xf32>
    %188 = arith.addf %186, %187 : vector<2x32xf32>
    %c4_i32 = arith.constant 4 : i32
    %189 = arith.index_cast %c4_i32 : i32 to index
    %c0_51 = arith.constant 0 : index
    %c0_52 = arith.constant 0 : index
    %190 = vector.load %arg19[%189, %c0_51, %c0_52] : memref<8x2x96xf32, #tpu.memory_space<vmem>>, vector<1x2x96xf32>
    %191 = vector.shape_cast %190 : vector<1x2x96xf32> to vector<2x96xf32>
    %192 = vector.broadcast %45 : vector<1x96xf32> to vector<2x96xf32>
    %193 = arith.addf %191, %192 : vector<2x96xf32>
    %194 = arith.truncf %188 : vector<2x32xf32> to vector<2x32xbf16>
    %cst_53 = arith.constant dense<0.000000e+00> : vector<2x96xf32>
    %195 = tpu.matmul %194, %43, %cst_53 {dimension_numbers = #tpu.dot_dimension_numbers<[1], [0], [0], [1], [0, 0, 1, 1], [], []>} : vector<2x32xbf16>, vector<32x96xbf16>, vector<2x96xf32> -> vector<2x96xf32>
    %196 = vector.broadcast %47 : vector<1x96xf32> to vector<2x96xf32>
    %197 = arith.addf %195, %196 : vector<2x96xf32>
    %198 = vector.extract_strided_slice %193 {offsets = [0, 0], sizes = [2, 32], strides = [1, 1]} : vector<2x96xf32> to vector<2x32xf32>
    %199 = vector.extract_strided_slice %197 {offsets = [0, 0], sizes = [2, 32], strides = [1, 1]} : vector<2x96xf32> to vector<2x32xf32>
    %200 = arith.addf %198, %199 : vector<2x32xf32>
    %201 = arith.negf %200 : vector<2x32xf32>
    %202 = math.exp %201 : vector<2x32xf32>
    %cst_54 = arith.constant 1.000000e+00 : f32
    %203 = vector.broadcast %cst_54 : f32 to vector<2x32xf32>
    %204 = arith.addf %203, %202 : vector<2x32xf32>
    %205 = arith.divf %203, %204 : vector<2x32xf32>
    %206 = vector.extract_strided_slice %193 {offsets = [0, 32], sizes = [2, 32], strides = [1, 1]} : vector<2x96xf32> to vector<2x32xf32>
    %207 = vector.extract_strided_slice %197 {offsets = [0, 32], sizes = [2, 32], strides = [1, 1]} : vector<2x96xf32> to vector<2x32xf32>
    %208 = arith.addf %206, %207 : vector<2x32xf32>
    %209 = arith.negf %208 : vector<2x32xf32>
    %210 = math.exp %209 : vector<2x32xf32>
    %cst_55 = arith.constant 1.000000e+00 : f32
    %211 = vector.broadcast %cst_55 : f32 to vector<2x32xf32>
    %212 = arith.addf %211, %210 : vector<2x32xf32>
    %213 = arith.divf %211, %212 : vector<2x32xf32>
    %214 = vector.extract_strided_slice %193 {offsets = [0, 64], sizes = [2, 32], strides = [1, 1]} : vector<2x96xf32> to vector<2x32xf32>
    %215 = vector.extract_strided_slice %197 {offsets = [0, 64], sizes = [2, 32], strides = [1, 1]} : vector<2x96xf32> to vector<2x32xf32>
    %216 = arith.mulf %205, %215 : vector<2x32xf32>
    %217 = arith.addf %214, %216 : vector<2x32xf32>
    %218 = math.tanh %217 : vector<2x32xf32>
    %cst_56 = arith.constant 1.000000e+00 : f32
    %219 = vector.broadcast %cst_56 : f32 to vector<2x32xf32>
    %220 = arith.subf %219, %213 : vector<2x32xf32>
    %221 = arith.mulf %220, %218 : vector<2x32xf32>
    %222 = arith.mulf %213, %188 : vector<2x32xf32>
    %223 = arith.addf %221, %222 : vector<2x32xf32>
    %c5_i32 = arith.constant 5 : i32
    %224 = arith.index_cast %c5_i32 : i32 to index
    %c0_57 = arith.constant 0 : index
    %c0_58 = arith.constant 0 : index
    %225 = vector.load %arg19[%224, %c0_57, %c0_58] : memref<8x2x96xf32, #tpu.memory_space<vmem>>, vector<1x2x96xf32>
    %226 = vector.shape_cast %225 : vector<1x2x96xf32> to vector<2x96xf32>
    %227 = vector.broadcast %45 : vector<1x96xf32> to vector<2x96xf32>
    %228 = arith.addf %226, %227 : vector<2x96xf32>
    %229 = arith.truncf %223 : vector<2x32xf32> to vector<2x32xbf16>
    %cst_59 = arith.constant dense<0.000000e+00> : vector<2x96xf32>
    %230 = tpu.matmul %229, %43, %cst_59 {dimension_numbers = #tpu.dot_dimension_numbers<[1], [0], [0], [1], [0, 0, 1, 1], [], []>} : vector<2x32xbf16>, vector<32x96xbf16>, vector<2x96xf32> -> vector<2x96xf32>
    %231 = vector.broadcast %47 : vector<1x96xf32> to vector<2x96xf32>
    %232 = arith.addf %230, %231 : vector<2x96xf32>
    %233 = vector.extract_strided_slice %228 {offsets = [0, 0], sizes = [2, 32], strides = [1, 1]} : vector<2x96xf32> to vector<2x32xf32>
    %234 = vector.extract_strided_slice %232 {offsets = [0, 0], sizes = [2, 32], strides = [1, 1]} : vector<2x96xf32> to vector<2x32xf32>
    %235 = arith.addf %233, %234 : vector<2x32xf32>
    %236 = arith.negf %235 : vector<2x32xf32>
    %237 = math.exp %236 : vector<2x32xf32>
    %cst_60 = arith.constant 1.000000e+00 : f32
    %238 = vector.broadcast %cst_60 : f32 to vector<2x32xf32>
    %239 = arith.addf %238, %237 : vector<2x32xf32>
    %240 = arith.divf %238, %239 : vector<2x32xf32>
    %241 = vector.extract_strided_slice %228 {offsets = [0, 32], sizes = [2, 32], strides = [1, 1]} : vector<2x96xf32> to vector<2x32xf32>
    %242 = vector.extract_strided_slice %232 {offsets = [0, 32], sizes = [2, 32], strides = [1, 1]} : vector<2x96xf32> to vector<2x32xf32>
    %243 = arith.addf %241, %242 : vector<2x32xf32>
    %244 = arith.negf %243 : vector<2x32xf32>
    %245 = math.exp %244 : vector<2x32xf32>
    %cst_61 = arith.constant 1.000000e+00 : f32
    %246 = vector.broadcast %cst_61 : f32 to vector<2x32xf32>
    %247 = arith.addf %246, %245 : vector<2x32xf32>
    %248 = arith.divf %246, %247 : vector<2x32xf32>
    %249 = vector.extract_strided_slice %228 {offsets = [0, 64], sizes = [2, 32], strides = [1, 1]} : vector<2x96xf32> to vector<2x32xf32>
    %250 = vector.extract_strided_slice %232 {offsets = [0, 64], sizes = [2, 32], strides = [1, 1]} : vector<2x96xf32> to vector<2x32xf32>
    %251 = arith.mulf %240, %250 : vector<2x32xf32>
    %252 = arith.addf %249, %251 : vector<2x32xf32>
    %253 = math.tanh %252 : vector<2x32xf32>
    %cst_62 = arith.constant 1.000000e+00 : f32
    %254 = vector.broadcast %cst_62 : f32 to vector<2x32xf32>
    %255 = arith.subf %254, %248 : vector<2x32xf32>
    %256 = arith.mulf %255, %253 : vector<2x32xf32>
    %257 = arith.mulf %248, %223 : vector<2x32xf32>
    %258 = arith.addf %256, %257 : vector<2x32xf32>
    %c6_i32 = arith.constant 6 : i32
    %259 = arith.index_cast %c6_i32 : i32 to index
    %c0_63 = arith.constant 0 : index
    %c0_64 = arith.constant 0 : index
    %260 = vector.load %arg19[%259, %c0_63, %c0_64] : memref<8x2x96xf32, #tpu.memory_space<vmem>>, vector<1x2x96xf32>
    %261 = vector.shape_cast %260 : vector<1x2x96xf32> to vector<2x96xf32>
    %262 = vector.broadcast %45 : vector<1x96xf32> to vector<2x96xf32>
    %263 = arith.addf %261, %262 : vector<2x96xf32>
    %264 = arith.truncf %258 : vector<2x32xf32> to vector<2x32xbf16>
    %cst_65 = arith.constant dense<0.000000e+00> : vector<2x96xf32>
    %265 = tpu.matmul %264, %43, %cst_65 {dimension_numbers = #tpu.dot_dimension_numbers<[1], [0], [0], [1], [0, 0, 1, 1], [], []>} : vector<2x32xbf16>, vector<32x96xbf16>, vector<2x96xf32> -> vector<2x96xf32>
    %266 = vector.broadcast %47 : vector<1x96xf32> to vector<2x96xf32>
    %267 = arith.addf %265, %266 : vector<2x96xf32>
    %268 = vector.extract_strided_slice %263 {offsets = [0, 0], sizes = [2, 32], strides = [1, 1]} : vector<2x96xf32> to vector<2x32xf32>
    %269 = vector.extract_strided_slice %267 {offsets = [0, 0], sizes = [2, 32], strides = [1, 1]} : vector<2x96xf32> to vector<2x32xf32>
    %270 = arith.addf %268, %269 : vector<2x32xf32>
    %271 = arith.negf %270 : vector<2x32xf32>
    %272 = math.exp %271 : vector<2x32xf32>
    %cst_66 = arith.constant 1.000000e+00 : f32
    %273 = vector.broadcast %cst_66 : f32 to vector<2x32xf32>
    %274 = arith.addf %273, %272 : vector<2x32xf32>
    %275 = arith.divf %273, %274 : vector<2x32xf32>
    %276 = vector.extract_strided_slice %263 {offsets = [0, 32], sizes = [2, 32], strides = [1, 1]} : vector<2x96xf32> to vector<2x32xf32>
    %277 = vector.extract_strided_slice %267 {offsets = [0, 32], sizes = [2, 32], strides = [1, 1]} : vector<2x96xf32> to vector<2x32xf32>
    %278 = arith.addf %276, %277 : vector<2x32xf32>
    %279 = arith.negf %278 : vector<2x32xf32>
    %280 = math.exp %279 : vector<2x32xf32>
    %cst_67 = arith.constant 1.000000e+00 : f32
    %281 = vector.broadcast %cst_67 : f32 to vector<2x32xf32>
    %282 = arith.addf %281, %280 : vector<2x32xf32>
    %283 = arith.divf %281, %282 : vector<2x32xf32>
    %284 = vector.extract_strided_slice %263 {offsets = [0, 64], sizes = [2, 32], strides = [1, 1]} : vector<2x96xf32> to vector<2x32xf32>
    %285 = vector.extract_strided_slice %267 {offsets = [0, 64], sizes = [2, 32], strides = [1, 1]} : vector<2x96xf32> to vector<2x32xf32>
    %286 = arith.mulf %275, %285 : vector<2x32xf32>
    %287 = arith.addf %284, %286 : vector<2x32xf32>
    %288 = math.tanh %287 : vector<2x32xf32>
    %cst_68 = arith.constant 1.000000e+00 : f32
    %289 = vector.broadcast %cst_68 : f32 to vector<2x32xf32>
    %290 = arith.subf %289, %283 : vector<2x32xf32>
    %291 = arith.mulf %290, %288 : vector<2x32xf32>
    %292 = arith.mulf %283, %258 : vector<2x32xf32>
    %293 = arith.addf %291, %292 : vector<2x32xf32>
    %c7_i32 = arith.constant 7 : i32
    %294 = arith.index_cast %c7_i32 : i32 to index
    %c0_69 = arith.constant 0 : index
    %c0_70 = arith.constant 0 : index
    %295 = vector.load %arg19[%294, %c0_69, %c0_70] : memref<8x2x96xf32, #tpu.memory_space<vmem>>, vector<1x2x96xf32>
    %296 = vector.shape_cast %295 : vector<1x2x96xf32> to vector<2x96xf32>
    %297 = vector.broadcast %45 : vector<1x96xf32> to vector<2x96xf32>
    %298 = arith.addf %296, %297 : vector<2x96xf32>
    %299 = arith.truncf %293 : vector<2x32xf32> to vector<2x32xbf16>
    %cst_71 = arith.constant dense<0.000000e+00> : vector<2x96xf32>
    %300 = tpu.matmul %299, %43, %cst_71 {dimension_numbers = #tpu.dot_dimension_numbers<[1], [0], [0], [1], [0, 0, 1, 1], [], []>} : vector<2x32xbf16>, vector<32x96xbf16>, vector<2x96xf32> -> vector<2x96xf32>
    %301 = vector.broadcast %47 : vector<1x96xf32> to vector<2x96xf32>
    %302 = arith.addf %300, %301 : vector<2x96xf32>
    %303 = vector.extract_strided_slice %298 {offsets = [0, 0], sizes = [2, 32], strides = [1, 1]} : vector<2x96xf32> to vector<2x32xf32>
    %304 = vector.extract_strided_slice %302 {offsets = [0, 0], sizes = [2, 32], strides = [1, 1]} : vector<2x96xf32> to vector<2x32xf32>
    %305 = arith.addf %303, %304 : vector<2x32xf32>
    %306 = arith.negf %305 : vector<2x32xf32>
    %307 = math.exp %306 : vector<2x32xf32>
    %cst_72 = arith.constant 1.000000e+00 : f32
    %308 = vector.broadcast %cst_72 : f32 to vector<2x32xf32>
    %309 = arith.addf %308, %307 : vector<2x32xf32>
    %310 = arith.divf %308, %309 : vector<2x32xf32>
    %311 = vector.extract_strided_slice %298 {offsets = [0, 32], sizes = [2, 32], strides = [1, 1]} : vector<2x96xf32> to vector<2x32xf32>
    %312 = vector.extract_strided_slice %302 {offsets = [0, 32], sizes = [2, 32], strides = [1, 1]} : vector<2x96xf32> to vector<2x32xf32>
    %313 = arith.addf %311, %312 : vector<2x32xf32>
    %314 = arith.negf %313 : vector<2x32xf32>
    %315 = math.exp %314 : vector<2x32xf32>
    %cst_73 = arith.constant 1.000000e+00 : f32
    %316 = vector.broadcast %cst_73 : f32 to vector<2x32xf32>
    %317 = arith.addf %316, %315 : vector<2x32xf32>
    %318 = arith.divf %316, %317 : vector<2x32xf32>
    %319 = vector.extract_strided_slice %298 {offsets = [0, 64], sizes = [2, 32], strides = [1, 1]} : vector<2x96xf32> to vector<2x32xf32>
    %320 = vector.extract_strided_slice %302 {offsets = [0, 64], sizes = [2, 32], strides = [1, 1]} : vector<2x96xf32> to vector<2x32xf32>
    %321 = arith.mulf %310, %320 : vector<2x32xf32>
    %322 = arith.addf %319, %321 : vector<2x32xf32>
    %323 = math.tanh %322 : vector<2x32xf32>
    %cst_74 = arith.constant 1.000000e+00 : f32
    %324 = vector.broadcast %cst_74 : f32 to vector<2x32xf32>
    %325 = arith.subf %324, %318 : vector<2x32xf32>
    %326 = arith.mulf %325, %323 : vector<2x32xf32>
    %327 = arith.mulf %318, %293 : vector<2x32xf32>
    %328 = arith.addf %326, %327 : vector<2x32xf32>
    %c8_i32 = arith.constant 8 : i32
    %c0_75 = arith.constant 0 : index
    %c0_76 = arith.constant 0 : index
    %c0_77 = arith.constant 0 : index
    %329 = vector.load %arg18[%c0_75, %c0_76, %c0_77] : memref<1x2x32xf32, #tpu.memory_space<vmem>>, vector<1x2x32xf32>
    %330 = vector.shape_cast %329 : vector<1x2x32xf32> to vector<2x32xf32>
    %331 = vector.shape_cast %328 : vector<2x32xf32> to vector<1x2x32xf32>
    tpu.vector_store %arg18[%c0_75, %c0_76, %c0_77], %331 {strides = array<i32>} : memref<1x2x32xf32, #tpu.memory_space<vmem>>, vector<1x2x32xf32>,
    %c0_78 = arith.constant 0 : index
    %c0_79 = arith.constant 0 : index
    %332 = vector.load %arg20[%c0_78, %c0_79] : memref<2x8xf32, #tpu.memory_space<vmem>>, vector<2x8xf32>
    %333 = arith.truncf %328 : vector<2x32xf32> to vector<2x32xbf16>
    %c0_80 = arith.constant 0 : index
    %c0_81 = arith.constant 0 : index
    %c0_82 = arith.constant 0 : index
    %334 = vector.load %arg11[%c0_80, %c0_81, %c0_82] : memref<1x32x8xbf16, #tpu.memory_space<vmem>>, vector<1x32x8xbf16>
    %335 = vector.shape_cast %334 : vector<1x32x8xbf16> to vector<32x8xbf16>
    %cst_83 = arith.constant dense<0.000000e+00> : vector<2x8xf32>
    %336 = tpu.matmul %333, %335, %cst_83 {dimension_numbers = #tpu.dot_dimension_numbers<[1], [0], [0], [1], [0, 0, 1, 1], [], []>} : vector<2x32xbf16>, vector<32x8xbf16>, vector<2x8xf32> -> vector<2x8xf32>
    %337 = arith.addf %332, %336 : vector<2x8xf32>
    %c0_84 = arith.constant 0 : index
    %c0_85 = arith.constant 0 : index
    %338 = vector.load %arg20[%c0_84, %c0_85] : memref<2x8xf32, #tpu.memory_space<vmem>>, vector<2x8xf32>
    tpu.vector_store %arg20[%c0_84, %c0_85], %337 {strides = array<i32>} : memref<2x8xf32, #tpu.memory_space<vmem>>, vector<2x8xf32>,
    %c1_i32_86 = arith.constant 1 : i32
    %339 = arith.cmpi eq, %arg0, %c1_i32_86 : i32
    %340 = arith.extui %339 : i1 to i32
    %c0_i32_87 = arith.constant 0 : i32
    %341 = arith.cmpi ne, %340, %c0_i32_87 : i32
    scf.if %341 {
      %c0_88 = arith.constant 0 : index
      %c0_89 = arith.constant 0 : index
      %c0_90 = arith.constant 0 : index
      %342 = vector.load %arg7[%c0_88, %c0_89, %c0_90] : memref<2x16x16xbf16, #tpu.memory_space<vmem>>, vector<2x16x16xbf16>
      %c0_91 = arith.constant 0 : index
      %c0_92 = arith.constant 0 : index
      %c0_93 = arith.constant 0 : index
      %343 = vector.load %arg8[%c0_91, %c0_92, %c0_93] : memref<2x16x16xbf16, #tpu.memory_space<vmem>>, vector<2x16x16xbf16>
      %c0_94 = arith.constant 0 : index
      %c0_95 = arith.constant 0 : index
      %344 = vector.load %arg9[%c0_94, %c0_95] : memref<16x32xbf16, #tpu.memory_space<vmem>>, vector<16x32xbf16>
      "tpu.trace_start"() <{level = 10 : i32, message = "bnd,de->bne"}> : () -> ()
      %cst_96 = arith.constant dense<0.000000e+00> : vector<2x16x32xf32>
      %345 = tpu.matmul %343, %344, %cst_96 {dimension_numbers = #tpu.dot_dimension_numbers<[2], [0], [0, 1], [1], [0, 0, 0, 1, 1, 1], [], []>} : vector<2x16x16xbf16>, vector<16x32xbf16>, vector<2x16x32xf32> -> vector<2x16x32xf32>
      "tpu.trace_stop"() : () -> ()
      %346 = arith.truncf %345 : vector<2x16x32xf32> to vector<2x16x32xbf16>
      "tpu.trace_start"() <{level = 10 : i32, message = "bmn,bne->bme"}> : () -> ()
      %cst_97 = arith.constant dense<0.000000e+00> : vector<2x16x32xf32>
      %347 = tpu.matmul %342, %346, %cst_97 {dimension_numbers = #tpu.dot_dimension_numbers<[2], [1], [1], [2], [0, 0, 0, 1, 1, 2], [0], [0]>} : vector<2x16x16xbf16>, vector<2x16x32xbf16>, vector<2x16x32xf32> -> vector<2x16x32xf32>
      "tpu.trace_stop"() : () -> ()
      %cst_98 = arith.constant 0.000000e+00 : f32
      %348 = vector.broadcast %cst_98 : f32 to vector<2x16x32xf32>
      %349 = arith.maximumf %347, %348 : vector<2x16x32xf32>
      %350 = arith.truncf %349 : vector<2x16x32xf32> to vector<2x16x32xbf16>
      %c0_99 = arith.constant 0 : index
      %c0_100 = arith.constant 0 : index
      %351 = vector.load %arg10[%c0_99, %c0_100] : memref<32x32xbf16, #tpu.memory_space<vmem>>, vector<32x32xbf16>
      "tpu.trace_start"() <{level = 10 : i32, message = "bnd,de->bne"}> : () -> ()
      %cst_101 = arith.constant dense<0.000000e+00> : vector<2x16x32xf32>
      %352 = tpu.matmul %350, %351, %cst_101 {dimension_numbers = #tpu.dot_dimension_numbers<[2], [0], [0, 1], [1], [0, 0, 0, 1, 1, 1], [], []>} : vector<2x16x32xbf16>, vector<32x32xbf16>, vector<2x16x32xf32> -> vector<2x16x32xf32>
      "tpu.trace_stop"() : () -> ()
      %353 = arith.truncf %352 : vector<2x16x32xf32> to vector<2x16x32xbf16>
      "tpu.trace_start"() <{level = 10 : i32, message = "bmn,bne->bme"}> : () -> ()
      %cst_102 = arith.constant dense<0.000000e+00> : vector<2x16x32xf32>
      %354 = tpu.matmul %342, %353, %cst_102 {dimension_numbers = #tpu.dot_dimension_numbers<[2], [1], [1], [2], [0, 0, 0, 1, 1, 2], [0], [0]>} : vector<2x16x16xbf16>, vector<2x16x32xbf16>, vector<2x16x32xf32> -> vector<2x16x32xf32>
      "tpu.trace_stop"() : () -> ()
      %cst_103 = arith.constant 0.000000e+00 : f32
      %355 = vector.broadcast %cst_103 : f32 to vector<2x16x32xf32>
      %356 = arith.maximumf %354, %355 : vector<2x16x32xf32>
      %cst_104 = arith.constant dense<0.000000e+00> : vector<2x32xf32>
      %357 = vector.multi_reduction <add>, %356, %cst_104 [1] : vector<2x16x32xf32> to vector<2x32xf32>
      %cst_105 = arith.constant 1.600000e+01 : f32
      %358 = vector.broadcast %cst_105 : f32 to vector<2x32xf32>
      %359 = arith.divf %357, %358 : vector<2x32xf32>
      %c0_106 = arith.constant 0 : index
      %c0_107 = arith.constant 0 : index
      %360 = vector.load %arg20[%c0_106, %c0_107] : memref<2x8xf32, #tpu.memory_space<vmem>>, vector<2x8xf32>
      %361 = arith.truncf %359 : vector<2x32xf32> to vector<2x32xbf16>
      %c0_108 = arith.constant 0 : index
      %c0_109 = arith.constant 0 : index
      %362 = vector.load %arg12[%c0_108, %c0_109] : memref<32x8xbf16, #tpu.memory_space<vmem>>, vector<32x8xbf16>
      %cst_110 = arith.constant dense<0.000000e+00> : vector<2x8xf32>
      %363 = tpu.matmul %361, %362, %cst_110 {dimension_numbers = #tpu.dot_dimension_numbers<[1], [0], [0], [1], [0, 0, 1, 1], [], []>} : vector<2x32xbf16>, vector<32x8xbf16>, vector<2x8xf32> -> vector<2x8xf32>
      %364 = arith.addf %360, %363 : vector<2x8xf32>
      %c0_111 = arith.constant 0 : index
      %c0_112 = arith.constant 0 : index
      %365 = vector.load %arg13[%c0_111, %c0_112] : memref<1x8xf32, #tpu.memory_space<vmem>>, vector<1x8xf32>
      %366 = vector.broadcast %365 : vector<1x8xf32> to vector<2x8xf32>
      %367 = arith.addf %364, %366 : vector<2x8xf32>
      %c0_113 = arith.constant 0 : index
      %c0_114 = arith.constant 0 : index
      %368 = vector.load %arg16[%c0_113, %c0_114] : memref<2x8xf32, #tpu.memory_space<vmem>>, vector<2x8xf32>
      tpu.vector_store %arg16[%c0_113, %c0_114], %367 {strides = array<i32>} : memref<2x8xf32, #tpu.memory_space<vmem>>, vector<2x8xf32>,
      %369 = arith.negf %367 : vector<2x8xf32>
      %370 = math.exp %369 : vector<2x8xf32>
      %cst_115 = arith.constant 1.000000e+00 : f32
      %371 = vector.broadcast %cst_115 : f32 to vector<2x8xf32>
      %372 = arith.addf %371, %370 : vector<2x8xf32>
      %373 = arith.divf %371, %372 : vector<2x8xf32>
      %c0_116 = arith.constant 0 : index
      %c0_117 = arith.constant 0 : index
      %374 = vector.load %arg17[%c0_116, %c0_117] : memref<2x8xf32, #tpu.memory_space<vmem>>, vector<2x8xf32>
      tpu.vector_store %arg17[%c0_116, %c0_117], %373 {strides = array<i32>} : memref<2x8xf32, #tpu.memory_space<vmem>>, vector<2x8xf32>,
      %c0_118 = arith.constant 0 : index
      %c0_119 = arith.constant 0 : index
      %375 = vector.load %arg14[%c0_118, %c0_119] : memref<2x8xf32, #tpu.memory_space<vmem>>, vector<2x8xf32>
      %cst_120 = arith.constant 0.000000e+00 : f32
      %376 = vector.broadcast %cst_120 : f32 to vector<2x8xf32>
      %377 = arith.maximumf %367, %376 : vector<2x8xf32>
      %378 = arith.mulf %367, %375 : vector<2x8xf32>
      %379 = arith.subf %377, %378 : vector<2x8xf32>
      %380 = math.absf %367 : vector<2x8xf32>
      %cst_121 = arith.constant 0.000000e+00 : f32
      %381 = vector.broadcast %cst_121 : f32 to vector<2x8xf32>
      %382 = arith.subf %381, %380 : vector<2x8xf32>
      %383 = math.exp %382 : vector<2x8xf32>
      %384 = math.log1p %383 : vector<2x8xf32>
      %385 = arith.addf %379, %384 : vector<2x8xf32>
      %386 = vector.shape_cast %385 : vector<2x8xf32> to vector<1x2x8xf32>
      %cst_122 = arith.constant dense<0.000000e+00> : vector<1xf32>
      %387 = vector.multi_reduction <add>, %386, %cst_122 [1, 2] : vector<1x2x8xf32> to vector<1xf32>
      %388 = vector.shape_cast %387 : vector<1xf32> to vector<1x1x1xf32>
      %389 = vector.extract %388[0, 0, 0] : f32 from vector<1x1x1xf32>
      %cst_123 = arith.constant 1.600000e+01 : f32
      %390 = arith.divf %389, %cst_123 : f32
      %391 = vector.broadcast %390 : f32 to vector<1x1xf32>
      %c0_124 = arith.constant 0 : index
      %c0_125 = arith.constant 0 : index
      %392 = vector.load %arg15[%c0_124, %c0_125] : memref<1x1xf32, #tpu.memory_space<vmem>>, vector<1x1xf32>
      tpu.vector_store %arg15[%c0_124, %c0_125], %391 {strides = array<i32>} : memref<1x1xf32, #tpu.memory_space<vmem>>, vector<1x1xf32>,
    } else {
    }
    return
  }
  func.func @transform_0(%arg0: i32) -> (i32, i32, i32, i32) {
    %c0_i32 = arith.constant 0 : i32
    %c0_i32_0 = arith.constant 0 : i32
    %c0_i32_1 = arith.constant 0 : i32
    %c0_i32_2 = arith.constant 0 : i32
    return %arg0, %c0_i32, %c0_i32_0, %c0_i32_1 : i32, i32, i32, i32
  }
  func.func @transform_1(%arg0: i32) -> (i32, i32, i32) {
    %c0_i32 = arith.constant 0 : i32
    %c0_i32_0 = arith.constant 0 : i32
    %c0_i32_1 = arith.constant 0 : i32
    return %arg0, %c0_i32, %c0_i32_0 : i32, i32, i32
  }
  func.func @transform_2(%arg0: i32) -> (i32, i32, i32) {
    %c0_i32 = arith.constant 0 : i32
    %c0_i32_0 = arith.constant 0 : i32
    %c0_i32_1 = arith.constant 0 : i32
    return %arg0, %c0_i32, %c0_i32_0 : i32, i32, i32
  }
  func.func @transform_3(%arg0: i32) -> (i32, i32, i32) {
    %c0_i32 = arith.constant 0 : i32
    %c0_i32_0 = arith.constant 0 : i32
    %c0_i32_1 = arith.constant 0 : i32
    return %arg0, %c0_i32, %c0_i32_0 : i32, i32, i32
  }
  func.func @transform_4(%arg0: i32) -> (i32, i32, i32) {
    %c0_i32 = arith.constant 0 : i32
    %c0_i32_0 = arith.constant 0 : i32
    %c0_i32_1 = arith.constant 0 : i32
    return %arg0, %c0_i32, %c0_i32_0 : i32, i32, i32
  }
  func.func @transform_5(%arg0: i32) -> (i32, i32, i32) {
    %c0_i32 = arith.constant 0 : i32
    %c0_i32_0 = arith.constant 0 : i32
    %c0_i32_1 = arith.constant 0 : i32
    return %arg0, %c0_i32, %c0_i32_0 : i32, i32, i32
  }
  func.func @transform_6(%arg0: i32) -> (i32, i32, i32) {
    %c0_i32 = arith.constant 0 : i32
    %c0_i32_0 = arith.constant 0 : i32
    %c0_i32_1 = arith.constant 0 : i32
    %c0_i32_2 = arith.constant 0 : i32
    return %c0_i32, %c0_i32_0, %c0_i32_1 : i32, i32, i32
  }
  func.func @transform_7(%arg0: i32) -> (i32, i32, i32) {
    %c0_i32 = arith.constant 0 : i32
    %c0_i32_0 = arith.constant 0 : i32
    %c0_i32_1 = arith.constant 0 : i32
    %c0_i32_2 = arith.constant 0 : i32
    return %c0_i32, %c0_i32_0, %c0_i32_1 : i32, i32, i32
  }
  func.func @transform_8(%arg0: i32) -> (i32, i32) {
    %c0_i32 = arith.constant 0 : i32
    %c0_i32_0 = arith.constant 0 : i32
    %c0_i32_1 = arith.constant 0 : i32
    return %c0_i32, %c0_i32_0 : i32, i32
  }
  func.func @transform_9(%arg0: i32) -> (i32, i32) {
    %c0_i32 = arith.constant 0 : i32
    %c0_i32_0 = arith.constant 0 : i32
    %c0_i32_1 = arith.constant 0 : i32
    return %c0_i32, %c0_i32_0 : i32, i32
  }
  func.func @transform_10(%arg0: i32) -> (i32, i32, i32) {
    %c0_i32 = arith.constant 0 : i32
    %c0_i32_0 = arith.constant 0 : i32
    %c0_i32_1 = arith.constant 0 : i32
    return %arg0, %c0_i32, %c0_i32_0 : i32, i32, i32
  }
  func.func @transform_11(%arg0: i32) -> (i32, i32) {
    %c0_i32 = arith.constant 0 : i32
    %c0_i32_0 = arith.constant 0 : i32
    %c0_i32_1 = arith.constant 0 : i32
    return %c0_i32, %c0_i32_0 : i32, i32
  }
  func.func @transform_12(%arg0: i32) -> (i32, i32) {
    %c0_i32 = arith.constant 0 : i32
    %c0_i32_0 = arith.constant 0 : i32
    %c0_i32_1 = arith.constant 0 : i32
    return %c0_i32, %c0_i32_0 : i32, i32
  }
  func.func @transform_13(%arg0: i32) -> (i32, i32) {
    %c0_i32 = arith.constant 0 : i32
    %c0_i32_0 = arith.constant 0 : i32
    %c0_i32_1 = arith.constant 0 : i32
    return %c0_i32, %c0_i32_0 : i32, i32
  }
  func.func @transform_14(%arg0: i32) -> (i32, i32) {
    %c0_i32 = arith.constant 0 : i32
    %c0_i32_0 = arith.constant 0 : i32
    %c0_i32_1 = arith.constant 0 : i32
    return %c0_i32, %c0_i32_0 : i32, i32
  }
  func.func @transform_15(%arg0: i32) -> (i32, i32) {
    %c0_i32 = arith.constant 0 : i32
    %c0_i32_0 = arith.constant 0 : i32
    %c0_i32_1 = arith.constant 0 : i32
    return %c0_i32, %c0_i32_0 : i32, i32
  }
  func.func @transform_16(%arg0: i32) -> (i32, i32) {
    %c0_i32 = arith.constant 0 : i32
    %c0_i32_0 = arith.constant 0 : i32
    %c0_i32_1 = arith.constant 0 : i32
    return %c0_i32, %c0_i32_0 : i32, i32
  }
  func.func @transform_17(%arg0: i32) -> (i32, i32, i32) {
    %c0_i32 = arith.constant 0 : i32
    %c0_i32_0 = arith.constant 0 : i32
    %c0_i32_1 = arith.constant 0 : i32
    return %arg0, %c0_i32, %c0_i32_0 : i32, i32, i32
  }
}

</mosaic_0001>

<llo_original>
// kernel: dearllm_forward.1
$region0: #{dearllm_forward.1}
  #allocation0 [shape = 'u32[]', space=smem, size = 0x4, offset = 0x4, fixed_abs, tag = 'smem constant byte address 0x4 - core index']
  #allocation1 [shape = 'u32[144,128]{1,0:T(1,128)}', space=vmem, size = 0x12000, scoped, tag = 'internal scratch']
  #allocation2 [shape = 'f32[8,2,96]{2,1,0:T(2,128)}', space=vmem, size = 0x2000, scoped, tag = 'scratch operand']
  #allocation3 [shape = 'f32[2,8]{1,0:T(2,128)}', space=vmem, size = 0x400, scoped, tag = 'scratch operand']
  %s0 = inlined_call_operand.vmem [shape: s32[2,8,2,4], index: 0, kind: input, shape index: {}]
  %s1 = inlined_call_operand.vmem [shape: bf16[2,50,16], index: 1, kind: input, shape index: {}]
  %s2 = inlined_call_operand.vmem [shape: bf16[2,16,96], index: 2, kind: input, shape index: {}]
  %s3 = inlined_call_operand.vmem [shape: bf16[2,32,96], index: 3, kind: input, shape index: {}]
  %s4 = inlined_call_operand.vmem [shape: f32[2,1,96], index: 4, kind: input, shape index: {}]
  %s5 = inlined_call_operand.vmem [shape: f32[2,1,96], index: 5, kind: input, shape index: {}]
  %s6 = inlined_call_operand.vmem [shape: bf16[2,16,16], index: 6, kind: input, shape index: {}]
  %s7 = inlined_call_operand.vmem [shape: bf16[2,16,16], index: 7, kind: input, shape index: {}]
  %s8 = inlined_call_operand.vmem [shape: bf16[16,32], index: 8, kind: input, shape index: {}]
  %s9 = inlined_call_operand.vmem [shape: bf16[32,32], index: 9, kind: input, shape index: {}]
  %s10 = inlined_call_operand.vmem [shape: bf16[2,32,8], index: 10, kind: input, shape index: {}]
  %s11 = inlined_call_operand.vmem [shape: bf16[32,8], index: 11, kind: input, shape index: {}]
  %s12 = inlined_call_operand.vmem [shape: f32[1,8], index: 12, kind: input, shape index: {}]
  %s13 = inlined_call_operand.vmem [shape: f32[2,8], index: 13, kind: input, shape index: {}]
  %s14 = inlined_call_operand.hbm [shape: f32[1,1], index: 14, kind: output, shape index: {0}]
  %s15 = inlined_call_operand.hbm [shape: f32[2,8], index: 15, kind: output, shape index: {1}]
  %s16 = inlined_call_operand.hbm [shape: f32[2,8], index: 16, kind: output, shape index: {2}]
  %s17 = inlined_call_operand.vmem [shape: f32[2,2,32], index: 17, kind: output, shape index: {3}]
  %18 = xla_tuple %s14, %s15, %s16, %s17
  %s19 = sld [smem:[#allocation0]]
  $region121: #{dearllm_forward.1} parent=0
    _
  %s21 = ssub.s32 1, %s19
  %s22 = scalar_select 0, %s21, %s19
  $region1: #{dearllm_forward.1} parent=0
    #allocation4 [shape = 'u8[512]{0}', space=vmem, size = 0x400, scoped, tag = 'output window, operand 0, single buffered']
    #allocation5 [shape = 's32[2]{0}', space=sflag, size = 0x8, scoped, tag = 'scoped memory for dearllm_forward.1']
    #allocation6 [shape = 'u8[1024]{0}', space=vmem, size = 0x400, scoped, tag = 'output window, operand 1, single buffered']
    #allocation7 [shape = 's32[1]{0}', space=sflag, size = 0x4, scoped, tag = 'scoped memory for dearllm_forward.1']
    #allocation8 [shape = 'u8[1024]{0}', space=vmem, size = 0x400, scoped, tag = 'output window, operand 2, single buffered']
    %23 = vsyncpa [#allocation5], 0
    %24 = vsyncpa [#allocation7], 0
    loop: start=0, step=1, limit=4
    $region2: #{dearllm_forward.1} parent=1 // loop_pre_header
      _
    $region3: #{dearllm_forward.1} parent=1 // loop_header
      %s26 = sphi 0, %s30
      %p27 = scmp.ge.s32.totalorder %s26, 4
      %s36 = sphi 0, %s38
      %s39 = sphi 0, %s36
      %s40 = sphi 0, %s39
      %s56 = sphi 0, %s40
      %s62 = sphi 0, %s64
      %s65 = sphi 0, %s62
      %s66 = sphi 0, %s65
      %s82 = sphi 0, %s66
      %s88 = sphi 0, %s90
      %s91 = sphi 0, %s88
      %s92 = sphi 0, %s91
      %s108 = sphi 0, %s92
      %s114 = sphi 0, %s116
      %s117 = sphi 0, %s114
      %s118 = sphi 0, %s117
      %s134 = sphi 0, %s118
      %s140 = sphi 0, %s142
      %s143 = sphi 0, %s140
      %s144 = sphi 0, %s143
      %s160 = sphi 0, %s144
      %s166 = sphi 0, %s168
      %s169 = sphi 0, %s166
      %s170 = sphi 0, %s169
      %s186 = sphi 0, %s170
      %s190 = sphi 0, %s190
      %s192 = sphi 0, %s190
      %s193 = sphi 0, %s192
      %s207 = sphi 0, %s193
      %s211 = sphi 0, %s211
      %s213 = sphi 0, %s211
      %s214 = sphi 0, %s213
      %s228 = sphi 0, %s214
      %s232 = sphi 0, %s232
      %s234 = sphi 0, %s232
      %s235 = sphi 0, %s234
      %s249 = sphi 0, %s235
      %s253 = sphi 0, %s253
      %s255 = sphi 0, %s253
      %s256 = sphi 0, %s255
      %s270 = sphi 0, %s256
      %s276 = sphi 0, %s278
      %s279 = sphi 0, %s276
      %s280 = sphi 0, %s279
      %s296 = sphi 0, %s280
      %s300 = sphi 0, %s300
      %s302 = sphi 0, %s300
      %s303 = sphi 0, %s302
      %s317 = sphi 0, %s303
      %s321 = sphi 0, %s321
      %s323 = sphi 0, %s321
      %s324 = sphi 0, %s323
      %s338 = sphi 0, %s324
      %s342 = sphi 0, %s342
      %s344 = sphi 0, %s342
      %s345 = sphi 0, %s344
      %s359 = sphi 0, %s345
      %s363 = sphi 0, %s363
      %s365 = sphi 0, %s363
      %s366 = sphi 0, %s365
      %s380 = sphi 0, %s366
      %s384 = sphi 0, %s384
      %s386 = sphi 0, %s384
      %s387 = sphi 0, %s386
      %s401 = sphi 0, %s387
      %s405 = sphi 0, %s405
      %s407 = sphi 0, %s405
      %s408 = sphi 0, %s407
      %s422 = sphi 0, %s408
      %s428 = sphi 0, %s430
      %s431 = sphi 0, %s428
      %s432 = sphi 0, %s431
      %s448 = sphi 0, %s432
    $region4: #{dearllm_forward.1} parent=1 // loop_header_branch
      %29 = sbr.rel (%p27) target = $region8
    $region5: #{dearllm_forward.1} parent=1 // loop_body
      %s31 = ssub.s32 %s26, 1
      %s32 = ssub.s32 %s26, 2
      %s33 = sadd.s32 %s26, 1
      %s34 = ssub.s32 %s26, %s33
      %p35 = scmp.eq.s32.totalorder %s34, 0
      %s37 = sadd.s32 %s36, 1
      %s38 = scalar_select %p35, %s36, %s37
      %p41 = pneg %p35
      %p42 = scmp.eq.s32.totalorder %s26, 1
      %p43 = por %p41, %p42
      %p44 = scmp.ne.s32.totalorder %s36, %s39
      %p45 = scmp.eq.s32.totalorder %s26, 0
      %p46 = por %p44, %p45
      %p47 = scmp.ne.s32.totalorder %s36, %s39
      %p48 = scmp.eq.s32.totalorder %s31, 1
      %p49 = por %p47, %p48
      %p50 = scmp.ne.s32.totalorder %s39, %s40
      %p51 = scmp.eq.s32.totalorder %s31, 0
      %p52 = por %p50, %p51
      %p53 = scmp.ne.s32.totalorder %s39, %s40
      %p54 = scmp.eq.s32.totalorder %s32, 1
      %p55 = por %p53, %p54
      %p57 = scmp.ne.s32.totalorder %s40, %s56
      %p58 = scmp.eq.s32.totalorder %s32, 0
      %p59 = por %p57, %p58
      %s60 = ssub.s32 %s26, %s33
      %p61 = scmp.eq.s32.totalorder %s60, 0
      %s63 = sadd.s32 %s62, 1
      %s64 = scalar_select %p61, %s62, %s63
      %p67 = pneg %p61
      %p68 = scmp.eq.s32.totalorder %s26, 1
      %p69 = por %p67, %p68
      %p70 = scmp.ne.s32.totalorder %s62, %s65
      %p71 = scmp.eq.s32.totalorder %s26, 0
      %p72 = por %p70, %p71
      %p73 = scmp.ne.s32.totalorder %s62, %s65
      %p74 = scmp.eq.s32.totalorder %s31, 1
      %p75 = por %p73, %p74
      %p76 = scmp.ne.s32.totalorder %s65, %s66
      %p77 = scmp.eq.s32.totalorder %s31, 0
      %p78 = por %p76, %p77
      %p79 = scmp.ne.s32.totalorder %s65, %s66
      %p80 = scmp.eq.s32.totalorder %s32, 1
      %p81 = por %p79, %p80
      %p83 = scmp.ne.s32.totalorder %s66, %s82
      %p84 = scmp.eq.s32.totalorder %s32, 0
      %p85 = por %p83, %p84
      %s86 = ssub.s32 %s26, %s33
      %p87 = scmp.eq.s32.totalorder %s86, 0
      %s89 = sadd.s32 %s88, 1
      %s90 = scalar_select %p87, %s88, %s89
      %p93 = pneg %p87
      %p94 = scmp.eq.s32.totalorder %s26, 1
      %p95 = por %p93, %p94
      %p96 = scmp.ne.s32.totalorder %s88, %s91
      %p97 = scmp.eq.s32.totalorder %s26, 0
      %p98 = por %p96, %p97
      %p99 = scmp.ne.s32.totalorder %s88, %s91
      %p100 = scmp.eq.s32.totalorder %s31, 1
      %p101 = por %p99, %p100
      %p102 = scmp.ne.s32.totalorder %s91, %s92
      %p103 = scmp.eq.s32.totalorder %s31, 0
      %p104 = por %p102, %p103
      %p105 = scmp.ne.s32.totalorder %s91, %s92
      %p106 = scmp.eq.s32.totalorder %s32, 1
      %p107 = por %p105, %p106
      %p109 = scmp.ne.s32.totalorder %s92, %s108
      %p110 = scmp.eq.s32.totalorder %s32, 0
      %p111 = por %p109, %p110
      %s112 = ssub.s32 %s26, %s33
      %p113 = scmp.eq.s32.totalorder %s112, 0
      %s115 = sadd.s32 %s114, 1
      %s116 = scalar_select %p113, %s114, %s115
      %p119 = pneg %p113
      %p120 = scmp.eq.s32.totalorder %s26, 1
      %p121 = por %p119, %p120
      %p122 = scmp.ne.s32.totalorder %s114, %s117
      %p123 = scmp.eq.s32.totalorder %s26, 0
      %p124 = por %p122, %p123
      %p125 = scmp.ne.s32.totalorder %s114, %s117
      %p126 = scmp.eq.s32.totalorder %s31, 1
      %p127 = por %p125, %p126
      %p128 = scmp.ne.s32.totalorder %s117, %s118
      %p129 = scmp.eq.s32.totalorder %s31, 0
      %p130 = por %p128, %p129
      %p131 = scmp.ne.s32.totalorder %s117, %s118
      %p132 = scmp.eq.s32.totalorder %s32, 1
      %p133 = por %p131, %p132
      %p135 = scmp.ne.s32.totalorder %s118, %s134
      %p136 = scmp.eq.s32.totalorder %s32, 0
      %p137 = por %p135, %p136
      %s138 = ssub.s32 %s26, %s33
      %p139 = scmp.eq.s32.totalorder %s138, 0
      %s141 = sadd.s32 %s140, 1
      %s142 = scalar_select %p139, %s140, %s141
      %p145 = pneg %p139
      %p146 = scmp.eq.s32.totalorder %s26, 1
      %p147 = por %p145, %p146
      %p148 = scmp.ne.s32.totalorder %s140, %s143
      %p149 = scmp.eq.s32.totalorder %s26, 0
      %p150 = por %p148, %p149
      %p151 = scmp.ne.s32.totalorder %s140, %s143
      %p152 = scmp.eq.s32.totalorder %s31, 1
      %p153 = por %p151, %p152
      %p154 = scmp.ne.s32.totalorder %s143, %s144
      %p155 = scmp.eq.s32.totalorder %s31, 0
      %p156 = por %p154, %p155
      %p157 = scmp.ne.s32.totalorder %s143, %s144
      %p158 = scmp.eq.s32.totalorder %s32, 1
      %p159 = por %p157, %p158
      %p161 = scmp.ne.s32.totalorder %s144, %s160
      %p162 = scmp.eq.s32.totalorder %s32, 0
      %p163 = por %p161, %p162
      %s164 = ssub.s32 %s26, %s33
      %p165 = scmp.eq.s32.totalorder %s164, 0
      %s167 = sadd.s32 %s166, 1
      %s168 = scalar_select %p165, %s166, %s167
      %p171 = pneg %p165
      %p172 = scmp.eq.s32.totalorder %s26, 1
      %p173 = por %p171, %p172
      %p174 = scmp.ne.s32.totalorder %s166, %s169
      %p175 = scmp.eq.s32.totalorder %s26, 0
      %p176 = por %p174, %p175
      %p177 = scmp.ne.s32.totalorder %s166, %s169
      %p178 = scmp.eq.s32.totalorder %s31, 1
      %p179 = por %p177, %p178
      %p180 = scmp.ne.s32.totalorder %s169, %s170
      %p181 = scmp.eq.s32.totalorder %s31, 0
      %p182 = por %p180, %p181
      %p183 = scmp.ne.s32.totalorder %s169, %s170
      %p184 = scmp.eq.s32.totalorder %s32, 1
      %p185 = por %p183, %p184
      %p187 = scmp.ne.s32.totalorder %s170, %s186
      %p188 = scmp.eq.s32.totalorder %s32, 0
      %p189 = por %p187, %p188
      %s191 = sadd.s32 %s190, 1
      %p194 = scmp.eq.s32.totalorder %s26, 1
      %p195 = scmp.ne.s32.totalorder %s190, %s192
      %p196 = scmp.eq.s32.totalorder %s26, 0
      %p197 = por %p195, %p196
      %p198 = scmp.ne.s32.totalorder %s190, %s192
      %p199 = scmp.eq.s32.totalorder %s31, 1
      %p200 = por %p198, %p199
      %p201 = scmp.ne.s32.totalorder %s192, %s193
      %p202 = scmp.eq.s32.totalorder %s31, 0
      %p203 = por %p201, %p202
      %p204 = scmp.ne.s32.totalorder %s192, %s193
      %p205 = scmp.eq.s32.totalorder %s32, 1
      %p206 = por %p204, %p205
      %p208 = scmp.ne.s32.totalorder %s193, %s207
      %p209 = scmp.eq.s32.totalorder %s32, 0
      %p210 = por %p208, %p209
      %s212 = sadd.s32 %s211, 1
      %p215 = scmp.eq.s32.totalorder %s26, 1
      %p216 = scmp.ne.s32.totalorder %s211, %s213
      %p217 = scmp.eq.s32.totalorder %s26, 0
      %p218 = por %p216, %p217
      %p219 = scmp.ne.s32.totalorder %s211, %s213
      %p220 = scmp.eq.s32.totalorder %s31, 1
      %p221 = por %p219, %p220
      %p222 = scmp.ne.s32.totalorder %s213, %s214
      %p223 = scmp.eq.s32.totalorder %s31, 0
      %p224 = por %p222, %p223
      %p225 = scmp.ne.s32.totalorder %s213, %s214
      %p226 = scmp.eq.s32.totalorder %s32, 1
      %p227 = por %p225, %p226
      %p229 = scmp.ne.s32.totalorder %s214, %s228
      %p230 = scmp.eq.s32.totalorder %s32, 0
      %p231 = por %p229, %p230
      %s233 = sadd.s32 %s232, 1
      %p236 = scmp.eq.s32.totalorder %s26, 1
      %p237 = scmp.ne.s32.totalorder %s232, %s234
      %p238 = scmp.eq.s32.totalorder %s26, 0
      %p239 = por %p237, %p238
      %p240 = scmp.ne.s32.totalorder %s232, %s234
      %p241 = scmp.eq.s32.totalorder %s31, 1
      %p242 = por %p240, %p241
      %p243 = scmp.ne.s32.totalorder %s234, %s235
      %p244 = scmp.eq.s32.totalorder %s31, 0
      %p245 = por %p243, %p244
      %p246 = scmp.ne.s32.totalorder %s234, %s235
      %p247 = scmp.eq.s32.totalorder %s32, 1
      %p248 = por %p246, %p247
      %p250 = scmp.ne.s32.totalorder %s235, %s249
      %p251 = scmp.eq.s32.totalorder %s32, 0
      %p252 = por %p250, %p251
      %s254 = sadd.s32 %s253, 1
      %p257 = scmp.eq.s32.totalorder %s26, 1
      %p258 = scmp.ne.s32.totalorder %s253, %s255
      %p259 = scmp.eq.s32.totalorder %s26, 0
      %p260 = por %p258, %p259
      %p261 = scmp.ne.s32.totalorder %s253, %s255
      %p262 = scmp.eq.s32.totalorder %s31, 1
      %p263 = por %p261, %p262
      %p264 = scmp.ne.s32.totalorder %s255, %s256
      %p265 = scmp.eq.s32.totalorder %s31, 0
      %p266 = por %p264, %p265
      %p267 = scmp.ne.s32.totalorder %s255, %s256
      %p268 = scmp.eq.s32.totalorder %s32, 1
      %p269 = por %p267, %p268
      %p271 = scmp.ne.s32.totalorder %s256, %s270
      %p272 = scmp.eq.s32.totalorder %s32, 0
      %p273 = por %p271, %p272
      %s274 = ssub.s32 %s26, %s33
      %p275 = scmp.eq.s32.totalorder %s274, 0
      %s277 = sadd.s32 %s276, 1
      %s278 = scalar_select %p275, %s276, %s277
      %p281 = pneg %p275
      %p282 = scmp.eq.s32.totalorder %s26, 1
      %p283 = por %p281, %p282
      %p284 = scmp.ne.s32.totalorder %s276, %s279
      %p285 = scmp.eq.s32.totalorder %s26, 0
      %p286 = por %p284, %p285
      %p287 = scmp.ne.s32.totalorder %s276, %s279
      %p288 = scmp.eq.s32.totalorder %s31, 1
      %p289 = por %p287, %p288
      %p290 = scmp.ne.s32.totalorder %s279, %s280
      %p291 = scmp.eq.s32.totalorder %s31, 0
      %p292 = por %p290, %p291
      %p293 = scmp.ne.s32.totalorder %s279, %s280
      %p294 = scmp.eq.s32.totalorder %s32, 1
      %p295 = por %p293, %p294
      %p297 = scmp.ne.s32.totalorder %s280, %s296
      %p298 = scmp.eq.s32.totalorder %s32, 0
      %p299 = por %p297, %p298
      %s301 = sadd.s32 %s300, 1
      %p304 = scmp.eq.s32.totalorder %s26, 1
      %p305 = scmp.ne.s32.totalorder %s300, %s302
      %p306 = scmp.eq.s32.totalorder %s26, 0
      %p307 = por %p305, %p306
      %p308 = scmp.ne.s32.totalorder %s300, %s302
      %p309 = scmp.eq.s32.totalorder %s31, 1
      %p310 = por %p308, %p309
      %p311 = scmp.ne.s32.totalorder %s302, %s303
      %p312 = scmp.eq.s32.totalorder %s31, 0
      %p313 = por %p311, %p312
      %p314 = scmp.ne.s32.totalorder %s302, %s303
      %p315 = scmp.eq.s32.totalorder %s32, 1
      %p316 = por %p314, %p315
      %p318 = scmp.ne.s32.totalorder %s303, %s317
      %p319 = scmp.eq.s32.totalorder %s32, 0
      %p320 = por %p318, %p319
      %s322 = sadd.s32 %s321, 1
      %p325 = scmp.eq.s32.totalorder %s26, 1
      %p326 = scmp.ne.s32.totalorder %s321, %s323
      %p327 = scmp.eq.s32.totalorder %s26, 0
      %p328 = por %p326, %p327
      %p329 = scmp.ne.s32.totalorder %s321, %s323
      %p330 = scmp.eq.s32.totalorder %s31, 1
      %p331 = por %p329, %p330
      %p332 = scmp.ne.s32.totalorder %s323, %s324
      %p333 = scmp.eq.s32.totalorder %s31, 0
      %p334 = por %p332, %p333
      %p335 = scmp.ne.s32.totalorder %s323, %s324
      %p336 = scmp.eq.s32.totalorder %s32, 1
      %p337 = por %p335, %p336
      %p339 = scmp.ne.s32.totalorder %s324, %s338
      %p340 = scmp.eq.s32.totalorder %s32, 0
      %p341 = por %p339, %p340
      %s343 = sadd.s32 %s342, 1
      %p346 = scmp.eq.s32.totalorder %s26, 1
      %p347 = scmp.ne.s32.totalorder %s342, %s344
      %p348 = scmp.eq.s32.totalorder %s26, 0
      %p349 = por %p347, %p348
      %p350 = scmp.ne.s32.totalorder %s342, %s344
      %p351 = scmp.eq.s32.totalorder %s31, 1
      %p352 = por %p350, %p351
      %p353 = scmp.ne.s32.totalorder %s344, %s345
      %p354 = scmp.eq.s32.totalorder %s31, 0
      %p355 = por %p353, %p354
      %p356 = scmp.ne.s32.totalorder %s344, %s345
      %p357 = scmp.eq.s32.totalorder %s32, 1
      %p358 = por %p356, %p357
      %p360 = scmp.ne.s32.totalorder %s345, %s359
      %p361 = scmp.eq.s32.totalorder %s32, 0
      %p362 = por %p360, %p361
      %s364 = sadd.s32 %s363, 1
      %p367 = scmp.eq.s32.totalorder %s26, 1
      %p368 = scmp.ne.s32.totalorder %s363, %s365
      %p369 = scmp.eq.s32.totalorder %s26, 0
      %p370 = por %p368, %p369
      %p371 = scmp.ne.s32.totalorder %s363, %s365
      %p372 = scmp.eq.s32.totalorder %s31, 1
      %p373 = por %p371, %p372
      %p374 = scmp.ne.s32.totalorder %s365, %s366
      %p375 = scmp.eq.s32.totalorder %s31, 0
      %p376 = por %p374, %p375
      %p377 = scmp.ne.s32.totalorder %s365, %s366
      %p378 = scmp.eq.s32.totalorder %s32, 1
      %p379 = por %p377, %p378
      %p381 = scmp.ne.s32.totalorder %s366, %s380
      %p382 = scmp.eq.s32.totalorder %s32, 0
      %p383 = por %p381, %p382
      %s385 = sadd.s32 %s384, 1
      %p388 = scmp.eq.s32.totalorder %s26, 1
      %p389 = scmp.ne.s32.totalorder %s384, %s386
      %p390 = scmp.eq.s32.totalorder %s26, 0
      %p391 = por %p389, %p390
      %p392 = scmp.ne.s32.totalorder %s384, %s386
      %p393 = scmp.eq.s32.totalorder %s31, 1
      %p394 = por %p392, %p393
      %p395 = scmp.ne.s32.totalorder %s386, %s387
      %p396 = scmp.eq.s32.totalorder %s31, 0
      %p397 = por %p395, %p396
      %p398 = scmp.ne.s32.totalorder %s386, %s387
      %p399 = scmp.eq.s32.totalorder %s32, 1
      %p400 = por %p398, %p399
      %p402 = scmp.ne.s32.totalorder %s387, %s401
      %p403 = scmp.eq.s32.totalorder %s32, 0
      %p404 = por %p402, %p403
      %s406 = sadd.s32 %s405, 1
      %p409 = scmp.eq.s32.totalorder %s26, 1
      %p410 = scmp.ne.s32.totalorder %s405, %s407
      %p411 = scmp.eq.s32.totalorder %s26, 0
      %p412 = por %p410, %p411
      %p413 = scmp.ne.s32.totalorder %s405, %s407
      %p414 = scmp.eq.s32.totalorder %s31, 1
      %p415 = por %p413, %p414
      %p416 = scmp.ne.s32.totalorder %s407, %s408
      %p417 = scmp.eq.s32.totalorder %s31, 0
      %p418 = por %p416, %p417
      %p419 = scmp.ne.s32.totalorder %s407, %s408
      %p420 = scmp.eq.s32.totalorder %s32, 1
      %p421 = por %p419, %p420
      %p423 = scmp.ne.s32.totalorder %s408, %s422
      %p424 = scmp.eq.s32.totalorder %s32, 0
      %p425 = por %p423, %p424
      %s426 = ssub.s32 %s26, %s33
      %p427 = scmp.eq.s32.totalorder %s426, 0
      %s429 = sadd.s32 %s428, 1
      %s430 = scalar_select %p427, %s428, %s429
      %p433 = pneg %p427
      %p434 = scmp.eq.s32.totalorder %s26, 1
      %p435 = por %p433, %p434
      %p436 = scmp.ne.s32.totalorder %s428, %s431
      %p437 = scmp.eq.s32.totalorder %s26, 0
      %p438 = por %p436, %p437
      %p439 = scmp.ne.s32.totalorder %s428, %s431
      %p440 = scmp.eq.s32.totalorder %s31, 1
      %p441 = por %p439, %p440
      %p442 = scmp.ne.s32.totalorder %s431, %s432
      %p443 = scmp.eq.s32.totalorder %s31, 0
      %p444 = por %p442, %p443
      %p445 = scmp.ne.s32.totalorder %s431, %s432
      %p446 = scmp.eq.s32.totalorder %s32, 1
      %p447 = por %p445, %p446
      %p449 = scmp.ne.s32.totalorder %s432, %s448
      %p450 = scmp.eq.s32.totalorder %s32, 0
      %p451 = por %p449, %p450
      %p452 = scmp.le.s32.totalorder 1, %s26
      %p453 = scmp.lt.s32.totalorder %s26, 3
      %p454 = pnand %p452, %p453
      %p455 = pneg %p454
      // Predicated region
      $region9: #{dearllm_forward.1} parent=5 // pred_check
        _
      $region10: #{dearllm_forward.1} parent=5 // pred_check_branch
        %457 = sbr.rel (%p454) target = $region12
      $region11: #{dearllm_forward.1} parent=5 // pred_region
        %s458 = ssub.s32 %s26, 1
        // Predicated region
        $region13: #{dearllm_forward.1} parent=11 // pred_check
          %p459 = pneg %p203
        $region14: #{dearllm_forward.1} parent=11 // pred_check_branch
          %461 = sbr.rel (%p459) target = $region16
        $region15: #{dearllm_forward.1} parent=11 // pred_region
          _
        $region16: #{dearllm_forward.1} parent=11 // pred_fallthru
          _
        // Predicated region
        $region17: #{dearllm_forward.1} parent=11 // pred_check
          %p462 = pneg %p224
        $region18: #{dearllm_forward.1} parent=11 // pred_check_branch
          %464 = sbr.rel (%p462) target = $region20
        $region19: #{dearllm_forward.1} parent=11 // pred_region
          _
        $region20: #{dearllm_forward.1} parent=11 // pred_fallthru
          _
        // Predicated region
        $region21: #{dearllm_forward.1} parent=11 // pred_check
          %p465 = pneg %p245
        $region22: #{dearllm_forward.1} parent=11 // pred_check_branch
          %467 = sbr.rel (%p465) target = $region24
        $region23: #{dearllm_forward.1} parent=11 // pred_region
          _
        $region24: #{dearllm_forward.1} parent=11 // pred_fallthru
          _
        // Predicated region
        $region25: #{dearllm_forward.1} parent=11 // pred_check
          %p468 = pneg %p266
        $region26: #{dearllm_forward.1} parent=11 // pred_check_branch
          %470 = sbr.rel (%p468) target = $region28
        $region27: #{dearllm_forward.1} parent=11 // pred_region
          _
        $region28: #{dearllm_forward.1} parent=11 // pred_fallthru
          _
        // Predicated region
        $region29: #{dearllm_forward.1} parent=11 // pred_check
          %p471 = pneg %p313
        $region30: #{dearllm_forward.1} parent=11 // pred_check_branch
          %473 = sbr.rel (%p471) target = $region32
        $region31: #{dearllm_forward.1} parent=11 // pred_region
          _
        $region32: #{dearllm_forward.1} parent=11 // pred_fallthru
          _
        // Predicated region
        $region33: #{dearllm_forward.1} parent=11 // pred_check
          %p474 = pneg %p334
        $region34: #{dearllm_forward.1} parent=11 // pred_check_branch
          %476 = sbr.rel (%p474) target = $region36
        $region35: #{dearllm_forward.1} parent=11 // pred_region
          _
        $region36: #{dearllm_forward.1} parent=11 // pred_fallthru
          _
        // Predicated region
        $region37: #{dearllm_forward.1} parent=11 // pred_check
          %p477 = pneg %p355
        $region38: #{dearllm_forward.1} parent=11 // pred_check_branch
          %479 = sbr.rel (%p477) target = $region40
        $region39: #{dearllm_forward.1} parent=11 // pred_region
          _
        $region40: #{dearllm_forward.1} parent=11 // pred_fallthru
          _
      $region12: #{dearllm_forward.1} parent=5 // pred_fallthru
        _
      %p480 = scmp.lt.s32.totalorder %s26, 2
      // Predicated region
      $region41: #{dearllm_forward.1} parent=5 // pred_check
        %p481 = pneg %p480
      $region42: #{dearllm_forward.1} parent=5 // pred_check_branch
        %483 = sbr.rel (%p481) target = $region44
      $region43: #{dearllm_forward.1} parent=5 // pred_region
        // Predicated region
        $region45: #{dearllm_forward.1} parent=43 // pred_check
          %p484 = pneg %p46
        $region46: #{dearllm_forward.1} parent=43 // pred_check_branch
          %486 = sbr.rel (%p484) target = $region48
        $region47: #{dearllm_forward.1} parent=43 // pred_region
          %p487 = scmp.lt.s32.totalorder %s26, 1
          %s488 = scalar_select %p487, %s26, 1
          %s489 = smul.addr %s488, 8
          %s490 = smul.addr %s489, 2
          %s491 = scalar_lea.vmem %s0, %s490
        $region48: #{dearllm_forward.1} parent=43 // pred_fallthru
          _
        // Predicated region
        $region49: #{dearllm_forward.1} parent=43 // pred_check
          %p492 = pneg %p72
        $region50: #{dearllm_forward.1} parent=43 // pred_check_branch
          %494 = sbr.rel (%p492) target = $region52
        $region51: #{dearllm_forward.1} parent=43 // pred_region
          %p495 = scmp.lt.s32.totalorder %s26, 1
          %s496 = scalar_select %p495, %s26, 1
          %s497 = smul.addr %s496, 7
          %s498 = smul.addr %s497, 4
          %s499 = scalar_lea.vmem %s1, %s498
        $region52: #{dearllm_forward.1} parent=43 // pred_fallthru
          _
        // Predicated region
        $region53: #{dearllm_forward.1} parent=43 // pred_check
          %p500 = pneg %p98
        $region54: #{dearllm_forward.1} parent=43 // pred_check_branch
          %502 = sbr.rel (%p500) target = $region56
        $region55: #{dearllm_forward.1} parent=43 // pred_region
          %p503 = scmp.lt.s32.totalorder %s26, 1
          %s504 = scalar_select %p503, %s26, 1
          %s505 = smul.addr %s504, 2
          %s506 = smul.addr %s505, 4
          %s507 = scalar_lea.vmem %s2, %s506
        $region56: #{dearllm_forward.1} parent=43 // pred_fallthru
          _
        // Predicated region
        $region57: #{dearllm_forward.1} parent=43 // pred_check
          %p508 = pneg %p124
        $region58: #{dearllm_forward.1} parent=43 // pred_check_branch
          %510 = sbr.rel (%p508) target = $region60
        $region59: #{dearllm_forward.1} parent=43 // pred_region
          %p511 = scmp.lt.s32.totalorder %s26, 1
          %s512 = scalar_select %p511, %s26, 1
          %s513 = smul.addr %s512, 4
          %s514 = smul.addr %s513, 4
          %s515 = scalar_lea.vmem %s3, %s514
        $region60: #{dearllm_forward.1} parent=43 // pred_fallthru
          _
        // Predicated region
        $region61: #{dearllm_forward.1} parent=43 // pred_check
          %p516 = pneg %p150
        $region62: #{dearllm_forward.1} parent=43 // pred_check_branch
          %518 = sbr.rel (%p516) target = $region64
        $region63: #{dearllm_forward.1} parent=43 // pred_region
          %p519 = scmp.lt.s32.totalorder %s26, 1
          %s520 = scalar_select %p519, %s26, 1
          %s521 = scalar_lea.vmem %s4, %s520
        $region64: #{dearllm_forward.1} parent=43 // pred_fallthru
          _
        // Predicated region
        $region65: #{dearllm_forward.1} parent=43 // pred_check
          %p522 = pneg %p176
        $region66: #{dearllm_forward.1} parent=43 // pred_check_branch
          %524 = sbr.rel (%p522) target = $region68
        $region67: #{dearllm_forward.1} parent=43 // pred_region
          %p525 = scmp.lt.s32.totalorder %s26, 1
          %s526 = scalar_select %p525, %s26, 1
          %s527 = scalar_lea.vmem %s5, %s526
        $region68: #{dearllm_forward.1} parent=43 // pred_fallthru
          _
        // Predicated region
        $region69: #{dearllm_forward.1} parent=43 // pred_check
          %p528 = pneg %p286
        $region70: #{dearllm_forward.1} parent=43 // pred_check_branch
          %530 = sbr.rel (%p528) target = $region72
        $region71: #{dearllm_forward.1} parent=43 // pred_region
          %p531 = scmp.lt.s32.totalorder %s26, 1
          %s532 = scalar_select %p531, %s26, 1
          %s533 = smul.addr %s532, 4
          %s534 = smul.addr %s533, 4
          %s535 = scalar_lea.vmem %s10, %s534
        $region72: #{dearllm_forward.1} parent=43 // pred_fallthru
          _
      $region44: #{dearllm_forward.1} parent=5 // pred_fallthru
        _
      %p536 = scmp.le.s32.totalorder 1, %s26
      %p537 = scmp.lt.s32.totalorder %s26, 3
      %p538 = pnand %p536, %p537
      %p539 = pneg %p538
      // Predicated region
      $region73: #{dearllm_forward.1} parent=5 // pred_check
        _
      $region74: #{dearllm_forward.1} parent=5 // pred_check_branch
        %541 = sbr.rel (%p538) target = $region76
      $region75: #{dearllm_forward.1} parent=5 // pred_region
        %s542 = ssub.s32 %s26, 1
        %p543 = scmp.lt.s32.totalorder %s31, 1
        %s544 = scalar_select %p543, %s31, 1
        %s545 = smul.addr %s544, 8
        %s546 = smul.addr %s545, 2
        %s547 = scalar_lea.vmem %s0, %s546
        %p548 = pneg %p52
        %p549 = pneg %p49
        %p550 = scmp.lt.s32.totalorder %s31, 1
        %s551 = scalar_select %p550, %s31, 1
        %s552 = smul.addr %s551, 7
        %s553 = smul.addr %s552, 4
        %s554 = scalar_lea.vmem %s1, %s553
        %p555 = pneg %p78
        %p556 = pneg %p75
        %p557 = scmp.lt.s32.totalorder %s31, 1
        %s558 = scalar_select %p557, %s31, 1
        %s559 = smul.addr %s558, 2
        %s560 = smul.addr %s559, 4
        %s561 = scalar_lea.vmem %s2, %s560
        %p562 = pneg %p104
        %p563 = pneg %p101
        %p564 = scmp.lt.s32.totalorder %s31, 1
        %s565 = scalar_select %p564, %s31, 1
        %s566 = smul.addr %s565, 4
        %s567 = smul.addr %s566, 4
        %s568 = scalar_lea.vmem %s3, %s567
        %p569 = pneg %p130
        %p570 = pneg %p127
        %p571 = scmp.lt.s32.totalorder %s31, 1
        %s572 = scalar_select %p571, %s31, 1
        %s573 = scalar_lea.vmem %s4, %s572
        %p574 = pneg %p156
        %p575 = pneg %p153
        %p576 = scmp.lt.s32.totalorder %s31, 1
        %s577 = scalar_select %p576, %s31, 1
        %s578 = scalar_lea.vmem %s5, %s577
        %p579 = pneg %p182
        %p580 = pneg %p179
        %p581 = pneg %p203
        %p582 = pneg %p200
        %p583 = pneg %p224
        %p584 = pneg %p221
        %p585 = pneg %p245
        %p586 = pneg %p242
        %p587 = pneg %p266
        %p588 = pneg %p263
        %p589 = scmp.lt.s32.totalorder %s31, 1
        %s590 = scalar_select %p589, %s31, 1
        %s591 = smul.addr %s590, 4
        %s592 = smul.addr %s591, 4
        %s593 = scalar_lea.vmem %s10, %s592
        %p594 = pneg %p292
        %p595 = pneg %p289
        %p596 = pneg %p313
        %p597 = pneg %p310
        %p598 = pneg %p334
        %p599 = pneg %p331
        %p600 = pneg %p355
        %p601 = pneg %p352
        %p602 = pneg %p376
        %p603 = pneg %p373
        %p604 = pneg %p397
        %p605 = pneg %p394
        %p606 = pneg %p418
        %p607 = pneg %p415
        %p608 = pneg %p444
        %p609 = pneg %p441
        %p610 = scmp.lt.s32.totalorder %s31, 1
        %s611 = scalar_select %p610, %s31, 1
        %s612 = smul.addr %s611, 2
        %s613 = scalar_lea.vmem %s17, %s612
        %p614 = scmp.lt.s32.totalorder %s31, 1
        %s615 = scalar_select %p614, %s31, 1
        %s616 = smul.addr %s615, 8
        %s617 = smul.addr %s616, 2
        %s618 = scalar_lea.vmem %s0, %s617
        %p619 = scmp.lt.s32.totalorder %s31, 1
        %s620 = scalar_select %p619, %s31, 1
        %s621 = smul.addr %s620, 7
        %s622 = smul.addr %s621, 4
        %s623 = scalar_lea.vmem %s1, %s622
        %p624 = scmp.lt.s32.totalorder %s31, 1
        %s625 = scalar_select %p624, %s31, 1
        %s626 = smul.addr %s625, 2
        %s627 = smul.addr %s626, 4
        %s628 = scalar_lea.vmem %s2, %s627
        %p629 = scmp.lt.s32.totalorder %s31, 1
        %s630 = scalar_select %p629, %s31, 1
        %s631 = smul.addr %s630, 4
        %s632 = smul.addr %s631, 4
        %s633 = scalar_lea.vmem %s3, %s632
        %p634 = scmp.lt.s32.totalorder %s31, 1
        %s635 = scalar_select %p634, %s31, 1
        %s636 = scalar_lea.vmem %s4, %s635
        %p637 = scmp.lt.s32.totalorder %s31, 1
        %s638 = scalar_select %p637, %s31, 1
        %s639 = scalar_lea.vmem %s5, %s638
        %p640 = scmp.lt.s32.totalorder %s31, 1
        %s641 = scalar_select %p640, %s31, 1
        %s642 = smul.addr %s641, 4
        %s643 = smul.addr %s642, 4
        %s644 = scalar_lea.vmem %s10, %s643
        %p645 = scmp.lt.s32.totalorder %s31, 1
        %s646 = scalar_select %p645, %s31, 1
        %s647 = smul.addr %s646, 2
        %s648 = scalar_lea.vmem %s17, %s647
        %p650 = scmp.eq.s32.totalorder %s31, 0
        // Predicated region
        $region77: #{dearllm_forward.1} parent=75 // pred_check
          %p651 = pneg %p650
        $region78: #{dearllm_forward.1} parent=75 // pred_check_branch
          %653 = sbr.rel (%p651) target = $region80
        $region79: #{dearllm_forward.1} parent=75 // pred_region
          %vm654 = vcmask 58368
          %655 = vst.msk [vmem:[#allocation3] sm:$0x3] %vm654, 0.0
        $region80: #{dearllm_forward.1} parent=75 // pred_fallthru
          _
        %v656 = vld [vmem:[%s618] sm:$0x3]
        %v657 = vld [vmem:[%s618 + $0x2] sm:$0x3]
        %v658 = vld [vmem:[%s618 + $0x4] sm:$0x3]
        %v659 = vld [vmem:[%s618 + $0x6] sm:$0x3]
        %v660 = vld [vmem:[%s618 + $0x8] sm:$0x3]
        %v661 = vld [vmem:[%s618 + $0xa] sm:$0x3]
        %v662 = vld [vmem:[%s618 + $0xc] sm:$0x3]
        %v663 = vld [vmem:[%s618 + $0xe] sm:$0x3]
        %v664 = vlaneseq
        %v665 = vand.u32 %v664, 127
        %666 = vset.pattern.permute.xlu0 0
        %667 = vperm.xlu0 %666, %v656
        %v668 = vpop.permute.xlu0 %667
        %669 = vset.pattern.permute.xlu0 0
        %670 = vperm.xlu0 %669, %v657
        %v671 = vpop.permute.xlu0 %670
        %672 = vset.pattern.permute.xlu0 0
        %673 = vperm.xlu0 %672, %v658
        %v674 = vpop.permute.xlu0 %673
        %675 = vset.pattern.permute.xlu0 0
        %676 = vperm.xlu0 %675, %v659
        %v677 = vpop.permute.xlu0 %676
        %678 = vset.pattern.permute.xlu0 0
        %679 = vperm.xlu0 %678, %v660
        %v680 = vpop.permute.xlu0 %679
        %681 = vset.pattern.permute.xlu0 0
        %682 = vperm.xlu0 %681, %v661
        %v683 = vpop.permute.xlu0 %682
        %684 = vset.pattern.permute.xlu0 0
        %685 = vperm.xlu0 %684, %v662
        %v686 = vpop.permute.xlu0 %685
        %687 = vset.pattern.permute.xlu0 0
        %688 = vperm.xlu0 %687, %v663
        %v689 = vpop.permute.xlu0 %688
        %vm690 = vcmp.eq.s32.totalorder %v665, %v668
        %vm691 = vcmp.eq.s32.totalorder %v665, %v671
        %vm692 = vcmp.eq.s32.totalorder %v665, %v674
        %vm693 = vcmp.eq.s32.totalorder %v665, %v677
        %vm694 = vcmp.eq.s32.totalorder %v665, %v680
        %vm695 = vcmp.eq.s32.totalorder %v665, %v683
        %vm696 = vcmp.eq.s32.totalorder %v665, %v686
        %vm697 = vcmp.eq.s32.totalorder %v665, %v689
        %v698 = vsel %vm690, 1, 0
        %v699 = vsel %vm691, 1, 0
        %v700 = vsel %vm692, 1, 0
        %v701 = vsel %vm693, 1, 0
        %v702 = vsel %vm694, 1, 0
        %v703 = vsel %vm695, 1, 0
        %v704 = vsel %vm696, 1, 0
        %v705 = vsel %vm697, 1, 0
        %v706 = vcvt.s32.f32 %v698
        %v707 = vcvt.s32.f32 %v699
        %v708 = vcvt.s32.f32 %v700
        %v709 = vcvt.s32.f32 %v701
        %v710 = vcvt.s32.f32 %v702
        %v711 = vcvt.s32.f32 %v703
        %v712 = vcvt.s32.f32 %v704
        %v713 = vcvt.s32.f32 %v705
        %v714 = vadd.f32 %v706, 0.0
        %v715 = vadd.f32 %v707, 0.0
        %v716 = vadd.f32 %v708, 0.0
        %v717 = vadd.f32 %v709, 0.0
        %v718 = vadd.f32 %v710, 0.0
        %v719 = vadd.f32 %v711, 0.0
        %v720 = vadd.f32 %v712, 0.0
        %v721 = vadd.f32 %v713, 0.0
        %722 = vset.pattern.permute.xlu0 1
        %723 = vperm.xlu0 %722, %v656
        %v724 = vpop.permute.xlu0 %723
        %725 = vset.pattern.permute.xlu0 1
        %726 = vperm.xlu0 %725, %v657
        %v727 = vpop.permute.xlu0 %726
        %728 = vset.pattern.permute.xlu0 1
        %729 = vperm.xlu0 %728, %v658
        %v730 = vpop.permute.xlu0 %729
        %731 = vset.pattern.permute.xlu0 1
        %732 = vperm.xlu0 %731, %v659
        %v733 = vpop.permute.xlu0 %732
        %734 = vset.pattern.permute.xlu0 1
        %735 = vperm.xlu0 %734, %v660
        %v736 = vpop.permute.xlu0 %735
        %737 = vset.pattern.permute.xlu0 1
        %738 = vperm.xlu0 %737, %v661
        %v739 = vpop.permute.xlu0 %738
        %740 = vset.pattern.permute.xlu0 1
        %741 = vperm.xlu0 %740, %v662
        %v742 = vpop.permute.xlu0 %741
        %743 = vset.pattern.permute.xlu0 1
        %744 = vperm.xlu0 %743, %v663
        %v745 = vpop.permute.xlu0 %744
        %vm746 = vcmp.eq.s32.totalorder %v665, %v724
        %vm747 = vcmp.eq.s32.totalorder %v665, %v727
        %vm748 = vcmp.eq.s32.totalorder %v665, %v730
        %vm749 = vcmp.eq.s32.totalorder %v665, %v733
        %vm750 = vcmp.eq.s32.totalorder %v665, %v736
        %vm751 = vcmp.eq.s32.totalorder %v665, %v739
        %vm752 = vcmp.eq.s32.totalorder %v665, %v742
        %vm753 = vcmp.eq.s32.totalorder %v665, %v745
        %v754 = vsel %vm746, 1, 0
        %v755 = vsel %vm747, 1, 0
        %v756 = vsel %vm748, 1, 0
        %v757 = vsel %vm749, 1, 0
        %v758 = vsel %vm750, 1, 0
        %v759 = vsel %vm751, 1, 0
        %v760 = vsel %vm752, 1, 0
        %v761 = vsel %vm753, 1, 0
        %v762 = vcvt.s32.f32 %v754
        %v763 = vcvt.s32.f32 %v755
        %v764 = vcvt.s32.f32 %v756
        %v765 = vcvt.s32.f32 %v757
        %v766 = vcvt.s32.f32 %v758
        %v767 = vcvt.s32.f32 %v759
        %v768 = vcvt.s32.f32 %v760
        %v769 = vcvt.s32.f32 %v761
        %v770 = vadd.f32 %v714, %v762
        %v771 = vadd.f32 %v715, %v763
        %v772 = vadd.f32 %v716, %v764
        %v773 = vadd.f32 %v717, %v765
        %v774 = vadd.f32 %v718, %v766
        %v775 = vadd.f32 %v719, %v767
        %v776 = vadd.f32 %v720, %v768
        %v777 = vadd.f32 %v721, %v769
        %778 = vset.pattern.permute.xlu0 2
        %779 = vperm.xlu0 %778, %v656
        %v780 = vpop.permute.xlu0 %779
        %781 = vset.pattern.permute.xlu0 2
        %782 = vperm.xlu0 %781, %v657
        %v783 = vpop.permute.xlu0 %782
        %784 = vset.pattern.permute.xlu0 2
        %785 = vperm.xlu0 %784, %v658
        %v786 = vpop.permute.xlu0 %785
        %787 = vset.pattern.permute.xlu0 2
        %788 = vperm.xlu0 %787, %v659
        %v789 = vpop.permute.xlu0 %788
        %790 = vset.pattern.permute.xlu0 2
        %791 = vperm.xlu0 %790, %v660
        %v792 = vpop.permute.xlu0 %791
        %793 = vset.pattern.permute.xlu0 2
        %794 = vperm.xlu0 %793, %v661
        %v795 = vpop.permute.xlu0 %794
        %796 = vset.pattern.permute.xlu0 2
        %797 = vperm.xlu0 %796, %v662
        %v798 = vpop.permute.xlu0 %797
        %799 = vset.pattern.permute.xlu0 2
        %800 = vperm.xlu0 %799, %v663
        %v801 = vpop.permute.xlu0 %800
        %vm802 = vcmp.eq.s32.totalorder %v665, %v780
        %vm803 = vcmp.eq.s32.totalorder %v665, %v783
        %vm804 = vcmp.eq.s32.totalorder %v665, %v786
        %vm805 = vcmp.eq.s32.totalorder %v665, %v789
        %vm806 = vcmp.eq.s32.totalorder %v665, %v792
        %vm807 = vcmp.eq.s32.totalorder %v665, %v795
        %vm808 = vcmp.eq.s32.totalorder %v665, %v798
        %vm809 = vcmp.eq.s32.totalorder %v665, %v801
        %v810 = vsel %vm802, 1, 0
        %v811 = vsel %vm803, 1, 0
        %v812 = vsel %vm804, 1, 0
        %v813 = vsel %vm805, 1, 0
        %v814 = vsel %vm806, 1, 0
        %v815 = vsel %vm807, 1, 0
        %v816 = vsel %vm808, 1, 0
        %v817 = vsel %vm809, 1, 0
        %v818 = vcvt.s32.f32 %v810
        %v819 = vcvt.s32.f32 %v811
        %v820 = vcvt.s32.f32 %v812
        %v821 = vcvt.s32.f32 %v813
        %v822 = vcvt.s32.f32 %v814
        %v823 = vcvt.s32.f32 %v815
        %v824 = vcvt.s32.f32 %v816
        %v825 = vcvt.s32.f32 %v817
        %v826 = vadd.f32 %v770, %v818
        %v827 = vadd.f32 %v771, %v819
        %v828 = vadd.f32 %v772, %v820
        %v829 = vadd.f32 %v773, %v821
        %v830 = vadd.f32 %v774, %v822
        %v831 = vadd.f32 %v775, %v823
        %v832 = vadd.f32 %v776, %v824
        %v833 = vadd.f32 %v777, %v825
        %834 = vset.pattern.permute.xlu0 3
        %835 = vperm.xlu0 %834, %v656
        %v836 = vpop.permute.xlu0 %835
        %837 = vset.pattern.permute.xlu0 3
        %838 = vperm.xlu0 %837, %v657
        %v839 = vpop.permute.xlu0 %838
        %840 = vset.pattern.permute.xlu0 3
        %841 = vperm.xlu0 %840, %v658
        %v842 = vpop.permute.xlu0 %841
        %843 = vset.pattern.permute.xlu0 3
        %844 = vperm.xlu0 %843, %v659
        %v845 = vpop.permute.xlu0 %844
        %846 = vset.pattern.permute.xlu0 3
        %847 = vperm.xlu0 %846, %v660
        %v848 = vpop.permute.xlu0 %847
        %849 = vset.pattern.permute.xlu0 3
        %850 = vperm.xlu0 %849, %v661
        %v851 = vpop.permute.xlu0 %850
        %852 = vset.pattern.permute.xlu0 3
        %853 = vperm.xlu0 %852, %v662
        %v854 = vpop.permute.xlu0 %853
        %855 = vset.pattern.permute.xlu0 3
        %856 = vperm.xlu0 %855, %v663
        %v857 = vpop.permute.xlu0 %856
        %vm858 = vcmp.eq.s32.totalorder %v665, %v836
        %vm859 = vcmp.eq.s32.totalorder %v665, %v839
        %vm860 = vcmp.eq.s32.totalorder %v665, %v842
        %vm861 = vcmp.eq.s32.totalorder %v665, %v845
        %vm862 = vcmp.eq.s32.totalorder %v665, %v848
        %vm863 = vcmp.eq.s32.totalorder %v665, %v851
        %vm864 = vcmp.eq.s32.totalorder %v665, %v854
        %vm865 = vcmp.eq.s32.totalorder %v665, %v857
        %v866 = vsel %vm858, 1, 0
        %v867 = vsel %vm859, 1, 0
        %v868 = vsel %vm860, 1, 0
        %v869 = vsel %vm861, 1, 0
        %v870 = vsel %vm862, 1, 0
        %v871 = vsel %vm863, 1, 0
        %v872 = vsel %vm864, 1, 0
        %v873 = vsel %vm865, 1, 0
        %v874 = vcvt.s32.f32 %v866
        %v875 = vcvt.s32.f32 %v867
        %v876 = vcvt.s32.f32 %v868
        %v877 = vcvt.s32.f32 %v869
        %v878 = vcvt.s32.f32 %v870
        %v879 = vcvt.s32.f32 %v871
        %v880 = vcvt.s32.f32 %v872
        %v881 = vcvt.s32.f32 %v873
        %v882 = vadd.f32 %v826, %v874
        %v883 = vadd.f32 %v827, %v875
        %v884 = vadd.f32 %v828, %v876
        %v885 = vadd.f32 %v829, %v877
        %v886 = vadd.f32 %v830, %v878
        %v887 = vadd.f32 %v831, %v879
        %v888 = vadd.f32 %v832, %v880
        %v889 = vadd.f32 %v833, %v881
        %v890 = vmul.f32 %v882, 0.25
        %v891 = vmul.f32 %v883, 0.25
        %v892 = vmul.f32 %v884, 0.25
        %v893 = vmul.f32 %v885, 0.25
        %v894 = vmul.f32 %v886, 0.25
        %v895 = vmul.f32 %v887, 0.25
        %v896 = vmul.f32 %v888, 0.25
        %v897 = vmul.f32 %v889, 0.25
        %v898 = vpack.c.bf16 %v890, %v890
        %v899 = vpack.c.bf16 %v891, %v891
        %v900 = vpack.c.bf16 %v892, %v892
        %v901 = vpack.c.bf16 %v893, %v893
        %v902 = vpack.c.bf16 %v894, %v894
        %v903 = vpack.c.bf16 %v895, %v895
        %v904 = vpack.c.bf16 %v896, %v896
        %v905 = vpack.c.bf16 %v897, %v897
        %v906 = vld [vmem:[%s623] sm:$0xf]
        %v907 = vld [vmem:[%s623 + $0x4] sm:$0xf]
        %v908 = vld [vmem:[%s623 + $0x8] sm:$0xf]
        %v909 = vld [vmem:[%s623 + $0xc] sm:$0xf]
        %v910 = vld [vmem:[%s623 + $0x10] sm:$0xf]
        %v911 = vld [vmem:[%s623 + $0x14] sm:$0xf]
        %v912 = vld [vmem:[%s623 + $0x18] sm:$0x1]
        %v921 = vcombine.low %v898, %v899
        %v922 = vcombine.low %v900, %v901
        %v923 = vcombine.low %v902, %v903
        %v924 = vcombine.low %v904, %v905
        %v926 = vunpack.c.l.s4 1966171168
        %v927 = vunpack.c.0.s8 %v926
        %v928 = vlaneseq
        %v929 = vshrl.u32 %v928, 7
        %v930 = vsub.s32 %v927, %v929
        %v931 = vrot.slane %v921, %v930
        %v933 = vunpack.c.l.s4 1966171168
        %v934 = vunpack.c.0.s8 %v933
        %v935 = vlaneseq
        %v936 = vshrl.u32 %v935, 7
        %v937 = vsub.s32 %v934, %v936
        %v938 = vrot.slane %v922, %v937
        %v940 = vunpack.c.l.s4 1966171168
        %v941 = vunpack.c.0.s8 %v940
        %v942 = vlaneseq
        %v943 = vshrl.u32 %v942, 7
        %v944 = vsub.s32 %v941, %v943
        %v945 = vrot.slane %v923, %v944
        %v947 = vunpack.c.l.s4 1966171168
        %v948 = vunpack.c.0.s8 %v947
        %v949 = vlaneseq
        %v950 = vshrl.u32 %v949, 7
        %v951 = vsub.s32 %v948, %v950
        %v952 = vrot.slane %v924, %v951
        %v953 = vcombine.low %v931, %v938
        %v954 = vcombine.low %v945, %v952
        %v956 = vunpack.c.l.s4 1966171168
        %v957 = vunpack.c.0.s8 %v956
        %v958 = vlaneseq
        %v959 = vshrl.u32 %v958, 7
        %v960 = vsub.s32 %v957, %v959
        %v961 = vrot.slane %v953, %v960
        %v963 = vunpack.c.l.s4 1966171168
        %v964 = vunpack.c.0.s8 %v963
        %v965 = vlaneseq
        %v966 = vshrl.u32 %v965, 7
        %v967 = vsub.s32 %v964, %v966
        %v968 = vrot.slane %v954, %v967
        %v969 = vcombine.low %v961, %v968
        %v977 = vunpack.c.l.b16 %v906
        %v978 = vunpack.c.l.b16 %v907
        %v979 = vunpack.c.l.b16 %v908
        %v980 = vunpack.c.l.b16 %v909
        %v981 = vunpack.c.l.b16 %v910
        %v982 = vunpack.c.l.b16 %v911
        %v983 = vunpack.c.l.b16 %v912
        %v984 = vpack.c.b16 %v978, %v977
        %v985 = vpack.c.b16 %v980, %v979
        %v986 = vpack.c.b16 %v982, %v981
        %v987 = vpack.c.b16 %v983, %v983
        %vm991 = vcmask 408576
        %v993 = vsel %vm991, %v969, 0
        %vm995 = vcmask 1040384
        %v997 = vsel %vm995, %v987, 0
        %999 = vmatprep.subr.bf16.mxu0 0
        %1000 = vmatpush1.bf16.msra.mxu0 %v984
        %1001 = vmatprep.subr.bf16.mxu0 0
        %1002 = vmatpush1.bf16.msra.mxu0 %v985
        %1003 = vmatprep.subr.bf16.mxu0 0
        %1004 = vmatpush1.bf16.msra.mxu0 %v986
        %1005 = vmatprep.subr.bf16.mxu0 0
        %1006 = vmatpush1.bf16.msra.mxu0 %v997
        %1007 = vmatprep.subr.bf16.mxu0 0
        %1008 = vmatpush1.bf16.msra.mxu0 0
        %1009 = vmatprep.subr.bf16.mxu0 0
        %1010 = vmatpush1.bf16.msra.mxu0 0
        %1011 = vmatprep.subr.bf16.mxu0 0
        %1012 = vmatpush1.bf16.msra.mxu0 0
        %1013 = vmatprep.subr.bf16.mxu0 0
        %1014 = vmatpush1.bf16.msra.mxu0 0
        %1015 = vmatprep.subr.bf16.mxu0 0
        %1016 = vmatpush1.bf16.msra.mxu0 0
        %1017 = vmatprep.subr.bf16.mxu0 0
        %1018 = vmatpush1.bf16.msra.mxu0 0
        %1019 = vmatprep.subr.bf16.mxu0 0
        %1020 = vmatpush1.bf16.msra.mxu0 0
        %1021 = vmatprep.subr.bf16.mxu0 0
        %1022 = vmatpush1.bf16.msra.mxu0 0
        %1023 = vmatprep.subr.bf16.mxu0 0
        %1024 = vmatpush1.bf16.msra.mxu0 0
        %1025 = vmatprep.subr.bf16.mxu0 0
        %1026 = vmatpush1.bf16.msra.mxu0 0
        %1027 = vmatprep.subr.bf16.mxu0 0
        %1028 = vmatpush1.bf16.msra.mxu0 0
        %1029 = vmatprep.subr.bf16.mxu0 0
        %1030 = vmatpush1.bf16.msra.mxu0 0
        %1031 = vmatprep.mubr.bf16.mxu0 0
        %1032 = vmatmul.mubr.bf16.gmra.mrb[0].mxu0 %v993
        %v1033 = vpop.f32.mrb[0].mxu0
        %v1034 = vadd.f32 0.0, %v1033
        %v1035 = vpop.f32.mrb[0].mxu0
        %v1036 = vpop.f32.mrb[0].mxu0
        %v1037 = vadd.f32 0.0, %v1036
        %v1038 = vpop.f32.mrb[0].mxu0
        %1039 = vdwg.mxu0
        %v1042 = vcombine.high %v1034, %v1034
        %v1044 = vunpack.c.l.s4 1983009808
        %v1045 = vunpack.c.0.s8 %v1044
        %v1046 = vlaneseq
        %v1047 = vshrl.u32 %v1046, 7
        %v1048 = vsub.s32 %v1045, %v1047
        %v1049 = vrot.slane %v1034, %v1048
        %v1051 = vunpack.c.l.s4 1983009808
        %v1052 = vunpack.c.0.s8 %v1051
        %v1053 = vlaneseq
        %v1054 = vshrl.u32 %v1053, 7
        %v1055 = vsub.s32 %v1052, %v1054
        %v1056 = vrot.slane %v1042, %v1055
        %v1057 = vcombine.high %v1049, %v1049
        %v1058 = vcombine.high %v1056, %v1056
        %v1059 = vcombine.high %v1037, %v1037
        %v1061 = vunpack.c.l.s4 1983009808
        %v1062 = vunpack.c.0.s8 %v1061
        %v1063 = vlaneseq
        %v1064 = vshrl.u32 %v1063, 7
        %v1065 = vsub.s32 %v1062, %v1064
        %v1066 = vrot.slane %v1037, %v1065
        %v1068 = vunpack.c.l.s4 1983009808
        %v1069 = vunpack.c.0.s8 %v1068
        %v1070 = vlaneseq
        %v1071 = vshrl.u32 %v1070, 7
        %v1072 = vsub.s32 %v1069, %v1071
        %v1073 = vrot.slane %v1059, %v1072
        %v1074 = vcombine.high %v1066, %v1066
        %v1075 = vcombine.high %v1073, %v1073
        %v1084 = vpack.c.bf16 %v1049, %v1049
        %v1085 = vpack.c.bf16 %v1057, %v1057
        %v1086 = vpack.c.bf16 %v1056, %v1056
        %v1087 = vpack.c.bf16 %v1058, %v1058
        %v1088 = vpack.c.bf16 %v1066, %v1066
        %v1089 = vpack.c.bf16 %v1074, %v1074
        %v1090 = vpack.c.bf16 %v1073, %v1073
        %v1091 = vpack.c.bf16 %v1075, %v1075
        %v1092 = vld [vmem:[%s628] sm:$0xf]
        %v1093 = vld [vmem:[%s628 + $0x4] sm:$0xf]
        %v1102 = vcombine.low %v1084, %v1085
        %v1103 = vcombine.low %v1086, %v1087
        %v1104 = vcombine.low %v1088, %v1089
        %v1105 = vcombine.low %v1090, %v1091
        %v1107 = vunpack.c.l.s4 1966171168
        %v1108 = vunpack.c.0.s8 %v1107
        %v1109 = vlaneseq
        %v1110 = vshrl.u32 %v1109, 7
        %v1111 = vsub.s32 %v1108, %v1110
        %v1112 = vrot.slane %v1102, %v1111
        %v1114 = vunpack.c.l.s4 1966171168
        %v1115 = vunpack.c.0.s8 %v1114
        %v1116 = vlaneseq
        %v1117 = vshrl.u32 %v1116, 7
        %v1118 = vsub.s32 %v1115, %v1117
        %v1119 = vrot.slane %v1103, %v1118
        %v1121 = vunpack.c.l.s4 1966171168
        %v1122 = vunpack.c.0.s8 %v1121
        %v1123 = vlaneseq
        %v1124 = vshrl.u32 %v1123, 7
        %v1125 = vsub.s32 %v1122, %v1124
        %v1126 = vrot.slane %v1104, %v1125
        %v1128 = vunpack.c.l.s4 1966171168
        %v1129 = vunpack.c.0.s8 %v1128
        %v1130 = vlaneseq
        %v1131 = vshrl.u32 %v1130, 7
        %v1132 = vsub.s32 %v1129, %v1131
        %v1133 = vrot.slane %v1105, %v1132
        %v1134 = vcombine.low %v1112, %v1119
        %v1135 = vcombine.low %v1126, %v1133
        %v1137 = vunpack.c.l.s4 1966171168
        %v1138 = vunpack.c.0.s8 %v1137
        %v1139 = vlaneseq
        %v1140 = vshrl.u32 %v1139, 7
        %v1141 = vsub.s32 %v1138, %v1140
        %v1142 = vrot.slane %v1134, %v1141
        %v1144 = vunpack.c.l.s4 1966171168
        %v1145 = vunpack.c.0.s8 %v1144
        %v1146 = vlaneseq
        %v1147 = vshrl.u32 %v1146, 7
        %v1148 = vsub.s32 %v1145, %v1147
        %v1149 = vrot.slane %v1135, %v1148
        %v1150 = vcombine.low %v1142, %v1149
        %v1153 = vunpack.c.l.b16 %v1092
        %v1154 = vunpack.c.l.b16 %v1093
        %v1155 = vpack.c.b16 %v1154, %v1153
        %vm1157 = vcmask 130048
        %v1159 = vsel %vm1157, %v1150, 0
        %1161 = vmatprep.subr.bf16.mxu0 0
        %1162 = vmatpush1.bf16.msra.mxu0 %v1155
        %1163 = vmatprep.subr.bf16.mxu0 0
        %1164 = vmatpush1.bf16.msra.mxu0 0
        %1165 = vmatprep.subr.bf16.mxu0 0
        %1166 = vmatpush1.bf16.msra.mxu0 0
        %1167 = vmatprep.subr.bf16.mxu0 0
        %1168 = vmatpush1.bf16.msra.mxu0 0
        %1169 = vmatprep.subr.bf16.mxu0 0
        %1170 = vmatpush1.bf16.msra.mxu0 0
        %1171 = vmatprep.subr.bf16.mxu0 0
        %1172 = vmatpush1.bf16.msra.mxu0 0
        %1173 = vmatprep.subr.bf16.mxu0 0
        %1174 = vmatpush1.bf16.msra.mxu0 0
        %1175 = vmatprep.subr.bf16.mxu0 0
        %1176 = vmatpush1.bf16.msra.mxu0 0
        %1177 = vmatprep.subr.bf16.mxu0 0
        %1178 = vmatpush1.bf16.msra.mxu0 0
        %1179 = vmatprep.subr.bf16.mxu0 0
        %1180 = vmatpush1.bf16.msra.mxu0 0
        %1181 = vmatprep.subr.bf16.mxu0 0
        %1182 = vmatpush1.bf16.msra.mxu0 0
        %1183 = vmatprep.subr.bf16.mxu0 0
        %1184 = vmatpush1.bf16.msra.mxu0 0
        %1185 = vmatprep.subr.bf16.mxu0 0
        %1186 = vmatpush1.bf16.msra.mxu0 0
        %1187 = vmatprep.subr.bf16.mxu0 0
        %1188 = vmatpush1.bf16.msra.mxu0 0
        %1189 = vmatprep.subr.bf16.mxu0 0
        %1190 = vmatpush1.bf16.msra.mxu0 0
        %1191 = vmatprep.subr.bf16.mxu0 0
        %1192 = vmatpush1.bf16.msra.mxu0 0
        %1193 = vmatprep.mubr.bf16.mxu0 0
        %1194 = vmatmul.mubr.bf16.gmra.mrb[0].mxu0 %v1159
        %v1195 = vpop.f32.mrb[0].mxu0
        %v1196 = vadd.f32 0.0, %v1195
        %v1197 = vpop.f32.mrb[0].mxu0
        %v1198 = vpop.f32.mrb[0].mxu0
        %v1199 = vadd.f32 0.0, %v1198
        %v1200 = vpop.f32.mrb[0].mxu0
        %1201 = vdwg.mxu0
        %v1204 = vcombine.high %v1196, %v1196
        %v1206 = vunpack.c.l.s4 1983009808
        %v1207 = vunpack.c.0.s8 %v1206
        %v1208 = vlaneseq
        %v1209 = vshrl.u32 %v1208, 7
        %v1210 = vsub.s32 %v1207, %v1209
        %v1211 = vrot.slane %v1196, %v1210
        %v1213 = vunpack.c.l.s4 1983009808
        %v1214 = vunpack.c.0.s8 %v1213
        %v1215 = vlaneseq
        %v1216 = vshrl.u32 %v1215, 7
        %v1217 = vsub.s32 %v1214, %v1216
        %v1218 = vrot.slane %v1204, %v1217
        %v1219 = vcombine.high %v1211, %v1211
        %v1220 = vcombine.high %v1218, %v1218
        %v1221 = vcombine.high %v1199, %v1199
        %v1223 = vunpack.c.l.s4 1983009808
        %v1224 = vunpack.c.0.s8 %v1223
        %v1225 = vlaneseq
        %v1226 = vshrl.u32 %v1225, 7
        %v1227 = vsub.s32 %v1224, %v1226
        %v1228 = vrot.slane %v1199, %v1227
        %v1230 = vunpack.c.l.s4 1983009808
        %v1231 = vunpack.c.0.s8 %v1230
        %v1232 = vlaneseq
        %v1233 = vshrl.u32 %v1232, 7
        %v1234 = vsub.s32 %v1231, %v1233
        %v1235 = vrot.slane %v1221, %v1234
        %v1236 = vcombine.high %v1228, %v1228
        %v1237 = vcombine.high %v1235, %v1235
        %vm1246 = vcmask 779264
        %1247 = vst.msk [vmem:[#allocation2] sm:$0x3] %vm1246, %v1211
        %1248 = vst.msk [vmem:[#allocation2 + $0x2] sm:$0x3] %vm1246, %v1219
        %1249 = vst.msk [vmem:[#allocation2 + $0x4] sm:$0x3] %vm1246, %v1218
        %1250 = vst.msk [vmem:[#allocation2 + $0x6] sm:$0x3] %vm1246, %v1220
        %1251 = vst.msk [vmem:[#allocation2 + $0x8] sm:$0x3] %vm1246, %v1228
        %1252 = vst.msk [vmem:[#allocation2 + $0xa] sm:$0x3] %vm1246, %v1236
        %1253 = vst.msk [vmem:[#allocation2 + $0xc] sm:$0x3] %vm1246, %v1235
        %1254 = vst.msk [vmem:[#allocation2 + $0xe] sm:$0x3] %vm1246, %v1237
        %v1255 = vld [vmem:[%s633] sm:$0xf]
        %v1256 = vld [vmem:[%s633 + $0x4] sm:$0xf]
        %v1257 = vld [vmem:[%s633 + $0x8] sm:$0xf]
        %v1258 = vld [vmem:[%s633 + $0xc] sm:$0xf]
        %v1259 = vld [vmem:[%s636] sm:$0x1]
        %v1260 = vld [vmem:[%s639] sm:$0x1]
        %v1261 = vld [vmem:[#allocation2] sm:$0x3]
        %v1263 = vlaneseq
        %v1264 = vshrl.u32 %v1263, 7
        %v1265 = vsub.s32 0, %v1264
        %v1266 = vrot.slane %v1259, %v1265
        %v1268 = vadd.f32 %v1261, %v1266
        %v1270 = vlaneseq
        %v1271 = vshrl.u32 %v1270, 7
        %v1272 = vsub.s32 0, %v1271
        %v1273 = vrot.slane %v1260, %v1272
        %v1279 = vunpack.c.l.b16 %v1255
        %v1280 = vunpack.c.l.b16 %v1256
        %v1281 = vunpack.c.l.b16 %v1257
        %v1282 = vunpack.c.l.b16 %v1258
        %v1283 = vpack.c.b16 %v1280, %v1279
        %v1284 = vpack.c.b16 %v1282, %v1281
        %vm1287 = vcmask 261120
        %v1289 = vsel %vm1287, 0, 0
        %1291 = vmatprep.subr.bf16.mxu0 0
        %1292 = vmatpush1.bf16.msra.mxu0 %v1283
        %1293 = vmatprep.subr.bf16.mxu0 0
        %1294 = vmatpush1.bf16.msra.mxu0 %v1284
        %1295 = vmatprep.subr.bf16.mxu0 0
        %1296 = vmatpush1.bf16.msra.mxu0 0
        %1297 = vmatprep.subr.bf16.mxu0 0
        %1298 = vmatpush1.bf16.msra.mxu0 0
        %1299 = vmatprep.subr.bf16.mxu0 0
        %1300 = vmatpush1.bf16.msra.mxu0 0
        %1301 = vmatprep.subr.bf16.mxu0 0
        %1302 = vmatpush1.bf16.msra.mxu0 0
        %1303 = vmatprep.subr.bf16.mxu0 0
        %1304 = vmatpush1.bf16.msra.mxu0 0
        %1305 = vmatprep.subr.bf16.mxu0 0
        %1306 = vmatpush1.bf16.msra.mxu0 0
        %1307 = vmatprep.subr.bf16.mxu0 0
        %1308 = vmatpush1.bf16.msra.mxu0 0
        %1309 = vmatprep.subr.bf16.mxu0 0
        %1310 = vmatpush1.bf16.msra.mxu0 0
        %1311 = vmatprep.subr.bf16.mxu0 0
        %1312 = vmatpush1.bf16.msra.mxu0 0
        %1313 = vmatprep.subr.bf16.mxu0 0
        %1314 = vmatpush1.bf16.msra.mxu0 0
        %1315 = vmatprep.subr.bf16.mxu0 0
        %1316 = vmatpush1.bf16.msra.mxu0 0
        %1317 = vmatprep.subr.bf16.mxu0 0
        %1318 = vmatpush1.bf16.msra.mxu0 0
        %1319 = vmatprep.subr.bf16.mxu0 0
        %1320 = vmatpush1.bf16.msra.mxu0 0
        %1321 = vmatprep.subr.bf16.mxu0 0
        %1322 = vmatpush1.bf16.msra.mxu0 0
        %1323 = vmatprep.mubr.bf16.mxu0 0
        %1324 = vmatmul.mubr.bf16.gmra.mrb[0].mxu0 %v1289
        %v1325 = vpop.f32.mrb[0].mxu0
        %v1326 = vadd.f32 %v1273, %v1325
        %v1327 = vpop.f32.mrb[0].mxu0
        %v1328 = vpop.f32.mrb[0].mxu0
        %v1329 = vpop.f32.mrb[0].mxu0
        %1330 = vdwg.mxu0
        %v1331 = vadd.f32 %v1268, %v1326
        %v1332 = vxor.u32 %v1331, 2147483648
        %v1333 = vmul.f32 %v1332, 1.442695
        %v1334 = vpow.pop %v1333
        %v1335 = vadd.f32 %v1334, 1.0
        %v1336 = vrcp.pop %v1335
        %v1337 = vmul.f32 1.0, %v1336
        %1339 = vrot.lane.b32.xlu0 %v1326, 64
        %v1340 = vpop.permute.xlu0 %1339
        %v1342 = vmul.f32 %v1337, %v1340
        %1344 = vrot.lane.b32.xlu0 %v1342, 64
        %v1345 = vpop.permute.xlu0 %1344
        %v1347 = vadd.f32 %v1268, %v1345
        %v1348 = vtanh.pop %v1347
        %v1349 = vsub.f32 1.0, %v1337
        %1351 = vrot.lane.b32.xlu0 %v1348, 96
        %v1352 = vpop.permute.xlu0 %1351
        %v1354 = vmul.f32 %v1349, %v1352
        %v1355 = vmul.f32 %v1337, 0.0
        %v1356 = vadd.f32 %v1354, %v1355
        %s1357 = scalar_lea.vmem [#allocation2], 2
        %v1358 = vld [vmem:[%s1357] sm:$0x3]
        %v1359 = vadd.f32 %v1358, %v1266
        %v1360 = vpack.c.bf16 %v1356, %v1356
        %1362 = vrot.lane.b32.xlu0 %v1360, 96
        %v1363 = vpop.permute.xlu0 %1362
        %v1365 = vsel %vm1287, %v1363, 0
        %1367 = vmatprep.subr.bf16.mxu0 0
        %1368 = vmatpush1.bf16.msra.mxu0 %v1283
        %1369 = vmatprep.subr.bf16.mxu0 0
        %1370 = vmatpush1.bf16.msra.mxu0 %v1284
        %1371 = vmatprep.subr.bf16.mxu0 0
        %1372 = vmatpush1.bf16.msra.mxu0 0
        %1373 = vmatprep.subr.bf16.mxu0 0
        %1374 = vmatpush1.bf16.msra.mxu0 0
        %1375 = vmatprep.subr.bf16.mxu0 0
        %1376 = vmatpush1.bf16.msra.mxu0 0
        %1377 = vmatprep.subr.bf16.mxu0 0
        %1378 = vmatpush1.bf16.msra.mxu0 0
        %1379 = vmatprep.subr.bf16.mxu0 0
        %1380 = vmatpush1.bf16.msra.mxu0 0
        %1381 = vmatprep.subr.bf16.mxu0 0
        %1382 = vmatpush1.bf16.msra.mxu0 0
        %1383 = vmatprep.subr.bf16.mxu0 0
        %1384 = vmatpush1.bf16.msra.mxu0 0
        %1385 = vmatprep.subr.bf16.mxu0 0
        %1386 = vmatpush1.bf16.msra.mxu0 0
        %1387 = vmatprep.subr.bf16.mxu0 0
        %1388 = vmatpush1.bf16.msra.mxu0 0
        %1389 = vmatprep.subr.bf16.mxu0 0
        %1390 = vmatpush1.bf16.msra.mxu0 0
        %1391 = vmatprep.subr.bf16.mxu0 0
        %1392 = vmatpush1.bf16.msra.mxu0 0
        %1393 = vmatprep.subr.bf16.mxu0 0
        %1394 = vmatpush1.bf16.msra.mxu0 0
        %1395 = vmatprep.subr.bf16.mxu0 0
        %1396 = vmatpush1.bf16.msra.mxu0 0
        %1397 = vmatprep.subr.bf16.mxu0 0
        %1398 = vmatpush1.bf16.msra.mxu0 0
        %1399 = vmatprep.mubr.bf16.mxu0 0
        %1400 = vmatmul.mubr.bf16.gmra.mrb[0].mxu0 %v1365
        %v1401 = vpop.f32.mrb[0].mxu0
        %v1402 = vadd.f32 %v1273, %v1401
        %v1403 = vpop.f32.mrb[0].mxu0
        %v1404 = vpop.f32.mrb[0].mxu0
        %v1405 = vpop.f32.mrb[0].mxu0
        %1406 = vdwg.mxu0
        %v1407 = vadd.f32 %v1359, %v1402
        %v1408 = vxor.u32 %v1407, 2147483648
        %v1409 = vmul.f32 %v1408, 1.442695
        %v1410 = vpow.pop %v1409
        %v1411 = vadd.f32 %v1410, 1.0
        %v1412 = vrcp.pop %v1411
        %v1413 = vmul.f32 1.0, %v1412
        %1415 = vrot.lane.b32.xlu0 %v1402, 64
        %v1416 = vpop.permute.xlu0 %1415
        %v1418 = vmul.f32 %v1413, %v1416
        %1420 = vrot.lane.b32.xlu0 %v1418, 64
        %v1421 = vpop.permute.xlu0 %1420
        %v1423 = vadd.f32 %v1359, %v1421
        %v1424 = vtanh.pop %v1423
        %v1425 = vsub.f32 1.0, %v1413
        %1427 = vrot.lane.b32.xlu0 %v1424, 96
        %v1428 = vpop.permute.xlu0 %1427
        %v1430 = vmul.f32 %v1425, %v1428
        %v1431 = vmul.f32 %v1413, %v1356
        %v1432 = vadd.f32 %v1430, %v1431
        %s1433 = scalar_lea.vmem [#allocation2], 4
        %v1434 = vld [vmem:[%s1433] sm:$0x3]
        %v1435 = vadd.f32 %v1434, %v1266
        %v1436 = vpack.c.bf16 %v1432, %v1432
        %1438 = vrot.lane.b32.xlu0 %v1436, 96
        %v1439 = vpop.permute.xlu0 %1438
        %v1441 = vsel %vm1287, %v1439, 0
        %1443 = vmatprep.subr.bf16.mxu0 0
        %1444 = vmatpush1.bf16.msra.mxu0 %v1283
        %1445 = vmatprep.subr.bf16.mxu0 0
        %1446 = vmatpush1.bf16.msra.mxu0 %v1284
        %1447 = vmatprep.subr.bf16.mxu0 0
        %1448 = vmatpush1.bf16.msra.mxu0 0
        %1449 = vmatprep.subr.bf16.mxu0 0
        %1450 = vmatpush1.bf16.msra.mxu0 0
        %1451 = vmatprep.subr.bf16.mxu0 0
        %1452 = vmatpush1.bf16.msra.mxu0 0
        %1453 = vmatprep.subr.bf16.mxu0 0
        %1454 = vmatpush1.bf16.msra.mxu0 0
        %1455 = vmatprep.subr.bf16.mxu0 0
        %1456 = vmatpush1.bf16.msra.mxu0 0
        %1457 = vmatprep.subr.bf16.mxu0 0
        %1458 = vmatpush1.bf16.msra.mxu0 0
        %1459 = vmatprep.subr.bf16.mxu0 0
        %1460 = vmatpush1.bf16.msra.mxu0 0
        %1461 = vmatprep.subr.bf16.mxu0 0
        %1462 = vmatpush1.bf16.msra.mxu0 0
        %1463 = vmatprep.subr.bf16.mxu0 0
        %1464 = vmatpush1.bf16.msra.mxu0 0
        %1465 = vmatprep.subr.bf16.mxu0 0
        %1466 = vmatpush1.bf16.msra.mxu0 0
        %1467 = vmatprep.subr.bf16.mxu0 0
        %1468 = vmatpush1.bf16.msra.mxu0 0
        %1469 = vmatprep.subr.bf16.mxu0 0
        %1470 = vmatpush1.bf16.msra.mxu0 0
        %1471 = vmatprep.subr.bf16.mxu0 0
        %1472 = vmatpush1.bf16.msra.mxu0 0
        %1473 = vmatprep.subr.bf16.mxu0 0
        %1474 = vmatpush1.bf16.msra.mxu0 0
        %1475 = vmatprep.mubr.bf16.mxu0 0
        %1476 = vmatmul.mubr.bf16.gmra.mrb[0].mxu0 %v1441
        %v1477 = vpop.f32.mrb[0].mxu0
        %v1478 = vadd.f32 %v1273, %v1477
        %v1479 = vpop.f32.mrb[0].mxu0
        %v1480 = vpop.f32.mrb[0].mxu0
        %v1481 = vpop.f32.mrb[0].mxu0
        %1482 = vdwg.mxu0
        %v1483 = vadd.f32 %v1435, %v1478
        %v1484 = vxor.u32 %v1483, 2147483648
        %v1485 = vmul.f32 %v1484, 1.442695
        %v1486 = vpow.pop %v1485
        %v1487 = vadd.f32 %v1486, 1.0
        %v1488 = vrcp.pop %v1487
        %v1489 = vmul.f32 1.0, %v1488
        %1491 = vrot.lane.b32.xlu0 %v1478, 64
        %v1492 = vpop.permute.xlu0 %1491
        %v1494 = vmul.f32 %v1489, %v1492
        %1496 = vrot.lane.b32.xlu0 %v1494, 64
        %v1497 = vpop.permute.xlu0 %1496
        %v1499 = vadd.f32 %v1435, %v1497
        %v1500 = vtanh.pop %v1499
        %v1501 = vsub.f32 1.0, %v1489
        %1503 = vrot.lane.b32.xlu0 %v1500, 96
        %v1504 = vpop.permute.xlu0 %1503
        %v1506 = vmul.f32 %v1501, %v1504
        %v1507 = vmul.f32 %v1489, %v1432
        %v1508 = vadd.f32 %v1506, %v1507
        %s1509 = scalar_lea.vmem [#allocation2], 6
        %v1510 = vld [vmem:[%s1509] sm:$0x3]
        %v1511 = vadd.f32 %v1510, %v1266
        %v1512 = vpack.c.bf16 %v1508, %v1508
        %1514 = vrot.lane.b32.xlu0 %v1512, 96
        %v1515 = vpop.permute.xlu0 %1514
        %v1517 = vsel %vm1287, %v1515, 0
        %1519 = vmatprep.subr.bf16.mxu0 0
        %1520 = vmatpush1.bf16.msra.mxu0 %v1283
        %1521 = vmatprep.subr.bf16.mxu0 0
        %1522 = vmatpush1.bf16.msra.mxu0 %v1284
        %1523 = vmatprep.subr.bf16.mxu0 0
        %1524 = vmatpush1.bf16.msra.mxu0 0
        %1525 = vmatprep.subr.bf16.mxu0 0
        %1526 = vmatpush1.bf16.msra.mxu0 0
        %1527 = vmatprep.subr.bf16.mxu0 0
        %1528 = vmatpush1.bf16.msra.mxu0 0
        %1529 = vmatprep.subr.bf16.mxu0 0
        %1530 = vmatpush1.bf16.msra.mxu0 0
        %1531 = vmatprep.subr.bf16.mxu0 0
        %1532 = vmatpush1.bf16.msra.mxu0 0
        %1533 = vmatprep.subr.bf16.mxu0 0
        %1534 = vmatpush1.bf16.msra.mxu0 0
        %1535 = vmatprep.subr.bf16.mxu0 0
        %1536 = vmatpush1.bf16.msra.mxu0 0
        %1537 = vmatprep.subr.bf16.mxu0 0
        %1538 = vmatpush1.bf16.msra.mxu0 0
        %1539 = vmatprep.subr.bf16.mxu0 0
        %1540 = vmatpush1.bf16.msra.mxu0 0
        %1541 = vmatprep.subr.bf16.mxu0 0
        %1542 = vmatpush1.bf16.msra.mxu0 0
        %1543 = vmatprep.subr.bf16.mxu0 0
        %1544 = vmatpush1.bf16.msra.mxu0 0
        %1545 = vmatprep.subr.bf16.mxu0 0
        %1546 = vmatpush1.bf16.msra.mxu0 0
        %1547 = vmatprep.subr.bf16.mxu0 0
        %1548 = vmatpush1.bf16.msra.mxu0 0
        %1549 = vmatprep.subr.bf16.mxu0 0
        %1550 = vmatpush1.bf16.msra.mxu0 0
        %1551 = vmatprep.mubr.bf16.mxu0 0
        %1552 = vmatmul.mubr.bf16.gmra.mrb[0].mxu0 %v1517
        %v1553 = vpop.f32.mrb[0].mxu0
        %v1554 = vadd.f32 %v1273, %v1553
        %v1555 = vpop.f32.mrb[0].mxu0
        %v1556 = vpop.f32.mrb[0].mxu0
        %v1557 = vpop.f32.mrb[0].mxu0
        %1558 = vdwg.mxu0
        %v1559 = vadd.f32 %v1511, %v1554
        %v1560 = vxor.u32 %v1559, 2147483648
        %v1561 = vmul.f32 %v1560, 1.442695
        %v1562 = vpow.pop %v1561
        %v1563 = vadd.f32 %v1562, 1.0
        %v1564 = vrcp.pop %v1563
        %v1565 = vmul.f32 1.0, %v1564
        %1567 = vrot.lane.b32.xlu0 %v1554, 64
        %v1568 = vpop.permute.xlu0 %1567
        %v1570 = vmul.f32 %v1565, %v1568
        %1572 = vrot.lane.b32.xlu0 %v1570, 64
        %v1573 = vpop.permute.xlu0 %1572
        %v1575 = vadd.f32 %v1511, %v1573
        %v1576 = vtanh.pop %v1575
        %v1577 = vsub.f32 1.0, %v1565
        %1579 = vrot.lane.b32.xlu0 %v1576, 96
        %v1580 = vpop.permute.xlu0 %1579
        %v1582 = vmul.f32 %v1577, %v1580
        %v1583 = vmul.f32 %v1565, %v1508
        %v1584 = vadd.f32 %v1582, %v1583
        %s1585 = scalar_lea.vmem [#allocation2], 8
        %v1586 = vld [vmem:[%s1585] sm:$0x3]
        %v1587 = vadd.f32 %v1586, %v1266
        %v1588 = vpack.c.bf16 %v1584, %v1584
        %1590 = vrot.lane.b32.xlu0 %v1588, 96
        %v1591 = vpop.permute.xlu0 %1590
        %v1593 = vsel %vm1287, %v1591, 0
        %1595 = vmatprep.subr.bf16.mxu0 0
        %1596 = vmatpush1.bf16.msra.mxu0 %v1283
        %1597 = vmatprep.subr.bf16.mxu0 0
        %1598 = vmatpush1.bf16.msra.mxu0 %v1284
        %1599 = vmatprep.subr.bf16.mxu0 0
        %1600 = vmatpush1.bf16.msra.mxu0 0
        %1601 = vmatprep.subr.bf16.mxu0 0
        %1602 = vmatpush1.bf16.msra.mxu0 0
        %1603 = vmatprep.subr.bf16.mxu0 0
        %1604 = vmatpush1.bf16.msra.mxu0 0
        %1605 = vmatprep.subr.bf16.mxu0 0
        %1606 = vmatpush1.bf16.msra.mxu0 0
        %1607 = vmatprep.subr.bf16.mxu0 0
        %1608 = vmatpush1.bf16.msra.mxu0 0
        %1609 = vmatprep.subr.bf16.mxu0 0
        %1610 = vmatpush1.bf16.msra.mxu0 0
        %1611 = vmatprep.subr.bf16.mxu0 0
        %1612 = vmatpush1.bf16.msra.mxu0 0
        %1613 = vmatprep.subr.bf16.mxu0 0
        %1614 = vmatpush1.bf16.msra.mxu0 0
        %1615 = vmatprep.subr.bf16.mxu0 0
        %1616 = vmatpush1.bf16.msra.mxu0 0
        %1617 = vmatprep.subr.bf16.mxu0 0
        %1618 = vmatpush1.bf16.msra.mxu0 0
        %1619 = vmatprep.subr.bf16.mxu0 0
        %1620 = vmatpush1.bf16.msra.mxu0 0
        %1621 = vmatprep.subr.bf16.mxu0 0
        %1622 = vmatpush1.bf16.msra.mxu0 0
        %1623 = vmatprep.subr.bf16.mxu0 0
        %1624 = vmatpush1.bf16.msra.mxu0 0
        %1625 = vmatprep.subr.bf16.mxu0 0
        %1626 = vmatpush1.bf16.msra.mxu0 0
        %1627 = vmatprep.mubr.bf16.mxu0 0
        %1628 = vmatmul.mubr.bf16.gmra.mrb[0].mxu0 %v1593
        %v1629 = vpop.f32.mrb[0].mxu0
        %v1630 = vadd.f32 %v1273, %v1629
        %v1631 = vpop.f32.mrb[0].mxu0
        %v1632 = vpop.f32.mrb[0].mxu0
        %v1633 = vpop.f32.mrb[0].mxu0
        %1634 = vdwg.mxu0
        %v1635 = vadd.f32 %v1587, %v1630
        %v1636 = vxor.u32 %v1635, 2147483648
        %v1637 = vmul.f32 %v1636, 1.442695
        %v1638 = vpow.pop %v1637
        %v1639 = vadd.f32 %v1638, 1.0
        %v1640 = vrcp.pop %v1639
        %v1641 = vmul.f32 1.0, %v1640
        %1643 = vrot.lane.b32.xlu0 %v1630, 64
        %v1644 = vpop.permute.xlu0 %1643
        %v1646 = vmul.f32 %v1641, %v1644
        %1648 = vrot.lane.b32.xlu0 %v1646, 64
        %v1649 = vpop.permute.xlu0 %1648
        %v1651 = vadd.f32 %v1587, %v1649
        %v1652 = vtanh.pop %v1651
        %v1653 = vsub.f32 1.0, %v1641
        %1655 = vrot.lane.b32.xlu0 %v1652, 96
        %v1656 = vpop.permute.xlu0 %1655
        %v1658 = vmul.f32 %v1653, %v1656
        %v1659 = vmul.f32 %v1641, %v1584
        %v1660 = vadd.f32 %v1658, %v1659
        %s1661 = scalar_lea.vmem [#allocation2], 10
        %v1662 = vld [vmem:[%s1661] sm:$0x3]
        %v1663 = vadd.f32 %v1662, %v1266
        %v1664 = vpack.c.bf16 %v1660, %v1660
        %1666 = vrot.lane.b32.xlu0 %v1664, 96
        %v1667 = vpop.permute.xlu0 %1666
        %v1669 = vsel %vm1287, %v1667, 0
        %1671 = vmatprep.subr.bf16.mxu0 0
        %1672 = vmatpush1.bf16.msra.mxu0 %v1283
        %1673 = vmatprep.subr.bf16.mxu0 0
        %1674 = vmatpush1.bf16.msra.mxu0 %v1284
        %1675 = vmatprep.subr.bf16.mxu0 0
        %1676 = vmatpush1.bf16.msra.mxu0 0
        %1677 = vmatprep.subr.bf16.mxu0 0
        %1678 = vmatpush1.bf16.msra.mxu0 0
        %1679 = vmatprep.subr.bf16.mxu0 0
        %1680 = vmatpush1.bf16.msra.mxu0 0
        %1681 = vmatprep.subr.bf16.mxu0 0
        %1682 = vmatpush1.bf16.msra.mxu0 0
        %1683 = vmatprep.subr.bf16.mxu0 0
        %1684 = vmatpush1.bf16.msra.mxu0 0
        %1685 = vmatprep.subr.bf16.mxu0 0
        %1686 = vmatpush1.bf16.msra.mxu0 0
        %1687 = vmatprep.subr.bf16.mxu0 0
        %1688 = vmatpush1.bf16.msra.mxu0 0
        %1689 = vmatprep.subr.bf16.mxu0 0
        %1690 = vmatpush1.bf16.msra.mxu0 0
        %1691 = vmatprep.subr.bf16.mxu0 0
        %1692 = vmatpush1.bf16.msra.mxu0 0
        %1693 = vmatprep.subr.bf16.mxu0 0
        %1694 = vmatpush1.bf16.msra.mxu0 0
        %1695 = vmatprep.subr.bf16.mxu0 0
        %1696 = vmatpush1.bf16.msra.mxu0 0
        %1697 = vmatprep.subr.bf16.mxu0 0
        %1698 = vmatpush1.bf16.msra.mxu0 0
        %1699 = vmatprep.subr.bf16.mxu0 0
        %1700 = vmatpush1.bf16.msra.mxu0 0
        %1701 = vmatprep.subr.bf16.mxu0 0
        %1702 = vmatpush1.bf16.msra.mxu0 0
        %1703 = vmatprep.mubr.bf16.mxu0 0
        %1704 = vmatmul.mubr.bf16.gmra.mrb[0].mxu0 %v1669
        %v1705 = vpop.f32.mrb[0].mxu0
        %v1706 = vadd.f32 %v1273, %v1705
        %v1707 = vpop.f32.mrb[0].mxu0
        %v1708 = vpop.f32.mrb[0].mxu0
        %v1709 = vpop.f32.mrb[0].mxu0
        %1710 = vdwg.mxu0
        %v1711 = vadd.f32 %v1663, %v1706
        %v1712 = vxor.u32 %v1711, 2147483648
        %v1713 = vmul.f32 %v1712, 1.442695
        %v1714 = vpow.pop %v1713
        %v1715 = vadd.f32 %v1714, 1.0
        %v1716 = vrcp.pop %v1715
        %v1717 = vmul.f32 1.0, %v1716
        %1719 = vrot.lane.b32.xlu0 %v1706, 64
        %v1720 = vpop.permute.xlu0 %1719
        %v1722 = vmul.f32 %v1717, %v1720
        %1724 = vrot.lane.b32.xlu0 %v1722, 64
        %v1725 = vpop.permute.xlu0 %1724
        %v1727 = vadd.f32 %v1663, %v1725
        %v1728 = vtanh.pop %v1727
        %v1729 = vsub.f32 1.0, %v1717
        %1731 = vrot.lane.b32.xlu0 %v1728, 96
        %v1732 = vpop.permute.xlu0 %1731
        %v1734 = vmul.f32 %v1729, %v1732
        %v1735 = vmul.f32 %v1717, %v1660
        %v1736 = vadd.f32 %v1734, %v1735
        %s1737 = scalar_lea.vmem [#allocation2], 12
        %v1738 = vld [vmem:[%s1737] sm:$0x3]
        %v1739 = vadd.f32 %v1738, %v1266
        %v1740 = vpack.c.bf16 %v1736, %v1736
        %1742 = vrot.lane.b32.xlu0 %v1740, 96
        %v1743 = vpop.permute.xlu0 %1742
        %v1745 = vsel %vm1287, %v1743, 0
        %1747 = vmatprep.subr.bf16.mxu0 0
        %1748 = vmatpush1.bf16.msra.mxu0 %v1283
        %1749 = vmatprep.subr.bf16.mxu0 0
        %1750 = vmatpush1.bf16.msra.mxu0 %v1284
        %1751 = vmatprep.subr.bf16.mxu0 0
        %1752 = vmatpush1.bf16.msra.mxu0 0
        %1753 = vmatprep.subr.bf16.mxu0 0
        %1754 = vmatpush1.bf16.msra.mxu0 0
        %1755 = vmatprep.subr.bf16.mxu0 0
        %1756 = vmatpush1.bf16.msra.mxu0 0
        %1757 = vmatprep.subr.bf16.mxu0 0
        %1758 = vmatpush1.bf16.msra.mxu0 0
        %1759 = vmatprep.subr.bf16.mxu0 0
        %1760 = vmatpush1.bf16.msra.mxu0 0
        %1761 = vmatprep.subr.bf16.mxu0 0
        %1762 = vmatpush1.bf16.msra.mxu0 0
        %1763 = vmatprep.subr.bf16.mxu0 0
        %1764 = vmatpush1.bf16.msra.mxu0 0
        %1765 = vmatprep.subr.bf16.mxu0 0
        %1766 = vmatpush1.bf16.msra.mxu0 0
        %1767 = vmatprep.subr.bf16.mxu0 0
        %1768 = vmatpush1.bf16.msra.mxu0 0
        %1769 = vmatprep.subr.bf16.mxu0 0
        %1770 = vmatpush1.bf16.msra.mxu0 0
        %1771 = vmatprep.subr.bf16.mxu0 0
        %1772 = vmatpush1.bf16.msra.mxu0 0
        %1773 = vmatprep.subr.bf16.mxu0 0
        %1774 = vmatpush1.bf16.msra.mxu0 0
        %1775 = vmatprep.subr.bf16.mxu0 0
        %1776 = vmatpush1.bf16.msra.mxu0 0
        %1777 = vmatprep.subr.bf16.mxu0 0
        %1778 = vmatpush1.bf16.msra.mxu0 0
        %1779 = vmatprep.mubr.bf16.mxu0 0
        %1780 = vmatmul.mubr.bf16.gmra.mrb[0].mxu0 %v1745
        %v1781 = vpop.f32.mrb[0].mxu0
        %v1782 = vadd.f32 %v1273, %v1781
        %v1783 = vpop.f32.mrb[0].mxu0
        %v1784 = vpop.f32.mrb[0].mxu0
        %v1785 = vpop.f32.mrb[0].mxu0
        %1786 = vdwg.mxu0
        %v1787 = vadd.f32 %v1739, %v1782
        %v1788 = vxor.u32 %v1787, 2147483648
        %v1789 = vmul.f32 %v1788, 1.442695
        %v1790 = vpow.pop %v1789
        %v1791 = vadd.f32 %v1790, 1.0
        %v1792 = vrcp.pop %v1791
        %v1793 = vmul.f32 1.0, %v1792
        %1795 = vrot.lane.b32.xlu0 %v1782, 64
        %v1796 = vpop.permute.xlu0 %1795
        %v1798 = vmul.f32 %v1793, %v1796
        %1800 = vrot.lane.b32.xlu0 %v1798, 64
        %v1801 = vpop.permute.xlu0 %1800
        %v1803 = vadd.f32 %v1739, %v1801
        %v1804 = vtanh.pop %v1803
        %v1805 = vsub.f32 1.0, %v1793
        %1807 = vrot.lane.b32.xlu0 %v1804, 96
        %v1808 = vpop.permute.xlu0 %1807
        %v1810 = vmul.f32 %v1805, %v1808
        %v1811 = vmul.f32 %v1793, %v1736
        %v1812 = vadd.f32 %v1810, %v1811
        %s1813 = scalar_lea.vmem [#allocation2], 14
        %v1814 = vld [vmem:[%s1813] sm:$0x3]
        %v1815 = vadd.f32 %v1814, %v1266
        %v1816 = vpack.c.bf16 %v1812, %v1812
        %1818 = vrot.lane.b32.xlu0 %v1816, 96
        %v1819 = vpop.permute.xlu0 %1818
        %v1821 = vsel %vm1287, %v1819, 0
        %1823 = vmatprep.subr.bf16.mxu0 0
        %1824 = vmatpush1.bf16.msra.mxu0 %v1283
        %1825 = vmatprep.subr.bf16.mxu0 0
        %1826 = vmatpush1.bf16.msra.mxu0 %v1284
        %1827 = vmatprep.subr.bf16.mxu0 0
        %1828 = vmatpush1.bf16.msra.mxu0 0
        %1829 = vmatprep.subr.bf16.mxu0 0
        %1830 = vmatpush1.bf16.msra.mxu0 0
        %1831 = vmatprep.subr.bf16.mxu0 0
        %1832 = vmatpush1.bf16.msra.mxu0 0
        %1833 = vmatprep.subr.bf16.mxu0 0
        %1834 = vmatpush1.bf16.msra.mxu0 0
        %1835 = vmatprep.subr.bf16.mxu0 0
        %1836 = vmatpush1.bf16.msra.mxu0 0
        %1837 = vmatprep.subr.bf16.mxu0 0
        %1838 = vmatpush1.bf16.msra.mxu0 0
        %1839 = vmatprep.subr.bf16.mxu0 0
        %1840 = vmatpush1.bf16.msra.mxu0 0
        %1841 = vmatprep.subr.bf16.mxu0 0
        %1842 = vmatpush1.bf16.msra.mxu0 0
        %1843 = vmatprep.subr.bf16.mxu0 0
        %1844 = vmatpush1.bf16.msra.mxu0 0
        %1845 = vmatprep.subr.bf16.mxu0 0
        %1846 = vmatpush1.bf16.msra.mxu0 0
        %1847 = vmatprep.subr.bf16.mxu0 0
        %1848 = vmatpush1.bf16.msra.mxu0 0
        %1849 = vmatprep.subr.bf16.mxu0 0
        %1850 = vmatpush1.bf16.msra.mxu0 0
        %1851 = vmatprep.subr.bf16.mxu0 0
        %1852 = vmatpush1.bf16.msra.mxu0 0
        %1853 = vmatprep.subr.bf16.mxu0 0
        %1854 = vmatpush1.bf16.msra.mxu0 0
        %1855 = vmatprep.mubr.bf16.mxu0 0
        %1856 = vmatmul.mubr.bf16.gmra.mrb[0].mxu0 %v1821
        %v1857 = vpop.f32.mrb[0].mxu0
        %v1858 = vadd.f32 %v1273, %v1857
        %v1859 = vpop.f32.mrb[0].mxu0
        %v1860 = vpop.f32.mrb[0].mxu0
        %v1861 = vpop.f32.mrb[0].mxu0
        %1862 = vdwg.mxu0
        %v1863 = vadd.f32 %v1815, %v1858
        %v1864 = vxor.u32 %v1863, 2147483648
        %v1865 = vmul.f32 %v1864, 1.442695
        %v1866 = vpow.pop %v1865
        %v1867 = vadd.f32 %v1866, 1.0
        %v1868 = vrcp.pop %v1867
        %v1869 = vmul.f32 1.0, %v1868
        %1871 = vrot.lane.b32.xlu0 %v1858, 64
        %v1872 = vpop.permute.xlu0 %1871
        %v1874 = vmul.f32 %v1869, %v1872
        %1876 = vrot.lane.b32.xlu0 %v1874, 64
        %v1877 = vpop.permute.xlu0 %1876
        %v1879 = vadd.f32 %v1815, %v1877
        %v1880 = vtanh.pop %v1879
        %v1881 = vsub.f32 1.0, %v1869
        %1883 = vrot.lane.b32.xlu0 %v1880, 96
        %v1884 = vpop.permute.xlu0 %1883
        %v1886 = vmul.f32 %v1881, %v1884
        %v1887 = vmul.f32 %v1869, %v1812
        %v1888 = vadd.f32 %v1886, %v1887
        %1890 = vrot.lane.b32.xlu0 %v1888, 96
        %v1891 = vpop.permute.xlu0 %1890
        %vm1893 = vcmask 254976
        %1894 = vst.msk [vmem:[%s648] sm:$0x3] %vm1893, %v1891
        %v1895 = vld [vmem:[#allocation3] sm:$0x3]
        %v1896 = vpack.c.bf16 %v1888, %v1888
        %v1897 = vld [vmem:[%s644] sm:$0xf]
        %v1898 = vld [vmem:[%s644 + $0x4] sm:$0xf]
        %v1899 = vld [vmem:[%s644 + $0x8] sm:$0xf]
        %v1900 = vld [vmem:[%s644 + $0xc] sm:$0xf]
        %1902 = vrot.lane.b32.xlu0 %v1896, 96
        %v1903 = vpop.permute.xlu0 %1902
        %v1908 = vunpack.c.l.b16 %v1897
        %v1909 = vunpack.c.l.b16 %v1898
        %v1910 = vunpack.c.l.b16 %v1899
        %v1911 = vunpack.c.l.b16 %v1900
        %v1912 = vpack.c.b16 %v1909, %v1908
        %v1913 = vpack.c.b16 %v1911, %v1910
        %v1917 = vsel %vm1287, %v1903, 0
        %1919 = vmatprep.subr.bf16.mxu0 0
        %1920 = vmatpush1.bf16.msra.mxu0 %v1912
        %1921 = vmatprep.subr.bf16.mxu0 0
        %1922 = vmatpush1.bf16.msra.mxu0 %v1913
        %1923 = vmatprep.subr.bf16.mxu0 0
        %1924 = vmatpush1.bf16.msra.mxu0 0
        %1925 = vmatprep.subr.bf16.mxu0 0
        %1926 = vmatpush1.bf16.msra.mxu0 0
        %1927 = vmatprep.subr.bf16.mxu0 0
        %1928 = vmatpush1.bf16.msra.mxu0 0
        %1929 = vmatprep.subr.bf16.mxu0 0
        %1930 = vmatpush1.bf16.msra.mxu0 0
        %1931 = vmatprep.subr.bf16.mxu0 0
        %1932 = vmatpush1.bf16.msra.mxu0 0
        %1933 = vmatprep.subr.bf16.mxu0 0
        %1934 = vmatpush1.bf16.msra.mxu0 0
        %1935 = vmatprep.subr.bf16.mxu0 0
        %1936 = vmatpush1.bf16.msra.mxu0 0
        %1937 = vmatprep.subr.bf16.mxu0 0
        %1938 = vmatpush1.bf16.msra.mxu0 0
        %1939 = vmatprep.subr.bf16.mxu0 0
        %1940 = vmatpush1.bf16.msra.mxu0 0
        %1941 = vmatprep.subr.bf16.mxu0 0
        %1942 = vmatpush1.bf16.msra.mxu0 0
        %1943 = vmatprep.subr.bf16.mxu0 0
        %1944 = vmatpush1.bf16.msra.mxu0 0
        %1945 = vmatprep.subr.bf16.mxu0 0
        %1946 = vmatpush1.bf16.msra.mxu0 0
        %1947 = vmatprep.subr.bf16.mxu0 0
        %1948 = vmatpush1.bf16.msra.mxu0 0
        %1949 = vmatprep.subr.bf16.mxu0 0
        %1950 = vmatpush1.bf16.msra.mxu0 0
        %1951 = vmatprep.mubr.bf16.mxu0 0
        %1952 = vmatmul.mubr.bf16.gmra.mrb[0].mxu0 %v1917
        %v1953 = vpop.f32.mrb[0].mxu0
        %v1954 = vadd.f32 0.0, %v1953
        %v1955 = vpop.f32.mrb[0].mxu0
        %v1956 = vpop.f32.mrb[0].mxu0
        %v1957 = vpop.f32.mrb[0].mxu0
        %1958 = vdwg.mxu0
        %v1959 = vadd.f32 %v1895, %v1954
        %vm1960 = vcmask 58368
        %1961 = vst.msk [vmem:[#allocation3] sm:$0x3] %vm1960, %v1959
        %p1962 = scmp.eq.s32.totalorder %s31, 1
        // Predicated region
        $region81: #{dearllm_forward.1} parent=75 // pred_check
          %p1963 = pneg %p1962
        $region82: #{dearllm_forward.1} parent=75 // pred_check_branch
          %1965 = sbr.rel (%p1963) target = $region84
        $region83: #{dearllm_forward.1} parent=75 // pred_region
          %v1966 = vld [vmem:[%s6] sm:$0xf]
          %v1967 = vld [vmem:[%s6 + $0x4] sm:$0xf]
          %v1968 = vld [vmem:[%s6 + $0x8] sm:$0xf]
          %v1969 = vld [vmem:[%s6 + $0xc] sm:$0xf]
          %v1970 = vld [vmem:[%s7] sm:$0xf]
          %v1971 = vld [vmem:[%s7 + $0x4] sm:$0xf]
          %v1972 = vld [vmem:[%s7 + $0x8] sm:$0xf]
          %v1973 = vld [vmem:[%s7 + $0xc] sm:$0xf]
          %v1974 = vld [vmem:[%s8] sm:$0xf]
          %v1975 = vld [vmem:[%s8 + $0x4] sm:$0xf]
          %v1980 = vunpack.c.l.b16 %v1970
          %v1981 = vunpack.c.l.b16 %v1971
          %v1982 = vunpack.c.l.b16 %v1972
          %v1983 = vunpack.c.l.b16 %v1973
          %v1984 = vpack.c.b16 %v1981, %v1980
          %v1985 = vpack.c.b16 %v1983, %v1982
          %v1988 = vunpack.c.l.b16 %v1974
          %v1989 = vunpack.c.l.b16 %v1975
          %v1990 = vpack.c.b16 %v1989, %v1988
          %v1993 = vsel %vm1157, %v1984, 0
          %v1996 = vsel %vm1157, %v1985, 0
          %1998 = vmatprep.subr.bf16.mxu0 0
          %1999 = vmatpush1.bf16.msra.mxu0 %v1990
          %2000 = vmatprep.subr.bf16.mxu0 0
          %2001 = vmatpush1.bf16.msra.mxu0 0
          %2002 = vmatprep.subr.bf16.mxu0 0
          %2003 = vmatpush1.bf16.msra.mxu0 0
          %2004 = vmatprep.subr.bf16.mxu0 0
          %2005 = vmatpush1.bf16.msra.mxu0 0
          %2006 = vmatprep.subr.bf16.mxu0 0
          %2007 = vmatpush1.bf16.msra.mxu0 0
          %2008 = vmatprep.subr.bf16.mxu0 0
          %2009 = vmatpush1.bf16.msra.mxu0 0
          %2010 = vmatprep.subr.bf16.mxu0 0
          %2011 = vmatpush1.bf16.msra.mxu0 0
          %2012 = vmatprep.subr.bf16.mxu0 0
          %2013 = vmatpush1.bf16.msra.mxu0 0
          %2014 = vmatprep.subr.bf16.mxu0 0
          %2015 = vmatpush1.bf16.msra.mxu0 0
          %2016 = vmatprep.subr.bf16.mxu0 0
          %2017 = vmatpush1.bf16.msra.mxu0 0
          %2018 = vmatprep.subr.bf16.mxu0 0
          %2019 = vmatpush1.bf16.msra.mxu0 0
          %2020 = vmatprep.subr.bf16.mxu0 0
          %2021 = vmatpush1.bf16.msra.mxu0 0
          %2022 = vmatprep.subr.bf16.mxu0 0
          %2023 = vmatpush1.bf16.msra.mxu0 0
          %2024 = vmatprep.subr.bf16.mxu0 0
          %2025 = vmatpush1.bf16.msra.mxu0 0
          %2026 = vmatprep.subr.bf16.mxu0 0
          %2027 = vmatpush1.bf16.msra.mxu0 0
          %2028 = vmatprep.subr.bf16.mxu0 0
          %2029 = vmatpush1.bf16.msra.mxu0 0
          %2030 = vmatprep.mubr.bf16.mxu0 0
          %2031 = vmatmul.mubr.bf16.gmra.mrb[0].mxu0 %v1993
          %v2032 = vpop.f32.mrb[0].mxu0
          %v2033 = vadd.f32 0.0, %v2032
          %v2034 = vpop.f32.mrb[0].mxu0
          %v2035 = vpop.f32.mrb[0].mxu0
          %v2036 = vadd.f32 0.0, %v2035
          %v2037 = vpop.f32.mrb[0].mxu0
          %2038 = vmatprep.mubr.bf16.mxu0 0
          %2039 = vmatmul.mubr.bf16.gmra.mrb[0].mxu0 %v1996
          %v2040 = vpop.f32.mrb[0].mxu0
          %v2041 = vadd.f32 0.0, %v2040
          %v2042 = vpop.f32.mrb[0].mxu0
          %v2043 = vpop.f32.mrb[0].mxu0
          %v2044 = vadd.f32 0.0, %v2043
          %v2045 = vpop.f32.mrb[0].mxu0
          %2046 = vdwg.mxu0
          %v2047 = vpack.c.bf16 %v2036, %v2033
          %v2048 = vpack.c.bf16 %v2044, %v2041
          %v2051 = vunpack.c.l.b16 %v1966
          %v2052 = vunpack.c.l.b16 %v1967
          %v2053 = vpack.c.b16 %v2052, %v2051
          %v2055 = vsel %vm1157, %v2053, 0
          %2057 = vmatprep.subr.bf16.mxu0 0
          %2058 = vmatpush1.bf16.msra.mxu0 %v2047
          %2059 = vmatprep.subr.bf16.mxu0 0
          %2060 = vmatpush1.bf16.msra.mxu0 0
          %2061 = vmatprep.subr.bf16.mxu0 0
          %2062 = vmatpush1.bf16.msra.mxu0 0
          %2063 = vmatprep.subr.bf16.mxu0 0
          %2064 = vmatpush1.bf16.msra.mxu0 0
          %2065 = vmatprep.subr.bf16.mxu0 0
          %2066 = vmatpush1.bf16.msra.mxu0 0
          %2067 = vmatprep.subr.bf16.mxu0 0
          %2068 = vmatpush1.bf16.msra.mxu0 0
          %2069 = vmatprep.subr.bf16.mxu0 0
          %2070 = vmatpush1.bf16.msra.mxu0 0
          %2071 = vmatprep.subr.bf16.mxu0 0
          %2072 = vmatpush1.bf16.msra.mxu0 0
          %2073 = vmatprep.subr.bf16.mxu0 0
          %2074 = vmatpush1.bf16.msra.mxu0 0
          %2075 = vmatprep.subr.bf16.mxu0 0
          %2076 = vmatpush1.bf16.msra.mxu0 0
          %2077 = vmatprep.subr.bf16.mxu0 0
          %2078 = vmatpush1.bf16.msra.mxu0 0
          %2079 = vmatprep.subr.bf16.mxu0 0
          %2080 = vmatpush1.bf16.msra.mxu0 0
          %2081 = vmatprep.subr.bf16.mxu0 0
          %2082 = vmatpush1.bf16.msra.mxu0 0
          %2083 = vmatprep.subr.bf16.mxu0 0
          %2084 = vmatpush1.bf16.msra.mxu0 0
          %2085 = vmatprep.subr.bf16.mxu0 0
          %2086 = vmatpush1.bf16.msra.mxu0 0
          %2087 = vmatprep.subr.bf16.mxu0 0
          %2088 = vmatpush1.bf16.msra.mxu0 0
          %2089 = vmatprep.mubr.bf16.mxu0 0
          %2090 = vmatmul.mubr.bf16.gmra.mrb[0].mxu0 %v2055
          %v2091 = vpop.f32.mrb[0].mxu0
          %v2092 = vadd.f32 0.0, %v2091
          %v2093 = vpop.f32.mrb[0].mxu0
          %v2094 = vpop.f32.mrb[0].mxu0
          %v2095 = vadd.f32 0.0, %v2094
          %v2096 = vpop.f32.mrb[0].mxu0
          %2097 = vdwg.mxu0
          %v2100 = vunpack.c.l.b16 %v1968
          %v2101 = vunpack.c.l.b16 %v1969
          %v2102 = vpack.c.b16 %v2101, %v2100
          %v2104 = vsel %vm1157, %v2102, 0
          %2106 = vmatprep.subr.bf16.mxu0 0
          %2107 = vmatpush1.bf16.msra.mxu0 %v2048
          %2108 = vmatprep.subr.bf16.mxu0 0
          %2109 = vmatpush1.bf16.msra.mxu0 0
          %2110 = vmatprep.subr.bf16.mxu0 0
          %2111 = vmatpush1.bf16.msra.mxu0 0
          %2112 = vmatprep.subr.bf16.mxu0 0
          %2113 = vmatpush1.bf16.msra.mxu0 0
          %2114 = vmatprep.subr.bf16.mxu0 0
          %2115 = vmatpush1.bf16.msra.mxu0 0
          %2116 = vmatprep.subr.bf16.mxu0 0
          %2117 = vmatpush1.bf16.msra.mxu0 0
          %2118 = vmatprep.subr.bf16.mxu0 0
          %2119 = vmatpush1.bf16.msra.mxu0 0
          %2120 = vmatprep.subr.bf16.mxu0 0
          %2121 = vmatpush1.bf16.msra.mxu0 0
          %2122 = vmatprep.subr.bf16.mxu0 0
          %2123 = vmatpush1.bf16.msra.mxu0 0
          %2124 = vmatprep.subr.bf16.mxu0 0
          %2125 = vmatpush1.bf16.msra.mxu0 0
          %2126 = vmatprep.subr.bf16.mxu0 0
          %2127 = vmatpush1.bf16.msra.mxu0 0
          %2128 = vmatprep.subr.bf16.mxu0 0
          %2129 = vmatpush1.bf16.msra.mxu0 0
          %2130 = vmatprep.subr.bf16.mxu0 0
          %2131 = vmatpush1.bf16.msra.mxu0 0
          %2132 = vmatprep.subr.bf16.mxu0 0
          %2133 = vmatpush1.bf16.msra.mxu0 0
          %2134 = vmatprep.subr.bf16.mxu0 0
          %2135 = vmatpush1.bf16.msra.mxu0 0
          %2136 = vmatprep.subr.bf16.mxu0 0
          %2137 = vmatpush1.bf16.msra.mxu0 0
          %2138 = vmatprep.mubr.bf16.mxu0 0
          %2139 = vmatmul.mubr.bf16.gmra.mrb[0].mxu0 %v2104
          %v2140 = vpop.f32.mrb[0].mxu0
          %v2141 = vadd.f32 0.0, %v2140
          %v2142 = vpop.f32.mrb[0].mxu0
          %v2143 = vpop.f32.mrb[0].mxu0
          %v2144 = vadd.f32 0.0, %v2143
          %v2145 = vpop.f32.mrb[0].mxu0
          %2146 = vdwg.mxu0
          %v2147 = vmax.f32 %v2092, 0.0
          %v2148 = vmax.f32 %v2095, 0.0
          %v2149 = vmax.f32 %v2141, 0.0
          %v2150 = vmax.f32 %v2144, 0.0
          %v2151 = vpack.c.bf16 %v2148, %v2147
          %v2152 = vpack.c.bf16 %v2150, %v2149
          %v2153 = vld [vmem:[%s9] sm:$0xf]
          %v2154 = vld [vmem:[%s9 + $0x4] sm:$0xf]
          %v2155 = vld [vmem:[%s9 + $0x8] sm:$0xf]
          %v2156 = vld [vmem:[%s9 + $0xc] sm:$0xf]
          %v2161 = vunpack.c.l.b16 %v2153
          %v2162 = vunpack.c.l.b16 %v2154
          %v2163 = vunpack.c.l.b16 %v2155
          %v2164 = vunpack.c.l.b16 %v2156
          %v2165 = vpack.c.b16 %v2162, %v2161
          %v2166 = vpack.c.b16 %v2164, %v2163
          %v2170 = vsel %vm1287, %v2151, 0
          %v2173 = vsel %vm1287, %v2152, 0
          %2175 = vmatprep.subr.bf16.mxu0 0
          %2176 = vmatpush1.bf16.msra.mxu0 %v2165
          %2177 = vmatprep.subr.bf16.mxu0 0
          %2178 = vmatpush1.bf16.msra.mxu0 %v2166
          %2179 = vmatprep.subr.bf16.mxu0 0
          %2180 = vmatpush1.bf16.msra.mxu0 0
          %2181 = vmatprep.subr.bf16.mxu0 0
          %2182 = vmatpush1.bf16.msra.mxu0 0
          %2183 = vmatprep.subr.bf16.mxu0 0
          %2184 = vmatpush1.bf16.msra.mxu0 0
          %2185 = vmatprep.subr.bf16.mxu0 0
          %2186 = vmatpush1.bf16.msra.mxu0 0
          %2187 = vmatprep.subr.bf16.mxu0 0
          %2188 = vmatpush1.bf16.msra.mxu0 0
          %2189 = vmatprep.subr.bf16.mxu0 0
          %2190 = vmatpush1.bf16.msra.mxu0 0
          %2191 = vmatprep.subr.bf16.mxu0 0
          %2192 = vmatpush1.bf16.msra.mxu0 0
          %2193 = vmatprep.subr.bf16.mxu0 0
          %2194 = vmatpush1.bf16.msra.mxu0 0
          %2195 = vmatprep.subr.bf16.mxu0 0
          %2196 = vmatpush1.bf16.msra.mxu0 0
          %2197 = vmatprep.subr.bf16.mxu0 0
          %2198 = vmatpush1.bf16.msra.mxu0 0
          %2199 = vmatprep.subr.bf16.mxu0 0
          %2200 = vmatpush1.bf16.msra.mxu0 0
          %2201 = vmatprep.subr.bf16.mxu0 0
          %2202 = vmatpush1.bf16.msra.mxu0 0
          %2203 = vmatprep.subr.bf16.mxu0 0
          %2204 = vmatpush1.bf16.msra.mxu0 0
          %2205 = vmatprep.subr.bf16.mxu0 0
          %2206 = vmatpush1.bf16.msra.mxu0 0
          %2207 = vmatprep.mubr.bf16.mxu0 0
          %2208 = vmatmul.mubr.bf16.gmra.mrb[0].mxu0 %v2170
          %v2209 = vpop.f32.mrb[0].mxu0
          %v2210 = vadd.f32 0.0, %v2209
          %v2211 = vpop.f32.mrb[0].mxu0
          %v2212 = vpop.f32.mrb[0].mxu0
          %v2213 = vadd.f32 0.0, %v2212
          %v2214 = vpop.f32.mrb[0].mxu0
          %2215 = vmatprep.mubr.bf16.mxu0 0
          %2216 = vmatmul.mubr.bf16.gmra.mrb[0].mxu0 %v2173
          %v2217 = vpop.f32.mrb[0].mxu0
          %v2218 = vadd.f32 0.0, %v2217
          %v2219 = vpop.f32.mrb[0].mxu0
          %v2220 = vpop.f32.mrb[0].mxu0
          %v2221 = vadd.f32 0.0, %v2220
          %v2222 = vpop.f32.mrb[0].mxu0
          %2223 = vdwg.mxu0
          %v2224 = vpack.c.bf16 %v2213, %v2210
          %v2225 = vpack.c.bf16 %v2221, %v2218
          %2226 = vmatprep.subr.bf16.mxu0 0
          %2227 = vmatpush1.bf16.msra.mxu0 %v2224
          %2228 = vmatprep.subr.bf16.mxu0 0
          %2229 = vmatpush1.bf16.msra.mxu0 0
          %2230 = vmatprep.subr.bf16.mxu0 0
          %2231 = vmatpush1.bf16.msra.mxu0 0
          %2232 = vmatprep.subr.bf16.mxu0 0
          %2233 = vmatpush1.bf16.msra.mxu0 0
          %2234 = vmatprep.subr.bf16.mxu0 0
          %2235 = vmatpush1.bf16.msra.mxu0 0
          %2236 = vmatprep.subr.bf16.mxu0 0
          %2237 = vmatpush1.bf16.msra.mxu0 0
          %2238 = vmatprep.subr.bf16.mxu0 0
          %2239 = vmatpush1.bf16.msra.mxu0 0
          %2240 = vmatprep.subr.bf16.mxu0 0
          %2241 = vmatpush1.bf16.msra.mxu0 0
          %2242 = vmatprep.subr.bf16.mxu0 0
          %2243 = vmatpush1.bf16.msra.mxu0 0
          %2244 = vmatprep.subr.bf16.mxu0 0
          %2245 = vmatpush1.bf16.msra.mxu0 0
          %2246 = vmatprep.subr.bf16.mxu0 0
          %2247 = vmatpush1.bf16.msra.mxu0 0
          %2248 = vmatprep.subr.bf16.mxu0 0
          %2249 = vmatpush1.bf16.msra.mxu0 0
          %2250 = vmatprep.subr.bf16.mxu0 0
          %2251 = vmatpush1.bf16.msra.mxu0 0
          %2252 = vmatprep.subr.bf16.mxu0 0
          %2253 = vmatpush1.bf16.msra.mxu0 0
          %2254 = vmatprep.subr.bf16.mxu0 0
          %2255 = vmatpush1.bf16.msra.mxu0 0
          %2256 = vmatprep.subr.bf16.mxu0 0
          %2257 = vmatpush1.bf16.msra.mxu0 0
          %2258 = vmatprep.mubr.bf16.mxu0 0
          %2259 = vmatmul.mubr.bf16.gmra.mrb[0].mxu0 %v2055
          %v2260 = vpop.f32.mrb[0].mxu0
          %v2261 = vadd.f32 0.0, %v2260
          %v2262 = vpop.f32.mrb[0].mxu0
          %v2263 = vpop.f32.mrb[0].mxu0
          %v2264 = vadd.f32 0.0, %v2263
          %v2265 = vpop.f32.mrb[0].mxu0
          %2266 = vdwg.mxu0
          %2267 = vmatprep.subr.bf16.mxu0 0
          %2268 = vmatpush1.bf16.msra.mxu0 %v2225
          %2269 = vmatprep.subr.bf16.mxu0 0
          %2270 = vmatpush1.bf16.msra.mxu0 0
          %2271 = vmatprep.subr.bf16.mxu0 0
          %2272 = vmatpush1.bf16.msra.mxu0 0
          %2273 = vmatprep.subr.bf16.mxu0 0
          %2274 = vmatpush1.bf16.msra.mxu0 0
          %2275 = vmatprep.subr.bf16.mxu0 0
          %2276 = vmatpush1.bf16.msra.mxu0 0
          %2277 = vmatprep.subr.bf16.mxu0 0
          %2278 = vmatpush1.bf16.msra.mxu0 0
          %2279 = vmatprep.subr.bf16.mxu0 0
          %2280 = vmatpush1.bf16.msra.mxu0 0
          %2281 = vmatprep.subr.bf16.mxu0 0
          %2282 = vmatpush1.bf16.msra.mxu0 0
          %2283 = vmatprep.subr.bf16.mxu0 0
          %2284 = vmatpush1.bf16.msra.mxu0 0
          %2285 = vmatprep.subr.bf16.mxu0 0
          %2286 = vmatpush1.bf16.msra.mxu0 0
          %2287 = vmatprep.subr.bf16.mxu0 0
          %2288 = vmatpush1.bf16.msra.mxu0 0
          %2289 = vmatprep.subr.bf16.mxu0 0
          %2290 = vmatpush1.bf16.msra.mxu0 0
          %2291 = vmatprep.subr.bf16.mxu0 0
          %2292 = vmatpush1.bf16.msra.mxu0 0
          %2293 = vmatprep.subr.bf16.mxu0 0
          %2294 = vmatpush1.bf16.msra.mxu0 0
          %2295 = vmatprep.subr.bf16.mxu0 0
          %2296 = vmatpush1.bf16.msra.mxu0 0
          %2297 = vmatprep.subr.bf16.mxu0 0
          %2298 = vmatpush1.bf16.msra.mxu0 0
          %2299 = vmatprep.mubr.bf16.mxu0 0
          %2300 = vmatmul.mubr.bf16.gmra.mrb[0].mxu0 %v2104
          %v2301 = vpop.f32.mrb[0].mxu0
          %v2302 = vadd.f32 0.0, %v2301
          %v2303 = vpop.f32.mrb[0].mxu0
          %v2304 = vpop.f32.mrb[0].mxu0
          %v2305 = vadd.f32 0.0, %v2304
          %v2306 = vpop.f32.mrb[0].mxu0
          %2307 = vdwg.mxu0
          %v2308 = vmax.f32 %v2261, 0.0
          %v2309 = vmax.f32 %v2264, 0.0
          %v2310 = vmax.f32 %v2302, 0.0
          %v2311 = vmax.f32 %v2305, 0.0
          %v2312 = vsel %vm1287, %v2308, 0.0
          %v2313 = vsel %vm1287, %v2309, 0.0
          %v2314 = vadd.f32 %v2312, %v2313
          %v2315 = vrot.slane %v2314, 4
          %v2316 = vadd.f32 %v2314, %v2315
          %v2317 = vrot.slane %v2316, 2
          %v2318 = vadd.f32 %v2316, %v2317
          %v2319 = vrot.slane %v2318, 1
          %v2320 = vadd.f32 %v2318, %v2319
          %v2321 = vsel %vm1287, %v2310, 0.0
          %v2322 = vsel %vm1287, %v2311, 0.0
          %v2323 = vadd.f32 %v2321, %v2322
          %v2324 = vrot.slane %v2323, 4
          %v2325 = vadd.f32 %v2323, %v2324
          %v2326 = vrot.slane %v2325, 2
          %v2327 = vadd.f32 %v2325, %v2326
          %v2328 = vrot.slane %v2327, 1
          %v2329 = vadd.f32 %v2327, %v2328
          %v2330 = vrcp.pop 16.0
          %v2331 = vmul.f32 %v2320, %v2330
          %v2332 = vmul.f32 %v2329, %v2330
          %v2333 = vld [vmem:[#allocation3] sm:$0x3]
          %v2334 = vpack.c.bf16 %v2331, %v2331
          %v2335 = vpack.c.bf16 %v2332, %v2332
          %v2336 = vld [vmem:[%s11] sm:$0xf]
          %v2337 = vld [vmem:[%s11 + $0x4] sm:$0xf]
          %v2338 = vld [vmem:[%s11 + $0x8] sm:$0xf]
          %v2339 = vld [vmem:[%s11 + $0xc] sm:$0xf]
          %v2342 = vunpack.c.l.b16 %v2334
          %v2343 = vunpack.c.l.b16 %v2335
          %vm2344 = vcmask 1041409
          %v2345 = vsel %vm2344, %v2343, %v2342
          %v2346 = vpack.c.b16 %v2345, %v2345
          %v2351 = vunpack.c.l.b16 %v2336
          %v2352 = vunpack.c.l.b16 %v2337
          %v2353 = vunpack.c.l.b16 %v2338
          %v2354 = vunpack.c.l.b16 %v2339
          %v2355 = vpack.c.b16 %v2352, %v2351
          %v2356 = vpack.c.b16 %v2354, %v2353
          %v2360 = vsel %vm1287, %v2346, 0
          %2362 = vmatprep.subr.bf16.mxu0 0
          %2363 = vmatpush1.bf16.msra.mxu0 %v2355
          %2364 = vmatprep.subr.bf16.mxu0 0
          %2365 = vmatpush1.bf16.msra.mxu0 %v2356
          %2366 = vmatprep.subr.bf16.mxu0 0
          %2367 = vmatpush1.bf16.msra.mxu0 0
          %2368 = vmatprep.subr.bf16.mxu0 0
          %2369 = vmatpush1.bf16.msra.mxu0 0
          %2370 = vmatprep.subr.bf16.mxu0 0
          %2371 = vmatpush1.bf16.msra.mxu0 0
          %2372 = vmatprep.subr.bf16.mxu0 0
          %2373 = vmatpush1.bf16.msra.mxu0 0
          %2374 = vmatprep.subr.bf16.mxu0 0
          %2375 = vmatpush1.bf16.msra.mxu0 0
          %2376 = vmatprep.subr.bf16.mxu0 0
          %2377 = vmatpush1.bf16.msra.mxu0 0
          %2378 = vmatprep.subr.bf16.mxu0 0
          %2379 = vmatpush1.bf16.msra.mxu0 0
          %2380 = vmatprep.subr.bf16.mxu0 0
          %2381 = vmatpush1.bf16.msra.mxu0 0
          %2382 = vmatprep.subr.bf16.mxu0 0
          %2383 = vmatpush1.bf16.msra.mxu0 0
          %2384 = vmatprep.subr.bf16.mxu0 0
          %2385 = vmatpush1.bf16.msra.mxu0 0
          %2386 = vmatprep.subr.bf16.mxu0 0
          %2387 = vmatpush1.bf16.msra.mxu0 0
          %2388 = vmatprep.subr.bf16.mxu0 0
          %2389 = vmatpush1.bf16.msra.mxu0 0
          %2390 = vmatprep.subr.bf16.mxu0 0
          %2391 = vmatpush1.bf16.msra.mxu0 0
          %2392 = vmatprep.subr.bf16.mxu0 0
          %2393 = vmatpush1.bf16.msra.mxu0 0
          %2394 = vmatprep.mubr.bf16.mxu0 0
          %2395 = vmatmul.mubr.bf16.gmra.mrb[0].mxu0 %v2360
          %v2396 = vpop.f32.mrb[0].mxu0
          %v2397 = vadd.f32 0.0, %v2396
          %v2398 = vpop.f32.mrb[0].mxu0
          %v2399 = vpop.f32.mrb[0].mxu0
          %v2400 = vpop.f32.mrb[0].mxu0
          %2401 = vdwg.mxu0
          %v2402 = vadd.f32 %v2333, %v2397
          %v2403 = vld [vmem:[%s12] sm:$0x1]
          %v2405 = vlaneseq
          %v2406 = vshrl.u32 %v2405, 7
          %v2407 = vsub.s32 0, %v2406
          %v2408 = vrot.slane %v2403, %v2407
          %v2410 = vadd.f32 %v2402, %v2408
          %2411 = vst.msk [vmem:[#allocation6] sm:$0x3] %vm1960, %v2410
          %v2412 = vxor.u32 %v2410, 2147483648
          %v2413 = vmul.f32 %v2412, 1.442695
          %v2414 = vpow.pop %v2413
          %v2415 = vadd.f32 %v2414, 1.0
          %v2416 = vrcp.pop %v2415
          %v2417 = vmul.f32 1.0, %v2416
          %2418 = vst.msk [vmem:[#allocation8] sm:$0x3] %vm1960, %v2417
          %v2419 = vld [vmem:[%s13] sm:$0x3]
          %v2420 = vmax.f32 %v2410, 0.0
          %v2421 = vmul.f32 %v2410, %v2419
          %v2422 = vsub.f32 %v2420, %v2421
          %v2423 = vand.u32 2147483647, %v2410
          %v2424 = vsub.f32 0.0, %v2423
          %v2425 = vmul.f32 %v2424, 1.442695
          %v2426 = vpow.pop %v2425
          %v2427 = vadd.f32 %v2426, 1.0
          %v2428 = vlog2.pop %v2427
          %v2429 = vmul.f32 %v2428, 0.6931472
          %v2430 = vmul.f32 -0.5, %v2426
          %v2431 = vadd.f32 %v2430, 1.0
          %v2432 = vmul.f32 %v2431, %v2426
          %v2433 = vand.u32 2147483647, %v2426
          %vm2434 = vcmp.lt.f32.partialorder %v2433, 0.0004427343
          %v2435 = vsel %vm2434, %v2432, %v2429
          %v2436 = vadd.f32 %v2422, %v2435
          %v2437 = vsel %vm1960, %v2436, 0.0
          %2438 = vadd.xlane.f32.xlu0 %v2437
          %v2439 = vpop.xlane.xlu0 %2438
          %v2440 = vrot.slane %v2439, 4
          %v2441 = vadd.f32 %v2439, %v2440
          %v2442 = vrot.slane %v2441, 2
          %v2443 = vadd.f32 %v2441, %v2442
          %v2444 = vrot.slane %v2443, 1
          %v2445 = vadd.f32 %v2443, %v2444
          %s2446 = vtos %v2445
          %v2447 = vrcp.pop 16.0
          %s2448 = vtos %v2447
          %s2449 = smul.f32 %s2446, %s2448
          %v2450 = vstv %s2449
          %vm2451 = vcmask 0
          %2452 = vst.msk [vmem:[#allocation4] sm:$0x1] %vm2451, %v2450
        $region84: #{dearllm_forward.1} parent=75 // pred_fallthru
          _
        %p2453 = scmp.lt.s32.totalorder %s31, 1
        %s2454 = scalar_select %p2453, %s31, 1
        %s2455 = smul.addr %s2454, 2
        %s2456 = scalar_lea.vmem %s17, %s2455
        // Predicated region
        $region85: #{dearllm_forward.1} parent=75 // pred_check
          %p2457 = pneg %p373
        $region86: #{dearllm_forward.1} parent=75 // pred_check_branch
          %2459 = sbr.rel (%p2457) target = $region88
        $region87: #{dearllm_forward.1} parent=75 // pred_region
          %s2461 = ssub.s32 16, 16
          %2462 = vsyncadd [#allocation5], %s2461
          %s2464 = sshll.u32 [#allocation4], 4
          %s2465 = int_to_ptr.vmem [resolvable:$true] %s2464
          %2467 = dma.vmem_to_hbm [thread:$0]  %s2465, 16, %s14, [#allocation5]
        $region88: #{dearllm_forward.1} parent=75 // pred_fallthru
          _
        // Predicated region
        $region89: #{dearllm_forward.1} parent=75 // pred_check
          %p2468 = pneg %p394
        $region90: #{dearllm_forward.1} parent=75 // pred_check_branch
          %2470 = sbr.rel (%p2468) target = $region92
        $region91: #{dearllm_forward.1} parent=75 // pred_region
          %s2472 = ssub.s32 32, 32
          %2473 = vsyncadd [#allocation7], %s2472
          %s2475 = sshll.u32 [#allocation6], 4
          %s2476 = int_to_ptr.vmem [resolvable:$true] %s2475
          %2478 = dma.vmem_to_hbm [thread:$0]  %s2476, 32, %s15, [#allocation7]
        $region92: #{dearllm_forward.1} parent=75 // pred_fallthru
          _
        // Predicated region
        $region93: #{dearllm_forward.1} parent=75 // pred_check
          %p2479 = pneg %p415
        $region94: #{dearllm_forward.1} parent=75 // pred_check_branch
          %2481 = sbr.rel (%p2479) target = $region96
        $region95: #{dearllm_forward.1} parent=75 // pred_region
          %s2483 = ssub.s32 32, 32
          %2484 = vsyncadd [#allocation7], %s2483
          %s2486 = sshll.u32 [#allocation8], 4
          %s2487 = int_to_ptr.vmem [resolvable:$true] %s2486
          %2489 = dma.vmem_to_hbm [thread:$0]  %s2487, 32, %s16, [#allocation7]
        $region96: #{dearllm_forward.1} parent=75 // pred_fallthru
          _
        // Predicated region
        $region97: #{dearllm_forward.1} parent=75 // pred_check
          %p2490 = pneg %p441
        $region98: #{dearllm_forward.1} parent=75 // pred_check_branch
          %2492 = sbr.rel (%p2490) target = $region100
        $region99: #{dearllm_forward.1} parent=75 // pred_region
          _
        $region100: #{dearllm_forward.1} parent=75 // pred_fallthru
          _
        // Predicated region
        $region101: #{dearllm_forward.1} parent=75 // pred_check
          %p2493 = pneg %p373
        $region102: #{dearllm_forward.1} parent=75 // pred_check_branch
          %2495 = sbr.rel (%p2493) target = $region104
        $region103: #{dearllm_forward.1} parent=75 // pred_region
          %2496 = dma.done [#allocation5], 16
        $region104: #{dearllm_forward.1} parent=75 // pred_fallthru
          _
        // Predicated region
        $region105: #{dearllm_forward.1} parent=75 // pred_check
          %p2497 = pneg %p394
        $region106: #{dearllm_forward.1} parent=75 // pred_check_branch
          %2499 = sbr.rel (%p2497) target = $region108
        $region107: #{dearllm_forward.1} parent=75 // pred_region
          %2500 = dma.done [#allocation7], 32
        $region108: #{dearllm_forward.1} parent=75 // pred_fallthru
          _
        // Predicated region
        $region109: #{dearllm_forward.1} parent=75 // pred_check
          %p2501 = pneg %p415
        $region110: #{dearllm_forward.1} parent=75 // pred_check_branch
          %2503 = sbr.rel (%p2501) target = $region112
        $region111: #{dearllm_forward.1} parent=75 // pred_region
          %2504 = dma.done [#allocation7], 32
        $region112: #{dearllm_forward.1} parent=75 // pred_fallthru
          _
      $region76: #{dearllm_forward.1} parent=5 // pred_fallthru
        _
      %p2505 = scmp.le.s32.totalorder 2, %s26
      // Predicated region
      $region113: #{dearllm_forward.1} parent=5 // pred_check
        %p2506 = pneg %p2505
      $region114: #{dearllm_forward.1} parent=5 // pred_check_branch
        %2508 = sbr.rel (%p2506) target = $region116
      $region115: #{dearllm_forward.1} parent=5 // pred_region
        %s2509 = ssub.s32 %s26, 2
        // Predicated region
        $region117: #{dearllm_forward.1} parent=115 // pred_check
          %p2510 = pneg %p447
        $region118: #{dearllm_forward.1} parent=115 // pred_check_branch
          %2512 = sbr.rel (%p2510) target = $region120
        $region119: #{dearllm_forward.1} parent=115 // pred_region
          %p2513 = scmp.lt.s32.totalorder %s32, 1
          %s2514 = scalar_select %p2513, %s32, 1
          %s2515 = smul.addr %s2514, 2
          %s2516 = scalar_lea.vmem %s17, %s2515
        $region120: #{dearllm_forward.1} parent=115 // pred_fallthru
          _
      $region116: #{dearllm_forward.1} parent=5 // pred_fallthru
        _
    $region6: #{dearllm_forward.1} parent=1 // loop_footer
      %s30 = sadd.s32 1, %s26
    $region7: #{dearllm_forward.1} parent=1 // loop_footer_branch
      %25 = sbr.rel target = $region3
    $region8: #{dearllm_forward.1} parent=1 // loop_exit
      _
    %2517 = vsyncpa [#allocation5], 1
    %s2518 = scalar_lea.sflag [#allocation5], 1
    %2519 = vsyncpa %s2518, 1
    %2520 = vsyncpa [#allocation7], 1

</llo_original>
